<compile_context>
chip_gen: v6e
topology: v6e:2x2x1
jax: 0.10.0
libtpu: 0.0.40
codegen_flags: <defaults>
</compile_context>

<pallas_src>
import functools

import jax
import jax.numpy as jnp
from jax import lax
from jax.experimental import pallas as pl
from jax.experimental.pallas import tpu as pltpu


# -----------------------------------------------------------------------------
# Single fused kernel: embedding gather + stacked (bi)LSTM + fc + sigmoid.
# Packed gate order is [i, f, o, g]; layout is time-major, flattened to
# (S*B, feature) so every matmul is a plain 2-D MXU op.
# -----------------------------------------------------------------------------
def _fused_rnn_kernel(S, B, E, H, V, n_layers, num_dirs, n_bufs, *refs):
    # refs = [ids, emb,
    #         per layer: w_ih_comb (in, D*4H), b_comb (1, D*4H), D x w_hh (H, 4H),
    #         fc_w, fc_b, out, n_bufs x seq scratch]
    # Only (layer, direction) cells that can influence hidden[-1] are passed:
    # all directions for layers 0..L-2, only the last direction of layer L-1.
    it = iter(refs)
    ids_ref = next(it)
    emb_ref = next(it)
    layers = []
    for layer in range(n_layers):
        D = 1 if layer == n_layers - 1 else num_dirs
        layers.append((D, next(it), next(it), [next(it) for _ in range(D)]))
    fc_w_ref = next(it)
    fc_b_ref = next(it)
    out_ref = next(it)
    bufs = [next(it) for _ in range(n_bufs)]     # ping-pong inter-layer sequence buffers

    # ---- embedding lookup fused as a one-hot matmul (exact for one-hot rows) ----
    ids = ids_ref[...]                                                    # (S*B, 1) int32, time-major
    onehot = (ids == lax.broadcasted_iota(jnp.int32, (S * B, V), 1)).astype(jnp.float32)
    x_emb = jnp.dot(onehot, emb_ref[...], preferred_element_type=jnp.float32)   # (S*B, E)

    h_last = None
    for layer, (D, w_ih_ref, b_ref, w_hh_refs) in enumerate(layers):
        is_last = layer == n_layers - 1
        x_all = x_emb if layer == 0 else bufs[(layer - 1) % n_bufs][...]  # (S*B, in_dim)

        # ONE hoisted, lane-dense input projection for every timestep and every
        # needed direction of this layer; no recurrent dependence.
        xp_all = jnp.dot(x_all, w_ih_ref[...], preferred_element_type=jnp.float32) + b_ref[...]

        for di in range(D):
            # Last layer keeps only its LAST direction (reverse if bidirectional).
            reverse = (num_dirs == 2) and (di == 1 or is_last)
            w_hh = w_hh_refs[di][...]                                     # (H, 4H), loaded once
            xp = xp_all[:, di * 4 * H:(di + 1) * 4 * H]                   # lane-tile aligned (4H = 128)
            h = jnp.zeros((B, H), jnp.float32)
            c = jnp.zeros((B, H), jnp.float32)
            # Fully-unrolled static time loop; reverse direction indexes backwards.
            for step in range(S):
                t = (S - 1 - step) if reverse else step
                gates = xp[t * B:(t + 1) * B, :] + jnp.dot(h, w_hh, preferred_element_type=jnp.float32)
                sig = jax.nn.sigmoid(gates[:, :3 * H])                    # [i | f | o] in one EUP pass
                g_g = jnp.tanh(gates[:, 3 * H:])                          # [g]
                i_g = sig[:, 0 * H:1 * H]
                f_g = sig[:, 1 * H:2 * H]
                o_g = sig[:, 2 * H:3 * H]
                c = f_g * c + i_g * g_g
                h = o_g * jnp.tanh(c)
                if not is_last:   # only a next layer consumes the sequence
                    bufs[layer % n_bufs][t * B:(t + 1) * B, di * H:(di + 1) * H] = h
            h_last = h

    # ---- fc + sigmoid head fused ------------------------------------------------
    # TODO(synk): nn.Dropout(0.2) is identity in eval mode; training-mode dropout not applied.
    z = jnp.dot(h_last, fc_w_ref[...], preferred_element_type=jnp.float32) + fc_b_ref[...]
    out_ref[...] = jax.nn.sigmoid(z).astype(out_ref.dtype)


def _full_spec(arr):
    """Whole-array VMEM block (no grid)."""
    ndim = arr.ndim
    return pl.BlockSpec(arr.shape, lambda *_: (0,) * ndim)


# -----------------------------------------------------------------------------
# One-time weight repacking (do NOT run per forward call):
#  * PyTorch gate order [i, f, g, o] -> kernel order [i, f, o, g]
#  * both directions' W_ih / b of a layer fused along the output dim
#  * the forward direction of the LAST layer is dropped (hidden[-1] does not use it)
# -----------------------------------------------------------------------------
def pack_params(params, H, n_layers, bidirectional):
    num_dirs = 2 if bidirectional else 1

    def reorder(w):   # permute gate blocks along the last axis
        return jnp.concatenate([w[..., :2 * H], w[..., 3 * H:4 * H], w[..., 2 * H:3 * H]], axis=-1)

    flat = []
    for layer in range(n_layers):
        dirs = (num_dirs - 1,) if layer == n_layers - 1 else tuple(range(num_dirs))
        w_ihs, bs, w_hhs = [], [], []
        for d in dirs:
            w_ih, w_hh, b = params["lstm"][(layer, d)]
            w_ihs.append(reorder(w_ih))
            bs.append(reorder(b))
            w_hhs.append(reorder(w_hh))
        flat.append(jnp.concatenate(w_ihs, axis=1) if len(w_ihs) > 1 else w_ihs[0])
        flat.append(jnp.concatenate(bs, axis=1) if len(bs) > 1 else bs[0])
        flat.extend(w_hhs)
    flat += [params["fc_w"], params["fc_b"]]
    return flat


# -----------------------------------------------------------------------------
# Wrapper: one pallas_call for the entire forward pass
# -----------------------------------------------------------------------------
def rnn_forward(input_x, embeddings, packed_weights, n_layers, bidirectional, H):
    """input_x: (B, S) int32 token ids -> (B, 1) float32 probabilities."""
    B, S = input_x.shape
    V, E = embeddings.shape
    num_dirs = 2 if bidirectional else 1
    n_bufs = min(2, n_layers - 1)

    # time-major flattened ids: row s*B + b == input_x[b, s]  (== permute(1, 0))
    ids = input_x.T.reshape(S * B, 1).astype(jnp.int32)

    inputs = [ids, embeddings] + list(packed_weights)
    kernel = functools.partial(_fused_rnn_kernel, S, B, E, H, V, n_layers, num_dirs, n_bufs)
    return pl.pallas_call(
        kernel,
        out_shape=jax.ShapeDtypeStruct((B, 1), jnp.float32),
        in_specs=[_full_spec(a) for a in inputs],
        out_specs=pl.BlockSpec((B, 1), lambda *_: (0, 0)),
        scratch_shapes=[pltpu.VMEM((S * B, num_dirs * H), jnp.float32)] * n_bufs,
    )(*inputs)


# -----------------------------------------------------------------------------
# Deterministic parameter init (PyTorch LSTM/Linear shapes; weights stored
# transposed as (in_dim, 4H), gate order [i, f, g, o], b = b_ih + b_hh)
# -----------------------------------------------------------------------------
def init_params(key, emb_dim, H, n_layers, bidirectional):
    num_dirs = 2 if bidirectional else 1
    k_bound = 1.0 / jnp.sqrt(jnp.float32(H))
    params = {"lstm": {}}
    for layer in range(n_layers):
        in_dim = emb_dim if layer == 0 else H * num_dirs
        for d in range(num_dirs):
            key, k1, k2, k3, k4 = jax.random.split(key, 5)
            w_ih = jax.random.uniform(k1, (in_dim, 4 * H), jnp.float32, -k_bound, k_bound)
            w_hh = jax.random.uniform(k2, (H, 4 * H), jnp.float32, -k_bound, k_bound)
            b_ih = jax.random.uniform(k3, (4 * H,), jnp.float32, -k_bound, k_bound)
            b_hh = jax.random.uniform(k4, (4 * H,), jnp.float32, -k_bound, k_bound)
            params["lstm"][(layer, d)] = (w_ih, w_hh, (b_ih + b_hh).reshape(1, 4 * H))
    key, k5, k6 = jax.random.split(key, 3)
    fc_bound = 1.0 / jnp.sqrt(jnp.float32(H))
    params["fc_w"] = jax.random.uniform(k5, (H, 1), jnp.float32, -fc_bound, fc_bound)
    params["fc_b"] = jax.random.uniform(k6, (1, 1), jnp.float32, -fc_bound, fc_bound)
    return params


# -----------------------------------------------------------------------------
# Pure-JAX reference (mirrors the PyTorch module, full bidirectional LSTM)
# -----------------------------------------------------------------------------
def rnn_reference(input_x, embeddings, params, H, n_layers, bidirectional):
    num_dirs = 2 if bidirectional else 1
    B, S = input_x.shape
    x = embeddings[input_x.T]                       # (S, B, E)  == embedding(permute(1,0))
    h_last = None
    for layer in range(n_layers):
        outs = []
        for d in range(num_dirs):
            w_ih, w_hh, b = params["lstm"][(layer, d)]
            h = jnp.zeros((B, H), jnp.float32)
            c = jnp.zeros((B, H), jnp.float32)
            hs = [None] * S
            order = range(S) if d == 0 else range(S - 1, -1, -1)
            for t in order:
                gates = x[t] @ w_ih + b[0] + h @ w_hh
                i = jax.nn.sigmoid(gates[:, 0:H])
                f = jax.nn.sigmoid(gates[:, H:2 * H])
                g = jnp.tanh(gates[:, 2 * H:3 * H])
                o = jax.nn.sigmoid(gates[:, 3 * H:4 * H])
                c = f * c + i * g
                h = o * jnp.tanh(c)
                hs[t] = h
            outs.append(jnp.stack(hs, axis=0))      # (S, B, H)
            h_last = h                              # hidden[-1] == last dir of last layer
        x = jnp.concatenate(outs, axis=-1)          # (S, B, num_dirs*H)
    z = h_last @ params["fc_w"] + params["fc_b"][0]
    return jax.nn.sigmoid(z)


if __name__ == "__main__":
    vocab, emb_dim = 20, 16
    LSTM_dim, n_layers, bidirectional = 32, 2, True
    batch, seq = 2, 8

    key = jax.random.PRNGKey(0)
    key, k_emb, k_idx, k_par = jax.random.split(key, 4)

    embeddings = jax.random.normal(k_emb, (vocab, emb_dim), jnp.float32)
    params = init_params(k_par, emb_dim, LSTM_dim, n_layers, bidirectional)
    input_x = jax.random.randint(k_idx, (batch, seq), 0, vocab, dtype=jnp.int32)

    packed = pack_params(params, LSTM_dim, n_layers, bidirectional)   # one-time repack

    out = rnn_forward(input_x, embeddings, packed, n_layers, bidirectional, LSTM_dim)
    out = jax.block_until_ready(out)
    assert out.shape == (batch, 1)
    assert bool(jnp.all((out >= 0.0) & (out <= 1.0)))

    ref = jax.block_until_ready(
        rnn_reference(input_x, embeddings, params, LSTM_dim, n_layers, bidirectional))
    assert bool(jnp.allclose(out, ref, rtol=1e-3, atol=2e-4)), (out, ref)

    print("KERNEL_OK")
</pallas_src>

<mosaic_0001>
module attributes {stable_mosaic.version = 11 : i64} {
  func.func @_fused_rnn_kernel(%arg0: memref<16x1xi32, #tpu.memory_space<vmem>>, %arg1: memref<20x16xf32, #tpu.memory_space<vmem>>, %arg2: memref<16x256xf32, #tpu.memory_space<vmem>>, %arg3: memref<1x256xf32, #tpu.memory_space<vmem>>, %arg4: memref<32x128xf32, #tpu.memory_space<vmem>>, %arg5: memref<32x128xf32, #tpu.memory_space<vmem>>, %arg6: memref<64x128xf32, #tpu.memory_space<vmem>>, %arg7: memref<1x128xf32, #tpu.memory_space<vmem>>, %arg8: memref<32x128xf32, #tpu.memory_space<vmem>>, %arg9: memref<32x1xf32, #tpu.memory_space<vmem>>, %arg10: memref<1x1xf32, #tpu.memory_space<vmem>>, %arg11: memref<2x1xf32, #tpu.memory_space<vmem>>, %arg12: memref<16x64xf32, #tpu.memory_space<vmem>>) attributes {dimension_semantics = [], scalar_prefetch = 0 : i64, scratch_operands = 1 : i64, tpu.core_type = #tpu.core_type<tc>} {
    %c0 = arith.constant 0 : index
    %c0_0 = arith.constant 0 : index
    %0 = vector.load %arg0[%c0, %c0_0] : memref<16x1xi32, #tpu.memory_space<vmem>>, vector<16x1xi32>
    %1 = tpu.iota {dimensions = array<i32: 1>} : vector<16x20xi32>
    %2 = vector.broadcast %0 : vector<16x1xi32> to vector<16x20xi32>
    %3 = arith.cmpi eq, %2, %1 : vector<16x20xi32>
    %4 = arith.extui %3 : vector<16x20xi1> to vector<16x20xi32>
    %5 = arith.sitofp %4 : vector<16x20xi32> to vector<16x20xf32>
    %c0_1 = arith.constant 0 : index
    %c0_2 = arith.constant 0 : index
    %6 = vector.load %arg1[%c0_1, %c0_2] : memref<20x16xf32, #tpu.memory_space<vmem>>, vector<20x16xf32>
    %cst = arith.constant dense<0.000000e+00> : vector<16x16xf32>
    %7 = tpu.matmul %5, %6, %cst {dimension_numbers = #tpu.dot_dimension_numbers<[1], [0], [0], [1], [0, 0, 1, 1], [], []>} : vector<16x20xf32>, vector<20x16xf32>, vector<16x16xf32> -> vector<16x16xf32>
    %c0_3 = arith.constant 0 : index
    %c0_4 = arith.constant 0 : index
    %8 = vector.load %arg2[%c0_3, %c0_4] : memref<16x256xf32, #tpu.memory_space<vmem>>, vector<16x256xf32>
    %cst_5 = arith.constant dense<0.000000e+00> : vector<16x256xf32>
    %9 = tpu.matmul %7, %8, %cst_5 {dimension_numbers = #tpu.dot_dimension_numbers<[1], [0], [0], [1], [0, 0, 1, 1], [], []>} : vector<16x16xf32>, vector<16x256xf32>, vector<16x256xf32> -> vector<16x256xf32>
    %c0_6 = arith.constant 0 : index
    %c0_7 = arith.constant 0 : index
    %10 = vector.load %arg3[%c0_6, %c0_7] : memref<1x256xf32, #tpu.memory_space<vmem>>, vector<1x256xf32>
    %11 = vector.broadcast %10 : vector<1x256xf32> to vector<16x256xf32>
    %12 = arith.addf %9, %11 : vector<16x256xf32>
    %c0_8 = arith.constant 0 : index
    %c0_9 = arith.constant 0 : index
    %13 = vector.load %arg4[%c0_8, %c0_9] : memref<32x128xf32, #tpu.memory_space<vmem>>, vector<32x128xf32>
    %14 = vector.extract_strided_slice %12 {offsets = [0, 0], sizes = [16, 128], strides = [1, 1]} : vector<16x256xf32> to vector<16x128xf32>
    %cst_10 = arith.constant 0.000000e+00 : f32
    %15 = vector.broadcast %cst_10 : f32 to vector<2x32xf32>
    %cst_11 = arith.constant 0.000000e+00 : f32
    %16 = vector.broadcast %cst_11 : f32 to vector<2x32xf32>
    %17 = vector.extract_strided_slice %14 {offsets = [0, 0], sizes = [2, 128], strides = [1, 1]} : vector<16x128xf32> to vector<2x128xf32>
    %cst_12 = arith.constant dense<0.000000e+00> : vector<2x128xf32>
    %18 = tpu.matmul %15, %13, %cst_12 {dimension_numbers = #tpu.dot_dimension_numbers<[1], [0], [0], [1], [0, 0, 1, 1], [], []>} : vector<2x32xf32>, vector<32x128xf32>, vector<2x128xf32> -> vector<2x128xf32>
    %19 = arith.addf %17, %18 : vector<2x128xf32>
    %20 = vector.extract_strided_slice %19 {offsets = [0, 0], sizes = [2, 96], strides = [1, 1]} : vector<2x128xf32> to vector<2x96xf32>
    %21 = arith.negf %20 : vector<2x96xf32>
    %22 = math.exp %21 : vector<2x96xf32>
    %cst_13 = arith.constant 1.000000e+00 : f32
    %23 = vector.broadcast %cst_13 : f32 to vector<2x96xf32>
    %24 = arith.addf %23, %22 : vector<2x96xf32>
    %25 = arith.divf %23, %24 : vector<2x96xf32>
    %26 = vector.extract_strided_slice %19 {offsets = [0, 96], sizes = [2, 32], strides = [1, 1]} : vector<2x128xf32> to vector<2x32xf32>
    %27 = math.tanh %26 : vector<2x32xf32>
    %28 = vector.extract_strided_slice %25 {offsets = [0, 0], sizes = [2, 32], strides = [1, 1]} : vector<2x96xf32> to vector<2x32xf32>
    %29 = vector.extract_strided_slice %25 {offsets = [0, 32], sizes = [2, 32], strides = [1, 1]} : vector<2x96xf32> to vector<2x32xf32>
    %30 = vector.extract_strided_slice %25 {offsets = [0, 64], sizes = [2, 32], strides = [1, 1]} : vector<2x96xf32> to vector<2x32xf32>
    %31 = arith.mulf %29, %16 : vector<2x32xf32>
    %32 = arith.mulf %28, %27 : vector<2x32xf32>
    %33 = arith.addf %31, %32 : vector<2x32xf32>
    %34 = math.tanh %33 : vector<2x32xf32>
    %35 = arith.mulf %30, %34 : vector<2x32xf32>
    %c0_14 = arith.constant 0 : index
    %c0_15 = arith.constant 0 : index
    %36 = vector.load %arg12[%c0_14, %c0_15] : memref<16x64xf32, #tpu.memory_space<vmem>>, vector<2x32xf32>
    tpu.vector_store %arg12[%c0_14, %c0_15], %35 {strides = array<i32>} : memref<16x64xf32, #tpu.memory_space<vmem>>, vector<2x32xf32>,
    %37 = vector.extract_strided_slice %14 {offsets = [2, 0], sizes = [2, 128], strides = [1, 1]} : vector<16x128xf32> to vector<2x128xf32>
    %cst_16 = arith.constant dense<0.000000e+00> : vector<2x128xf32>
    %38 = tpu.matmul %35, %13, %cst_16 {dimension_numbers = #tpu.dot_dimension_numbers<[1], [0], [0], [1], [0, 0, 1, 1], [], []>} : vector<2x32xf32>, vector<32x128xf32>, vector<2x128xf32> -> vector<2x128xf32>
    %39 = arith.addf %37, %38 : vector<2x128xf32>
    %40 = vector.extract_strided_slice %39 {offsets = [0, 0], sizes = [2, 96], strides = [1, 1]} : vector<2x128xf32> to vector<2x96xf32>
    %41 = arith.negf %40 : vector<2x96xf32>
    %42 = math.exp %41 : vector<2x96xf32>
    %cst_17 = arith.constant 1.000000e+00 : f32
    %43 = vector.broadcast %cst_17 : f32 to vector<2x96xf32>
    %44 = arith.addf %43, %42 : vector<2x96xf32>
    %45 = arith.divf %43, %44 : vector<2x96xf32>
    %46 = vector.extract_strided_slice %39 {offsets = [0, 96], sizes = [2, 32], strides = [1, 1]} : vector<2x128xf32> to vector<2x32xf32>
    %47 = math.tanh %46 : vector<2x32xf32>
    %48 = vector.extract_strided_slice %45 {offsets = [0, 0], sizes = [2, 32], strides = [1, 1]} : vector<2x96xf32> to vector<2x32xf32>
    %49 = vector.extract_strided_slice %45 {offsets = [0, 32], sizes = [2, 32], strides = [1, 1]} : vector<2x96xf32> to vector<2x32xf32>
    %50 = vector.extract_strided_slice %45 {offsets = [0, 64], sizes = [2, 32], strides = [1, 1]} : vector<2x96xf32> to vector<2x32xf32>
    %51 = arith.mulf %49, %33 : vector<2x32xf32>
    %52 = arith.mulf %48, %47 : vector<2x32xf32>
    %53 = arith.addf %51, %52 : vector<2x32xf32>
    %54 = math.tanh %53 : vector<2x32xf32>
    %55 = arith.mulf %50, %54 : vector<2x32xf32>
    %c2 = arith.constant 2 : index
    %c0_18 = arith.constant 0 : index
    %56 = vector.load %arg12[%c2, %c0_18] : memref<16x64xf32, #tpu.memory_space<vmem>>, vector<2x32xf32>
    tpu.vector_store %arg12[%c2, %c0_18], %55 {strides = array<i32>} : memref<16x64xf32, #tpu.memory_space<vmem>>, vector<2x32xf32>,
    %57 = vector.extract_strided_slice %14 {offsets = [4, 0], sizes = [2, 128], strides = [1, 1]} : vector<16x128xf32> to vector<2x128xf32>
    %cst_19 = arith.constant dense<0.000000e+00> : vector<2x128xf32>
    %58 = tpu.matmul %55, %13, %cst_19 {dimension_numbers = #tpu.dot_dimension_numbers<[1], [0], [0], [1], [0, 0, 1, 1], [], []>} : vector<2x32xf32>, vector<32x128xf32>, vector<2x128xf32> -> vector<2x128xf32>
    %59 = arith.addf %57, %58 : vector<2x128xf32>
    %60 = vector.extract_strided_slice %59 {offsets = [0, 0], sizes = [2, 96], strides = [1, 1]} : vector<2x128xf32> to vector<2x96xf32>
    %61 = arith.negf %60 : vector<2x96xf32>
    %62 = math.exp %61 : vector<2x96xf32>
    %cst_20 = arith.constant 1.000000e+00 : f32
    %63 = vector.broadcast %cst_20 : f32 to vector<2x96xf32>
    %64 = arith.addf %63, %62 : vector<2x96xf32>
    %65 = arith.divf %63, %64 : vector<2x96xf32>
    %66 = vector.extract_strided_slice %59 {offsets = [0, 96], sizes = [2, 32], strides = [1, 1]} : vector<2x128xf32> to vector<2x32xf32>
    %67 = math.tanh %66 : vector<2x32xf32>
    %68 = vector.extract_strided_slice %65 {offsets = [0, 0], sizes = [2, 32], strides = [1, 1]} : vector<2x96xf32> to vector<2x32xf32>
    %69 = vector.extract_strided_slice %65 {offsets = [0, 32], sizes = [2, 32], strides = [1, 1]} : vector<2x96xf32> to vector<2x32xf32>
    %70 = vector.extract_strided_slice %65 {offsets = [0, 64], sizes = [2, 32], strides = [1, 1]} : vector<2x96xf32> to vector<2x32xf32>
    %71 = arith.mulf %69, %53 : vector<2x32xf32>
    %72 = arith.mulf %68, %67 : vector<2x32xf32>
    %73 = arith.addf %71, %72 : vector<2x32xf32>
    %74 = math.tanh %73 : vector<2x32xf32>
    %75 = arith.mulf %70, %74 : vector<2x32xf32>
    %c4 = arith.constant 4 : index
    %c0_21 = arith.constant 0 : index
    %76 = vector.load %arg12[%c4, %c0_21] : memref<16x64xf32, #tpu.memory_space<vmem>>, vector<2x32xf32>
    tpu.vector_store %arg12[%c4, %c0_21], %75 {strides = array<i32>} : memref<16x64xf32, #tpu.memory_space<vmem>>, vector<2x32xf32>,
    %77 = vector.extract_strided_slice %14 {offsets = [6, 0], sizes = [2, 128], strides = [1, 1]} : vector<16x128xf32> to vector<2x128xf32>
    %cst_22 = arith.constant dense<0.000000e+00> : vector<2x128xf32>
    %78 = tpu.matmul %75, %13, %cst_22 {dimension_numbers = #tpu.dot_dimension_numbers<[1], [0], [0], [1], [0, 0, 1, 1], [], []>} : vector<2x32xf32>, vector<32x128xf32>, vector<2x128xf32> -> vector<2x128xf32>
    %79 = arith.addf %77, %78 : vector<2x128xf32>
    %80 = vector.extract_strided_slice %79 {offsets = [0, 0], sizes = [2, 96], strides = [1, 1]} : vector<2x128xf32> to vector<2x96xf32>
    %81 = arith.negf %80 : vector<2x96xf32>
    %82 = math.exp %81 : vector<2x96xf32>
    %cst_23 = arith.constant 1.000000e+00 : f32
    %83 = vector.broadcast %cst_23 : f32 to vector<2x96xf32>
    %84 = arith.addf %83, %82 : vector<2x96xf32>
    %85 = arith.divf %83, %84 : vector<2x96xf32>
    %86 = vector.extract_strided_slice %79 {offsets = [0, 96], sizes = [2, 32], strides = [1, 1]} : vector<2x128xf32> to vector<2x32xf32>
    %87 = math.tanh %86 : vector<2x32xf32>
    %88 = vector.extract_strided_slice %85 {offsets = [0, 0], sizes = [2, 32], strides = [1, 1]} : vector<2x96xf32> to vector<2x32xf32>
    %89 = vector.extract_strided_slice %85 {offsets = [0, 32], sizes = [2, 32], strides = [1, 1]} : vector<2x96xf32> to vector<2x32xf32>
    %90 = vector.extract_strided_slice %85 {offsets = [0, 64], sizes = [2, 32], strides = [1, 1]} : vector<2x96xf32> to vector<2x32xf32>
    %91 = arith.mulf %89, %73 : vector<2x32xf32>
    %92 = arith.mulf %88, %87 : vector<2x32xf32>
    %93 = arith.addf %91, %92 : vector<2x32xf32>
    %94 = math.tanh %93 : vector<2x32xf32>
    %95 = arith.mulf %90, %94 : vector<2x32xf32>
    %c6 = arith.constant 6 : index
    %c0_24 = arith.constant 0 : index
    %96 = vector.load %arg12[%c6, %c0_24] : memref<16x64xf32, #tpu.memory_space<vmem>>, vector<2x32xf32>
    tpu.vector_store %arg12[%c6, %c0_24], %95 {strides = array<i32>} : memref<16x64xf32, #tpu.memory_space<vmem>>, vector<2x32xf32>,
    %97 = vector.extract_strided_slice %14 {offsets = [8, 0], sizes = [2, 128], strides = [1, 1]} : vector<16x128xf32> to vector<2x128xf32>
    %cst_25 = arith.constant dense<0.000000e+00> : vector<2x128xf32>
    %98 = tpu.matmul %95, %13, %cst_25 {dimension_numbers = #tpu.dot_dimension_numbers<[1], [0], [0], [1], [0, 0, 1, 1], [], []>} : vector<2x32xf32>, vector<32x128xf32>, vector<2x128xf32> -> vector<2x128xf32>
    %99 = arith.addf %97, %98 : vector<2x128xf32>
    %100 = vector.extract_strided_slice %99 {offsets = [0, 0], sizes = [2, 96], strides = [1, 1]} : vector<2x128xf32> to vector<2x96xf32>
    %101 = arith.negf %100 : vector<2x96xf32>
    %102 = math.exp %101 : vector<2x96xf32>
    %cst_26 = arith.constant 1.000000e+00 : f32
    %103 = vector.broadcast %cst_26 : f32 to vector<2x96xf32>
    %104 = arith.addf %103, %102 : vector<2x96xf32>
    %105 = arith.divf %103, %104 : vector<2x96xf32>
    %106 = vector.extract_strided_slice %99 {offsets = [0, 96], sizes = [2, 32], strides = [1, 1]} : vector<2x128xf32> to vector<2x32xf32>
    %107 = math.tanh %106 : vector<2x32xf32>
    %108 = vector.extract_strided_slice %105 {offsets = [0, 0], sizes = [2, 32], strides = [1, 1]} : vector<2x96xf32> to vector<2x32xf32>
    %109 = vector.extract_strided_slice %105 {offsets = [0, 32], sizes = [2, 32], strides = [1, 1]} : vector<2x96xf32> to vector<2x32xf32>
    %110 = vector.extract_strided_slice %105 {offsets = [0, 64], sizes = [2, 32], strides = [1, 1]} : vector<2x96xf32> to vector<2x32xf32>
    %111 = arith.mulf %109, %93 : vector<2x32xf32>
    %112 = arith.mulf %108, %107 : vector<2x32xf32>
    %113 = arith.addf %111, %112 : vector<2x32xf32>
    %114 = math.tanh %113 : vector<2x32xf32>
    %115 = arith.mulf %110, %114 : vector<2x32xf32>
    %c8 = arith.constant 8 : index
    %c0_27 = arith.constant 0 : index
    %116 = vector.load %arg12[%c8, %c0_27] : memref<16x64xf32, #tpu.memory_space<vmem>>, vector<2x32xf32>
    tpu.vector_store %arg12[%c8, %c0_27], %115 {strides = array<i32>} : memref<16x64xf32, #tpu.memory_space<vmem>>, vector<2x32xf32>,
    %117 = vector.extract_strided_slice %14 {offsets = [10, 0], sizes = [2, 128], strides = [1, 1]} : vector<16x128xf32> to vector<2x128xf32>
    %cst_28 = arith.constant dense<0.000000e+00> : vector<2x128xf32>
    %118 = tpu.matmul %115, %13, %cst_28 {dimension_numbers = #tpu.dot_dimension_numbers<[1], [0], [0], [1], [0, 0, 1, 1], [], []>} : vector<2x32xf32>, vector<32x128xf32>, vector<2x128xf32> -> vector<2x128xf32>
    %119 = arith.addf %117, %118 : vector<2x128xf32>
    %120 = vector.extract_strided_slice %119 {offsets = [0, 0], sizes = [2, 96], strides = [1, 1]} : vector<2x128xf32> to vector<2x96xf32>
    %121 = arith.negf %120 : vector<2x96xf32>
    %122 = math.exp %121 : vector<2x96xf32>
    %cst_29 = arith.constant 1.000000e+00 : f32
    %123 = vector.broadcast %cst_29 : f32 to vector<2x96xf32>
    %124 = arith.addf %123, %122 : vector<2x96xf32>
    %125 = arith.divf %123, %124 : vector<2x96xf32>
    %126 = vector.extract_strided_slice %119 {offsets = [0, 96], sizes = [2, 32], strides = [1, 1]} : vector<2x128xf32> to vector<2x32xf32>
    %127 = math.tanh %126 : vector<2x32xf32>
    %128 = vector.extract_strided_slice %125 {offsets = [0, 0], sizes = [2, 32], strides = [1, 1]} : vector<2x96xf32> to vector<2x32xf32>
    %129 = vector.extract_strided_slice %125 {offsets = [0, 32], sizes = [2, 32], strides = [1, 1]} : vector<2x96xf32> to vector<2x32xf32>
    %130 = vector.extract_strided_slice %125 {offsets = [0, 64], sizes = [2, 32], strides = [1, 1]} : vector<2x96xf32> to vector<2x32xf32>
    %131 = arith.mulf %129, %113 : vector<2x32xf32>
    %132 = arith.mulf %128, %127 : vector<2x32xf32>
    %133 = arith.addf %131, %132 : vector<2x32xf32>
    %134 = math.tanh %133 : vector<2x32xf32>
    %135 = arith.mulf %130, %134 : vector<2x32xf32>
    %c10 = arith.constant 10 : index
    %c0_30 = arith.constant 0 : index
    %136 = vector.load %arg12[%c10, %c0_30] : memref<16x64xf32, #tpu.memory_space<vmem>>, vector<2x32xf32>
    tpu.vector_store %arg12[%c10, %c0_30], %135 {strides = array<i32>} : memref<16x64xf32, #tpu.memory_space<vmem>>, vector<2x32xf32>,
    %137 = vector.extract_strided_slice %14 {offsets = [12, 0], sizes = [2, 128], strides = [1, 1]} : vector<16x128xf32> to vector<2x128xf32>
    %cst_31 = arith.constant dense<0.000000e+00> : vector<2x128xf32>
    %138 = tpu.matmul %135, %13, %cst_31 {dimension_numbers = #tpu.dot_dimension_numbers<[1], [0], [0], [1], [0, 0, 1, 1], [], []>} : vector<2x32xf32>, vector<32x128xf32>, vector<2x128xf32> -> vector<2x128xf32>
    %139 = arith.addf %137, %138 : vector<2x128xf32>
    %140 = vector.extract_strided_slice %139 {offsets = [0, 0], sizes = [2, 96], strides = [1, 1]} : vector<2x128xf32> to vector<2x96xf32>
    %141 = arith.negf %140 : vector<2x96xf32>
    %142 = math.exp %141 : vector<2x96xf32>
    %cst_32 = arith.constant 1.000000e+00 : f32
    %143 = vector.broadcast %cst_32 : f32 to vector<2x96xf32>
    %144 = arith.addf %143, %142 : vector<2x96xf32>
    %145 = arith.divf %143, %144 : vector<2x96xf32>
    %146 = vector.extract_strided_slice %139 {offsets = [0, 96], sizes = [2, 32], strides = [1, 1]} : vector<2x128xf32> to vector<2x32xf32>
    %147 = math.tanh %146 : vector<2x32xf32>
    %148 = vector.extract_strided_slice %145 {offsets = [0, 0], sizes = [2, 32], strides = [1, 1]} : vector<2x96xf32> to vector<2x32xf32>
    %149 = vector.extract_strided_slice %145 {offsets = [0, 32], sizes = [2, 32], strides = [1, 1]} : vector<2x96xf32> to vector<2x32xf32>
    %150 = vector.extract_strided_slice %145 {offsets = [0, 64], sizes = [2, 32], strides = [1, 1]} : vector<2x96xf32> to vector<2x32xf32>
    %151 = arith.mulf %149, %133 : vector<2x32xf32>
    %152 = arith.mulf %148, %147 : vector<2x32xf32>
    %153 = arith.addf %151, %152 : vector<2x32xf32>
    %154 = math.tanh %153 : vector<2x32xf32>
    %155 = arith.mulf %150, %154 : vector<2x32xf32>
    %c12 = arith.constant 12 : index
    %c0_33 = arith.constant 0 : index
    %156 = vector.load %arg12[%c12, %c0_33] : memref<16x64xf32, #tpu.memory_space<vmem>>, vector<2x32xf32>
    tpu.vector_store %arg12[%c12, %c0_33], %155 {strides = array<i32>} : memref<16x64xf32, #tpu.memory_space<vmem>>, vector<2x32xf32>,
    %157 = vector.extract_strided_slice %14 {offsets = [14, 0], sizes = [2, 128], strides = [1, 1]} : vector<16x128xf32> to vector<2x128xf32>
    %cst_34 = arith.constant dense<0.000000e+00> : vector<2x128xf32>
    %158 = tpu.matmul %155, %13, %cst_34 {dimension_numbers = #tpu.dot_dimension_numbers<[1], [0], [0], [1], [0, 0, 1, 1], [], []>} : vector<2x32xf32>, vector<32x128xf32>, vector<2x128xf32> -> vector<2x128xf32>
    %159 = arith.addf %157, %158 : vector<2x128xf32>
    %160 = vector.extract_strided_slice %159 {offsets = [0, 0], sizes = [2, 96], strides = [1, 1]} : vector<2x128xf32> to vector<2x96xf32>
    %161 = arith.negf %160 : vector<2x96xf32>
    %162 = math.exp %161 : vector<2x96xf32>
    %cst_35 = arith.constant 1.000000e+00 : f32
    %163 = vector.broadcast %cst_35 : f32 to vector<2x96xf32>
    %164 = arith.addf %163, %162 : vector<2x96xf32>
    %165 = arith.divf %163, %164 : vector<2x96xf32>
    %166 = vector.extract_strided_slice %159 {offsets = [0, 96], sizes = [2, 32], strides = [1, 1]} : vector<2x128xf32> to vector<2x32xf32>
    %167 = math.tanh %166 : vector<2x32xf32>
    %168 = vector.extract_strided_slice %165 {offsets = [0, 0], sizes = [2, 32], strides = [1, 1]} : vector<2x96xf32> to vector<2x32xf32>
    %169 = vector.extract_strided_slice %165 {offsets = [0, 32], sizes = [2, 32], strides = [1, 1]} : vector<2x96xf32> to vector<2x32xf32>
    %170 = vector.extract_strided_slice %165 {offsets = [0, 64], sizes = [2, 32], strides = [1, 1]} : vector<2x96xf32> to vector<2x32xf32>
    %171 = arith.mulf %169, %153 : vector<2x32xf32>
    %172 = arith.mulf %168, %167 : vector<2x32xf32>
    %173 = arith.addf %171, %172 : vector<2x32xf32>
    %174 = math.tanh %173 : vector<2x32xf32>
    %175 = arith.mulf %170, %174 : vector<2x32xf32>
    %c14 = arith.constant 14 : index
    %c0_36 = arith.constant 0 : index
    %176 = vector.load %arg12[%c14, %c0_36] : memref<16x64xf32, #tpu.memory_space<vmem>>, vector<2x32xf32>
    tpu.vector_store %arg12[%c14, %c0_36], %175 {strides = array<i32>} : memref<16x64xf32, #tpu.memory_space<vmem>>, vector<2x32xf32>,
    %c0_37 = arith.constant 0 : index
    %c0_38 = arith.constant 0 : index
    %177 = vector.load %arg5[%c0_37, %c0_38] : memref<32x128xf32, #tpu.memory_space<vmem>>, vector<32x128xf32>
    %178 = vector.extract_strided_slice %12 {offsets = [0, 128], sizes = [16, 128], strides = [1, 1]} : vector<16x256xf32> to vector<16x128xf32>
    %cst_39 = arith.constant 0.000000e+00 : f32
    %179 = vector.broadcast %cst_39 : f32 to vector<2x32xf32>
    %cst_40 = arith.constant 0.000000e+00 : f32
    %180 = vector.broadcast %cst_40 : f32 to vector<2x32xf32>
    %181 = vector.extract_strided_slice %178 {offsets = [14, 0], sizes = [2, 128], strides = [1, 1]} : vector<16x128xf32> to vector<2x128xf32>
    %cst_41 = arith.constant dense<0.000000e+00> : vector<2x128xf32>
    %182 = tpu.matmul %179, %177, %cst_41 {dimension_numbers = #tpu.dot_dimension_numbers<[1], [0], [0], [1], [0, 0, 1, 1], [], []>} : vector<2x32xf32>, vector<32x128xf32>, vector<2x128xf32> -> vector<2x128xf32>
    %183 = arith.addf %181, %182 : vector<2x128xf32>
    %184 = vector.extract_strided_slice %183 {offsets = [0, 0], sizes = [2, 96], strides = [1, 1]} : vector<2x128xf32> to vector<2x96xf32>
    %185 = arith.negf %184 : vector<2x96xf32>
    %186 = math.exp %185 : vector<2x96xf32>
    %cst_42 = arith.constant 1.000000e+00 : f32
    %187 = vector.broadcast %cst_42 : f32 to vector<2x96xf32>
    %188 = arith.addf %187, %186 : vector<2x96xf32>
    %189 = arith.divf %187, %188 : vector<2x96xf32>
    %190 = vector.extract_strided_slice %183 {offsets = [0, 96], sizes = [2, 32], strides = [1, 1]} : vector<2x128xf32> to vector<2x32xf32>
    %191 = math.tanh %190 : vector<2x32xf32>
    %192 = vector.extract_strided_slice %189 {offsets = [0, 0], sizes = [2, 32], strides = [1, 1]} : vector<2x96xf32> to vector<2x32xf32>
    %193 = vector.extract_strided_slice %189 {offsets = [0, 32], sizes = [2, 32], strides = [1, 1]} : vector<2x96xf32> to vector<2x32xf32>
    %194 = vector.extract_strided_slice %189 {offsets = [0, 64], sizes = [2, 32], strides = [1, 1]} : vector<2x96xf32> to vector<2x32xf32>
    %195 = arith.mulf %193, %180 : vector<2x32xf32>
    %196 = arith.mulf %192, %191 : vector<2x32xf32>
    %197 = arith.addf %195, %196 : vector<2x32xf32>
    %198 = math.tanh %197 : vector<2x32xf32>
    %199 = arith.mulf %194, %198 : vector<2x32xf32>
    %c14_43 = arith.constant 14 : index
    %c32 = arith.constant 32 : index
    %200 = vector.load %arg12[%c14_43, %c32] : memref<16x64xf32, #tpu.memory_space<vmem>>, vector<2x32xf32>
    tpu.vector_store %arg12[%c14_43, %c32], %199 {strides = array<i32>} : memref<16x64xf32, #tpu.memory_space<vmem>>, vector<2x32xf32>,
    %201 = vector.extract_strided_slice %178 {offsets = [12, 0], sizes = [2, 128], strides = [1, 1]} : vector<16x128xf32> to vector<2x128xf32>
    %cst_44 = arith.constant dense<0.000000e+00> : vector<2x128xf32>
    %202 = tpu.matmul %199, %177, %cst_44 {dimension_numbers = #tpu.dot_dimension_numbers<[1], [0], [0], [1], [0, 0, 1, 1], [], []>} : vector<2x32xf32>, vector<32x128xf32>, vector<2x128xf32> -> vector<2x128xf32>
    %203 = arith.addf %201, %202 : vector<2x128xf32>
    %204 = vector.extract_strided_slice %203 {offsets = [0, 0], sizes = [2, 96], strides = [1, 1]} : vector<2x128xf32> to vector<2x96xf32>
    %205 = arith.negf %204 : vector<2x96xf32>
    %206 = math.exp %205 : vector<2x96xf32>
    %cst_45 = arith.constant 1.000000e+00 : f32
    %207 = vector.broadcast %cst_45 : f32 to vector<2x96xf32>
    %208 = arith.addf %207, %206 : vector<2x96xf32>
    %209 = arith.divf %207, %208 : vector<2x96xf32>
    %210 = vector.extract_strided_slice %203 {offsets = [0, 96], sizes = [2, 32], strides = [1, 1]} : vector<2x128xf32> to vector<2x32xf32>
    %211 = math.tanh %210 : vector<2x32xf32>
    %212 = vector.extract_strided_slice %209 {offsets = [0, 0], sizes = [2, 32], strides = [1, 1]} : vector<2x96xf32> to vector<2x32xf32>
    %213 = vector.extract_strided_slice %209 {offsets = [0, 32], sizes = [2, 32], strides = [1, 1]} : vector<2x96xf32> to vector<2x32xf32>
    %214 = vector.extract_strided_slice %209 {offsets = [0, 64], sizes = [2, 32], strides = [1, 1]} : vector<2x96xf32> to vector<2x32xf32>
    %215 = arith.mulf %213, %197 : vector<2x32xf32>
    %216 = arith.mulf %212, %211 : vector<2x32xf32>
    %217 = arith.addf %215, %216 : vector<2x32xf32>
    %218 = math.tanh %217 : vector<2x32xf32>
    %219 = arith.mulf %214, %218 : vector<2x32xf32>
    %c12_46 = arith.constant 12 : index
    %c32_47 = arith.constant 32 : index
    %220 = vector.load %arg12[%c12_46, %c32_47] : memref<16x64xf32, #tpu.memory_space<vmem>>, vector<2x32xf32>
    tpu.vector_store %arg12[%c12_46, %c32_47], %219 {strides = array<i32>} : memref<16x64xf32, #tpu.memory_space<vmem>>, vector<2x32xf32>,
    %221 = vector.extract_strided_slice %178 {offsets = [10, 0], sizes = [2, 128], strides = [1, 1]} : vector<16x128xf32> to vector<2x128xf32>
    %cst_48 = arith.constant dense<0.000000e+00> : vector<2x128xf32>
    %222 = tpu.matmul %219, %177, %cst_48 {dimension_numbers = #tpu.dot_dimension_numbers<[1], [0], [0], [1], [0, 0, 1, 1], [], []>} : vector<2x32xf32>, vector<32x128xf32>, vector<2x128xf32> -> vector<2x128xf32>
    %223 = arith.addf %221, %222 : vector<2x128xf32>
    %224 = vector.extract_strided_slice %223 {offsets = [0, 0], sizes = [2, 96], strides = [1, 1]} : vector<2x128xf32> to vector<2x96xf32>
    %225 = arith.negf %224 : vector<2x96xf32>
    %226 = math.exp %225 : vector<2x96xf32>
    %cst_49 = arith.constant 1.000000e+00 : f32
    %227 = vector.broadcast %cst_49 : f32 to vector<2x96xf32>
    %228 = arith.addf %227, %226 : vector<2x96xf32>
    %229 = arith.divf %227, %228 : vector<2x96xf32>
    %230 = vector.extract_strided_slice %223 {offsets = [0, 96], sizes = [2, 32], strides = [1, 1]} : vector<2x128xf32> to vector<2x32xf32>
    %231 = math.tanh %230 : vector<2x32xf32>
    %232 = vector.extract_strided_slice %229 {offsets = [0, 0], sizes = [2, 32], strides = [1, 1]} : vector<2x96xf32> to vector<2x32xf32>
    %233 = vector.extract_strided_slice %229 {offsets = [0, 32], sizes = [2, 32], strides = [1, 1]} : vector<2x96xf32> to vector<2x32xf32>
    %234 = vector.extract_strided_slice %229 {offsets = [0, 64], sizes = [2, 32], strides = [1, 1]} : vector<2x96xf32> to vector<2x32xf32>
    %235 = arith.mulf %233, %217 : vector<2x32xf32>
    %236 = arith.mulf %232, %231 : vector<2x32xf32>
    %237 = arith.addf %235, %236 : vector<2x32xf32>
    %238 = math.tanh %237 : vector<2x32xf32>
    %239 = arith.mulf %234, %238 : vector<2x32xf32>
    %c10_50 = arith.constant 10 : index
    %c32_51 = arith.constant 32 : index
    %240 = vector.load %arg12[%c10_50, %c32_51] : memref<16x64xf32, #tpu.memory_space<vmem>>, vector<2x32xf32>
    tpu.vector_store %arg12[%c10_50, %c32_51], %239 {strides = array<i32>} : memref<16x64xf32, #tpu.memory_space<vmem>>, vector<2x32xf32>,
    %241 = vector.extract_strided_slice %178 {offsets = [8, 0], sizes = [2, 128], strides = [1, 1]} : vector<16x128xf32> to vector<2x128xf32>
    %cst_52 = arith.constant dense<0.000000e+00> : vector<2x128xf32>
    %242 = tpu.matmul %239, %177, %cst_52 {dimension_numbers = #tpu.dot_dimension_numbers<[1], [0], [0], [1], [0, 0, 1, 1], [], []>} : vector<2x32xf32>, vector<32x128xf32>, vector<2x128xf32> -> vector<2x128xf32>
    %243 = arith.addf %241, %242 : vector<2x128xf32>
    %244 = vector.extract_strided_slice %243 {offsets = [0, 0], sizes = [2, 96], strides = [1, 1]} : vector<2x128xf32> to vector<2x96xf32>
    %245 = arith.negf %244 : vector<2x96xf32>
    %246 = math.exp %245 : vector<2x96xf32>
    %cst_53 = arith.constant 1.000000e+00 : f32
    %247 = vector.broadcast %cst_53 : f32 to vector<2x96xf32>
    %248 = arith.addf %247, %246 : vector<2x96xf32>
    %249 = arith.divf %247, %248 : vector<2x96xf32>
    %250 = vector.extract_strided_slice %243 {offsets = [0, 96], sizes = [2, 32], strides = [1, 1]} : vector<2x128xf32> to vector<2x32xf32>
    %251 = math.tanh %250 : vector<2x32xf32>
    %252 = vector.extract_strided_slice %249 {offsets = [0, 0], sizes = [2, 32], strides = [1, 1]} : vector<2x96xf32> to vector<2x32xf32>
    %253 = vector.extract_strided_slice %249 {offsets = [0, 32], sizes = [2, 32], strides = [1, 1]} : vector<2x96xf32> to vector<2x32xf32>
    %254 = vector.extract_strided_slice %249 {offsets = [0, 64], sizes = [2, 32], strides = [1, 1]} : vector<2x96xf32> to vector<2x32xf32>
    %255 = arith.mulf %253, %237 : vector<2x32xf32>
    %256 = arith.mulf %252, %251 : vector<2x32xf32>
    %257 = arith.addf %255, %256 : vector<2x32xf32>
    %258 = math.tanh %257 : vector<2x32xf32>
    %259 = arith.mulf %254, %258 : vector<2x32xf32>
    %c8_54 = arith.constant 8 : index
    %c32_55 = arith.constant 32 : index
    %260 = vector.load %arg12[%c8_54, %c32_55] : memref<16x64xf32, #tpu.memory_space<vmem>>, vector<2x32xf32>
    tpu.vector_store %arg12[%c8_54, %c32_55], %259 {strides = array<i32>} : memref<16x64xf32, #tpu.memory_space<vmem>>, vector<2x32xf32>,
    %261 = vector.extract_strided_slice %178 {offsets = [6, 0], sizes = [2, 128], strides = [1, 1]} : vector<16x128xf32> to vector<2x128xf32>
    %cst_56 = arith.constant dense<0.000000e+00> : vector<2x128xf32>
    %262 = tpu.matmul %259, %177, %cst_56 {dimension_numbers = #tpu.dot_dimension_numbers<[1], [0], [0], [1], [0, 0, 1, 1], [], []>} : vector<2x32xf32>, vector<32x128xf32>, vector<2x128xf32> -> vector<2x128xf32>
    %263 = arith.addf %261, %262 : vector<2x128xf32>
    %264 = vector.extract_strided_slice %263 {offsets = [0, 0], sizes = [2, 96], strides = [1, 1]} : vector<2x128xf32> to vector<2x96xf32>
    %265 = arith.negf %264 : vector<2x96xf32>
    %266 = math.exp %265 : vector<2x96xf32>
    %cst_57 = arith.constant 1.000000e+00 : f32
    %267 = vector.broadcast %cst_57 : f32 to vector<2x96xf32>
    %268 = arith.addf %267, %266 : vector<2x96xf32>
    %269 = arith.divf %267, %268 : vector<2x96xf32>
    %270 = vector.extract_strided_slice %263 {offsets = [0, 96], sizes = [2, 32], strides = [1, 1]} : vector<2x128xf32> to vector<2x32xf32>
    %271 = math.tanh %270 : vector<2x32xf32>
    %272 = vector.extract_strided_slice %269 {offsets = [0, 0], sizes = [2, 32], strides = [1, 1]} : vector<2x96xf32> to vector<2x32xf32>
    %273 = vector.extract_strided_slice %269 {offsets = [0, 32], sizes = [2, 32], strides = [1, 1]} : vector<2x96xf32> to vector<2x32xf32>
    %274 = vector.extract_strided_slice %269 {offsets = [0, 64], sizes = [2, 32], strides = [1, 1]} : vector<2x96xf32> to vector<2x32xf32>
    %275 = arith.mulf %273, %257 : vector<2x32xf32>
    %276 = arith.mulf %272, %271 : vector<2x32xf32>
    %277 = arith.addf %275, %276 : vector<2x32xf32>
    %278 = math.tanh %277 : vector<2x32xf32>
    %279 = arith.mulf %274, %278 : vector<2x32xf32>
    %c6_58 = arith.constant 6 : index
    %c32_59 = arith.constant 32 : index
    %280 = vector.load %arg12[%c6_58, %c32_59] : memref<16x64xf32, #tpu.memory_space<vmem>>, vector<2x32xf32>
    tpu.vector_store %arg12[%c6_58, %c32_59], %279 {strides = array<i32>} : memref<16x64xf32, #tpu.memory_space<vmem>>, vector<2x32xf32>,
    %281 = vector.extract_strided_slice %178 {offsets = [4, 0], sizes = [2, 128], strides = [1, 1]} : vector<16x128xf32> to vector<2x128xf32>
    %cst_60 = arith.constant dense<0.000000e+00> : vector<2x128xf32>
    %282 = tpu.matmul %279, %177, %cst_60 {dimension_numbers = #tpu.dot_dimension_numbers<[1], [0], [0], [1], [0, 0, 1, 1], [], []>} : vector<2x32xf32>, vector<32x128xf32>, vector<2x128xf32> -> vector<2x128xf32>
    %283 = arith.addf %281, %282 : vector<2x128xf32>
    %284 = vector.extract_strided_slice %283 {offsets = [0, 0], sizes = [2, 96], strides = [1, 1]} : vector<2x128xf32> to vector<2x96xf32>
    %285 = arith.negf %284 : vector<2x96xf32>
    %286 = math.exp %285 : vector<2x96xf32>
    %cst_61 = arith.constant 1.000000e+00 : f32
    %287 = vector.broadcast %cst_61 : f32 to vector<2x96xf32>
    %288 = arith.addf %287, %286 : vector<2x96xf32>
    %289 = arith.divf %287, %288 : vector<2x96xf32>
    %290 = vector.extract_strided_slice %283 {offsets = [0, 96], sizes = [2, 32], strides = [1, 1]} : vector<2x128xf32> to vector<2x32xf32>
    %291 = math.tanh %290 : vector<2x32xf32>
    %292 = vector.extract_strided_slice %289 {offsets = [0, 0], sizes = [2, 32], strides = [1, 1]} : vector<2x96xf32> to vector<2x32xf32>
    %293 = vector.extract_strided_slice %289 {offsets = [0, 32], sizes = [2, 32], strides = [1, 1]} : vector<2x96xf32> to vector<2x32xf32>
    %294 = vector.extract_strided_slice %289 {offsets = [0, 64], sizes = [2, 32], strides = [1, 1]} : vector<2x96xf32> to vector<2x32xf32>
    %295 = arith.mulf %293, %277 : vector<2x32xf32>
    %296 = arith.mulf %292, %291 : vector<2x32xf32>
    %297 = arith.addf %295, %296 : vector<2x32xf32>
    %298 = math.tanh %297 : vector<2x32xf32>
    %299 = arith.mulf %294, %298 : vector<2x32xf32>
    %c4_62 = arith.constant 4 : index
    %c32_63 = arith.constant 32 : index
    %300 = vector.load %arg12[%c4_62, %c32_63] : memref<16x64xf32, #tpu.memory_space<vmem>>, vector<2x32xf32>
    tpu.vector_store %arg12[%c4_62, %c32_63], %299 {strides = array<i32>} : memref<16x64xf32, #tpu.memory_space<vmem>>, vector<2x32xf32>,
    %301 = vector.extract_strided_slice %178 {offsets = [2, 0], sizes = [2, 128], strides = [1, 1]} : vector<16x128xf32> to vector<2x128xf32>
    %cst_64 = arith.constant dense<0.000000e+00> : vector<2x128xf32>
    %302 = tpu.matmul %299, %177, %cst_64 {dimension_numbers = #tpu.dot_dimension_numbers<[1], [0], [0], [1], [0, 0, 1, 1], [], []>} : vector<2x32xf32>, vector<32x128xf32>, vector<2x128xf32> -> vector<2x128xf32>
    %303 = arith.addf %301, %302 : vector<2x128xf32>
    %304 = vector.extract_strided_slice %303 {offsets = [0, 0], sizes = [2, 96], strides = [1, 1]} : vector<2x128xf32> to vector<2x96xf32>
    %305 = arith.negf %304 : vector<2x96xf32>
    %306 = math.exp %305 : vector<2x96xf32>
    %cst_65 = arith.constant 1.000000e+00 : f32
    %307 = vector.broadcast %cst_65 : f32 to vector<2x96xf32>
    %308 = arith.addf %307, %306 : vector<2x96xf32>
    %309 = arith.divf %307, %308 : vector<2x96xf32>
    %310 = vector.extract_strided_slice %303 {offsets = [0, 96], sizes = [2, 32], strides = [1, 1]} : vector<2x128xf32> to vector<2x32xf32>
    %311 = math.tanh %310 : vector<2x32xf32>
    %312 = vector.extract_strided_slice %309 {offsets = [0, 0], sizes = [2, 32], strides = [1, 1]} : vector<2x96xf32> to vector<2x32xf32>
    %313 = vector.extract_strided_slice %309 {offsets = [0, 32], sizes = [2, 32], strides = [1, 1]} : vector<2x96xf32> to vector<2x32xf32>
    %314 = vector.extract_strided_slice %309 {offsets = [0, 64], sizes = [2, 32], strides = [1, 1]} : vector<2x96xf32> to vector<2x32xf32>
    %315 = arith.mulf %313, %297 : vector<2x32xf32>
    %316 = arith.mulf %312, %311 : vector<2x32xf32>
    %317 = arith.addf %315, %316 : vector<2x32xf32>
    %318 = math.tanh %317 : vector<2x32xf32>
    %319 = arith.mulf %314, %318 : vector<2x32xf32>
    %c2_66 = arith.constant 2 : index
    %c32_67 = arith.constant 32 : index
    %320 = vector.load %arg12[%c2_66, %c32_67] : memref<16x64xf32, #tpu.memory_space<vmem>>, vector<2x32xf32>
    tpu.vector_store %arg12[%c2_66, %c32_67], %319 {strides = array<i32>} : memref<16x64xf32, #tpu.memory_space<vmem>>, vector<2x32xf32>,
    %321 = vector.extract_strided_slice %178 {offsets = [0, 0], sizes = [2, 128], strides = [1, 1]} : vector<16x128xf32> to vector<2x128xf32>
    %cst_68 = arith.constant dense<0.000000e+00> : vector<2x128xf32>
    %322 = tpu.matmul %319, %177, %cst_68 {dimension_numbers = #tpu.dot_dimension_numbers<[1], [0], [0], [1], [0, 0, 1, 1], [], []>} : vector<2x32xf32>, vector<32x128xf32>, vector<2x128xf32> -> vector<2x128xf32>
    %323 = arith.addf %321, %322 : vector<2x128xf32>
    %324 = vector.extract_strided_slice %323 {offsets = [0, 0], sizes = [2, 96], strides = [1, 1]} : vector<2x128xf32> to vector<2x96xf32>
    %325 = arith.negf %324 : vector<2x96xf32>
    %326 = math.exp %325 : vector<2x96xf32>
    %cst_69 = arith.constant 1.000000e+00 : f32
    %327 = vector.broadcast %cst_69 : f32 to vector<2x96xf32>
    %328 = arith.addf %327, %326 : vector<2x96xf32>
    %329 = arith.divf %327, %328 : vector<2x96xf32>
    %330 = vector.extract_strided_slice %323 {offsets = [0, 96], sizes = [2, 32], strides = [1, 1]} : vector<2x128xf32> to vector<2x32xf32>
    %331 = math.tanh %330 : vector<2x32xf32>
    %332 = vector.extract_strided_slice %329 {offsets = [0, 0], sizes = [2, 32], strides = [1, 1]} : vector<2x96xf32> to vector<2x32xf32>
    %333 = vector.extract_strided_slice %329 {offsets = [0, 32], sizes = [2, 32], strides = [1, 1]} : vector<2x96xf32> to vector<2x32xf32>
    %334 = vector.extract_strided_slice %329 {offsets = [0, 64], sizes = [2, 32], strides = [1, 1]} : vector<2x96xf32> to vector<2x32xf32>
    %335 = arith.mulf %333, %317 : vector<2x32xf32>
    %336 = arith.mulf %332, %331 : vector<2x32xf32>
    %337 = arith.addf %335, %336 : vector<2x32xf32>
    %338 = math.tanh %337 : vector<2x32xf32>
    %339 = arith.mulf %334, %338 : vector<2x32xf32>
    %c0_70 = arith.constant 0 : index
    %c32_71 = arith.constant 32 : index
    %340 = vector.load %arg12[%c0_70, %c32_71] : memref<16x64xf32, #tpu.memory_space<vmem>>, vector<2x32xf32>
    tpu.vector_store %arg12[%c0_70, %c32_71], %339 {strides = array<i32>} : memref<16x64xf32, #tpu.memory_space<vmem>>, vector<2x32xf32>,
    %c0_72 = arith.constant 0 : index
    %c0_73 = arith.constant 0 : index
    %341 = vector.load %arg12[%c0_72, %c0_73] : memref<16x64xf32, #tpu.memory_space<vmem>>, vector<16x64xf32>
    %c0_74 = arith.constant 0 : index
    %c0_75 = arith.constant 0 : index
    %342 = vector.load %arg6[%c0_74, %c0_75] : memref<64x128xf32, #tpu.memory_space<vmem>>, vector<64x128xf32>
    %cst_76 = arith.constant dense<0.000000e+00> : vector<16x128xf32>
    %343 = tpu.matmul %341, %342, %cst_76 {dimension_numbers = #tpu.dot_dimension_numbers<[1], [0], [0], [1], [0, 0, 1, 1], [], []>} : vector<16x64xf32>, vector<64x128xf32>, vector<16x128xf32> -> vector<16x128xf32>
    %c0_77 = arith.constant 0 : index
    %c0_78 = arith.constant 0 : index
    %344 = vector.load %arg7[%c0_77, %c0_78] : memref<1x128xf32, #tpu.memory_space<vmem>>, vector<1x128xf32>
    %345 = vector.broadcast %344 : vector<1x128xf32> to vector<16x128xf32>
    %346 = arith.addf %343, %345 : vector<16x128xf32>
    %c0_79 = arith.constant 0 : index
    %c0_80 = arith.constant 0 : index
    %347 = vector.load %arg8[%c0_79, %c0_80] : memref<32x128xf32, #tpu.memory_space<vmem>>, vector<32x128xf32>
    %cst_81 = arith.constant 0.000000e+00 : f32
    %348 = vector.broadcast %cst_81 : f32 to vector<2x32xf32>
    %cst_82 = arith.constant 0.000000e+00 : f32
    %349 = vector.broadcast %cst_82 : f32 to vector<2x32xf32>
    %350 = vector.extract_strided_slice %346 {offsets = [14, 0], sizes = [2, 128], strides = [1, 1]} : vector<16x128xf32> to vector<2x128xf32>
    %cst_83 = arith.constant dense<0.000000e+00> : vector<2x128xf32>
    %351 = tpu.matmul %348, %347, %cst_83 {dimension_numbers = #tpu.dot_dimension_numbers<[1], [0], [0], [1], [0, 0, 1, 1], [], []>} : vector<2x32xf32>, vector<32x128xf32>, vector<2x128xf32> -> vector<2x128xf32>
    %352 = arith.addf %350, %351 : vector<2x128xf32>
    %353 = vector.extract_strided_slice %352 {offsets = [0, 0], sizes = [2, 96], strides = [1, 1]} : vector<2x128xf32> to vector<2x96xf32>
    %354 = arith.negf %353 : vector<2x96xf32>
    %355 = math.exp %354 : vector<2x96xf32>
    %cst_84 = arith.constant 1.000000e+00 : f32
    %356 = vector.broadcast %cst_84 : f32 to vector<2x96xf32>
    %357 = arith.addf %356, %355 : vector<2x96xf32>
    %358 = arith.divf %356, %357 : vector<2x96xf32>
    %359 = vector.extract_strided_slice %352 {offsets = [0, 96], sizes = [2, 32], strides = [1, 1]} : vector<2x128xf32> to vector<2x32xf32>
    %360 = math.tanh %359 : vector<2x32xf32>
    %361 = vector.extract_strided_slice %358 {offsets = [0, 0], sizes = [2, 32], strides = [1, 1]} : vector<2x96xf32> to vector<2x32xf32>
    %362 = vector.extract_strided_slice %358 {offsets = [0, 32], sizes = [2, 32], strides = [1, 1]} : vector<2x96xf32> to vector<2x32xf32>
    %363 = vector.extract_strided_slice %358 {offsets = [0, 64], sizes = [2, 32], strides = [1, 1]} : vector<2x96xf32> to vector<2x32xf32>
    %364 = arith.mulf %362, %349 : vector<2x32xf32>
    %365 = arith.mulf %361, %360 : vector<2x32xf32>
    %366 = arith.addf %364, %365 : vector<2x32xf32>
    %367 = math.tanh %366 : vector<2x32xf32>
    %368 = arith.mulf %363, %367 : vector<2x32xf32>
    %369 = vector.extract_strided_slice %346 {offsets = [12, 0], sizes = [2, 128], strides = [1, 1]} : vector<16x128xf32> to vector<2x128xf32>
    %cst_85 = arith.constant dense<0.000000e+00> : vector<2x128xf32>
    %370 = tpu.matmul %368, %347, %cst_85 {dimension_numbers = #tpu.dot_dimension_numbers<[1], [0], [0], [1], [0, 0, 1, 1], [], []>} : vector<2x32xf32>, vector<32x128xf32>, vector<2x128xf32> -> vector<2x128xf32>
    %371 = arith.addf %369, %370 : vector<2x128xf32>
    %372 = vector.extract_strided_slice %371 {offsets = [0, 0], sizes = [2, 96], strides = [1, 1]} : vector<2x128xf32> to vector<2x96xf32>
    %373 = arith.negf %372 : vector<2x96xf32>
    %374 = math.exp %373 : vector<2x96xf32>
    %cst_86 = arith.constant 1.000000e+00 : f32
    %375 = vector.broadcast %cst_86 : f32 to vector<2x96xf32>
    %376 = arith.addf %375, %374 : vector<2x96xf32>
    %377 = arith.divf %375, %376 : vector<2x96xf32>
    %378 = vector.extract_strided_slice %371 {offsets = [0, 96], sizes = [2, 32], strides = [1, 1]} : vector<2x128xf32> to vector<2x32xf32>
    %379 = math.tanh %378 : vector<2x32xf32>
    %380 = vector.extract_strided_slice %377 {offsets = [0, 0], sizes = [2, 32], strides = [1, 1]} : vector<2x96xf32> to vector<2x32xf32>
    %381 = vector.extract_strided_slice %377 {offsets = [0, 32], sizes = [2, 32], strides = [1, 1]} : vector<2x96xf32> to vector<2x32xf32>
    %382 = vector.extract_strided_slice %377 {offsets = [0, 64], sizes = [2, 32], strides = [1, 1]} : vector<2x96xf32> to vector<2x32xf32>
    %383 = arith.mulf %381, %366 : vector<2x32xf32>
    %384 = arith.mulf %380, %379 : vector<2x32xf32>
    %385 = arith.addf %383, %384 : vector<2x32xf32>
    %386 = math.tanh %385 : vector<2x32xf32>
    %387 = arith.mulf %382, %386 : vector<2x32xf32>
    %388 = vector.extract_strided_slice %346 {offsets = [10, 0], sizes = [2, 128], strides = [1, 1]} : vector<16x128xf32> to vector<2x128xf32>
    %cst_87 = arith.constant dense<0.000000e+00> : vector<2x128xf32>
    %389 = tpu.matmul %387, %347, %cst_87 {dimension_numbers = #tpu.dot_dimension_numbers<[1], [0], [0], [1], [0, 0, 1, 1], [], []>} : vector<2x32xf32>, vector<32x128xf32>, vector<2x128xf32> -> vector<2x128xf32>
    %390 = arith.addf %388, %389 : vector<2x128xf32>
    %391 = vector.extract_strided_slice %390 {offsets = [0, 0], sizes = [2, 96], strides = [1, 1]} : vector<2x128xf32> to vector<2x96xf32>
    %392 = arith.negf %391 : vector<2x96xf32>
    %393 = math.exp %392 : vector<2x96xf32>
    %cst_88 = arith.constant 1.000000e+00 : f32
    %394 = vector.broadcast %cst_88 : f32 to vector<2x96xf32>
    %395 = arith.addf %394, %393 : vector<2x96xf32>
    %396 = arith.divf %394, %395 : vector<2x96xf32>
    %397 = vector.extract_strided_slice %390 {offsets = [0, 96], sizes = [2, 32], strides = [1, 1]} : vector<2x128xf32> to vector<2x32xf32>
    %398 = math.tanh %397 : vector<2x32xf32>
    %399 = vector.extract_strided_slice %396 {offsets = [0, 0], sizes = [2, 32], strides = [1, 1]} : vector<2x96xf32> to vector<2x32xf32>
    %400 = vector.extract_strided_slice %396 {offsets = [0, 32], sizes = [2, 32], strides = [1, 1]} : vector<2x96xf32> to vector<2x32xf32>
    %401 = vector.extract_strided_slice %396 {offsets = [0, 64], sizes = [2, 32], strides = [1, 1]} : vector<2x96xf32> to vector<2x32xf32>
    %402 = arith.mulf %400, %385 : vector<2x32xf32>
    %403 = arith.mulf %399, %398 : vector<2x32xf32>
    %404 = arith.addf %402, %403 : vector<2x32xf32>
    %405 = math.tanh %404 : vector<2x32xf32>
    %406 = arith.mulf %401, %405 : vector<2x32xf32>
    %407 = vector.extract_strided_slice %346 {offsets = [8, 0], sizes = [2, 128], strides = [1, 1]} : vector<16x128xf32> to vector<2x128xf32>
    %cst_89 = arith.constant dense<0.000000e+00> : vector<2x128xf32>
    %408 = tpu.matmul %406, %347, %cst_89 {dimension_numbers = #tpu.dot_dimension_numbers<[1], [0], [0], [1], [0, 0, 1, 1], [], []>} : vector<2x32xf32>, vector<32x128xf32>, vector<2x128xf32> -> vector<2x128xf32>
    %409 = arith.addf %407, %408 : vector<2x128xf32>
    %410 = vector.extract_strided_slice %409 {offsets = [0, 0], sizes = [2, 96], strides = [1, 1]} : vector<2x128xf32> to vector<2x96xf32>
    %411 = arith.negf %410 : vector<2x96xf32>
    %412 = math.exp %411 : vector<2x96xf32>
    %cst_90 = arith.constant 1.000000e+00 : f32
    %413 = vector.broadcast %cst_90 : f32 to vector<2x96xf32>
    %414 = arith.addf %413, %412 : vector<2x96xf32>
    %415 = arith.divf %413, %414 : vector<2x96xf32>
    %416 = vector.extract_strided_slice %409 {offsets = [0, 96], sizes = [2, 32], strides = [1, 1]} : vector<2x128xf32> to vector<2x32xf32>
    %417 = math.tanh %416 : vector<2x32xf32>
    %418 = vector.extract_strided_slice %415 {offsets = [0, 0], sizes = [2, 32], strides = [1, 1]} : vector<2x96xf32> to vector<2x32xf32>
    %419 = vector.extract_strided_slice %415 {offsets = [0, 32], sizes = [2, 32], strides = [1, 1]} : vector<2x96xf32> to vector<2x32xf32>
    %420 = vector.extract_strided_slice %415 {offsets = [0, 64], sizes = [2, 32], strides = [1, 1]} : vector<2x96xf32> to vector<2x32xf32>
    %421 = arith.mulf %419, %404 : vector<2x32xf32>
    %422 = arith.mulf %418, %417 : vector<2x32xf32>
    %423 = arith.addf %421, %422 : vector<2x32xf32>
    %424 = math.tanh %423 : vector<2x32xf32>
    %425 = arith.mulf %420, %424 : vector<2x32xf32>
    %426 = vector.extract_strided_slice %346 {offsets = [6, 0], sizes = [2, 128], strides = [1, 1]} : vector<16x128xf32> to vector<2x128xf32>
    %cst_91 = arith.constant dense<0.000000e+00> : vector<2x128xf32>
    %427 = tpu.matmul %425, %347, %cst_91 {dimension_numbers = #tpu.dot_dimension_numbers<[1], [0], [0], [1], [0, 0, 1, 1], [], []>} : vector<2x32xf32>, vector<32x128xf32>, vector<2x128xf32> -> vector<2x128xf32>
    %428 = arith.addf %426, %427 : vector<2x128xf32>
    %429 = vector.extract_strided_slice %428 {offsets = [0, 0], sizes = [2, 96], strides = [1, 1]} : vector<2x128xf32> to vector<2x96xf32>
    %430 = arith.negf %429 : vector<2x96xf32>
    %431 = math.exp %430 : vector<2x96xf32>
    %cst_92 = arith.constant 1.000000e+00 : f32
    %432 = vector.broadcast %cst_92 : f32 to vector<2x96xf32>
    %433 = arith.addf %432, %431 : vector<2x96xf32>
    %434 = arith.divf %432, %433 : vector<2x96xf32>
    %435 = vector.extract_strided_slice %428 {offsets = [0, 96], sizes = [2, 32], strides = [1, 1]} : vector<2x128xf32> to vector<2x32xf32>
    %436 = math.tanh %435 : vector<2x32xf32>
    %437 = vector.extract_strided_slice %434 {offsets = [0, 0], sizes = [2, 32], strides = [1, 1]} : vector<2x96xf32> to vector<2x32xf32>
    %438 = vector.extract_strided_slice %434 {offsets = [0, 32], sizes = [2, 32], strides = [1, 1]} : vector<2x96xf32> to vector<2x32xf32>
    %439 = vector.extract_strided_slice %434 {offsets = [0, 64], sizes = [2, 32], strides = [1, 1]} : vector<2x96xf32> to vector<2x32xf32>
    %440 = arith.mulf %438, %423 : vector<2x32xf32>
    %441 = arith.mulf %437, %436 : vector<2x32xf32>
    %442 = arith.addf %440, %441 : vector<2x32xf32>
    %443 = math.tanh %442 : vector<2x32xf32>
    %444 = arith.mulf %439, %443 : vector<2x32xf32>
    %445 = vector.extract_strided_slice %346 {offsets = [4, 0], sizes = [2, 128], strides = [1, 1]} : vector<16x128xf32> to vector<2x128xf32>
    %cst_93 = arith.constant dense<0.000000e+00> : vector<2x128xf32>
    %446 = tpu.matmul %444, %347, %cst_93 {dimension_numbers = #tpu.dot_dimension_numbers<[1], [0], [0], [1], [0, 0, 1, 1], [], []>} : vector<2x32xf32>, vector<32x128xf32>, vector<2x128xf32> -> vector<2x128xf32>
    %447 = arith.addf %445, %446 : vector<2x128xf32>
    %448 = vector.extract_strided_slice %447 {offsets = [0, 0], sizes = [2, 96], strides = [1, 1]} : vector<2x128xf32> to vector<2x96xf32>
    %449 = arith.negf %448 : vector<2x96xf32>
    %450 = math.exp %449 : vector<2x96xf32>
    %cst_94 = arith.constant 1.000000e+00 : f32
    %451 = vector.broadcast %cst_94 : f32 to vector<2x96xf32>
    %452 = arith.addf %451, %450 : vector<2x96xf32>
    %453 = arith.divf %451, %452 : vector<2x96xf32>
    %454 = vector.extract_strided_slice %447 {offsets = [0, 96], sizes = [2, 32], strides = [1, 1]} : vector<2x128xf32> to vector<2x32xf32>
    %455 = math.tanh %454 : vector<2x32xf32>
    %456 = vector.extract_strided_slice %453 {offsets = [0, 0], sizes = [2, 32], strides = [1, 1]} : vector<2x96xf32> to vector<2x32xf32>
    %457 = vector.extract_strided_slice %453 {offsets = [0, 32], sizes = [2, 32], strides = [1, 1]} : vector<2x96xf32> to vector<2x32xf32>
    %458 = vector.extract_strided_slice %453 {offsets = [0, 64], sizes = [2, 32], strides = [1, 1]} : vector<2x96xf32> to vector<2x32xf32>
    %459 = arith.mulf %457, %442 : vector<2x32xf32>
    %460 = arith.mulf %456, %455 : vector<2x32xf32>
    %461 = arith.addf %459, %460 : vector<2x32xf32>
    %462 = math.tanh %461 : vector<2x32xf32>
    %463 = arith.mulf %458, %462 : vector<2x32xf32>
    %464 = vector.extract_strided_slice %346 {offsets = [2, 0], sizes = [2, 128], strides = [1, 1]} : vector<16x128xf32> to vector<2x128xf32>
    %cst_95 = arith.constant dense<0.000000e+00> : vector<2x128xf32>
    %465 = tpu.matmul %463, %347, %cst_95 {dimension_numbers = #tpu.dot_dimension_numbers<[1], [0], [0], [1], [0, 0, 1, 1], [], []>} : vector<2x32xf32>, vector<32x128xf32>, vector<2x128xf32> -> vector<2x128xf32>
    %466 = arith.addf %464, %465 : vector<2x128xf32>
    %467 = vector.extract_strided_slice %466 {offsets = [0, 0], sizes = [2, 96], strides = [1, 1]} : vector<2x128xf32> to vector<2x96xf32>
    %468 = arith.negf %467 : vector<2x96xf32>
    %469 = math.exp %468 : vector<2x96xf32>
    %cst_96 = arith.constant 1.000000e+00 : f32
    %470 = vector.broadcast %cst_96 : f32 to vector<2x96xf32>
    %471 = arith.addf %470, %469 : vector<2x96xf32>
    %472 = arith.divf %470, %471 : vector<2x96xf32>
    %473 = vector.extract_strided_slice %466 {offsets = [0, 96], sizes = [2, 32], strides = [1, 1]} : vector<2x128xf32> to vector<2x32xf32>
    %474 = math.tanh %473 : vector<2x32xf32>
    %475 = vector.extract_strided_slice %472 {offsets = [0, 0], sizes = [2, 32], strides = [1, 1]} : vector<2x96xf32> to vector<2x32xf32>
    %476 = vector.extract_strided_slice %472 {offsets = [0, 32], sizes = [2, 32], strides = [1, 1]} : vector<2x96xf32> to vector<2x32xf32>
    %477 = vector.extract_strided_slice %472 {offsets = [0, 64], sizes = [2, 32], strides = [1, 1]} : vector<2x96xf32> to vector<2x32xf32>
    %478 = arith.mulf %476, %461 : vector<2x32xf32>
    %479 = arith.mulf %475, %474 : vector<2x32xf32>
    %480 = arith.addf %478, %479 : vector<2x32xf32>
    %481 = math.tanh %480 : vector<2x32xf32>
    %482 = arith.mulf %477, %481 : vector<2x32xf32>
    %483 = vector.extract_strided_slice %346 {offsets = [0, 0], sizes = [2, 128], strides = [1, 1]} : vector<16x128xf32> to vector<2x128xf32>
    %cst_97 = arith.constant dense<0.000000e+00> : vector<2x128xf32>
    %484 = tpu.matmul %482, %347, %cst_97 {dimension_numbers = #tpu.dot_dimension_numbers<[1], [0], [0], [1], [0, 0, 1, 1], [], []>} : vector<2x32xf32>, vector<32x128xf32>, vector<2x128xf32> -> vector<2x128xf32>
    %485 = arith.addf %483, %484 : vector<2x128xf32>
    %486 = vector.extract_strided_slice %485 {offsets = [0, 0], sizes = [2, 96], strides = [1, 1]} : vector<2x128xf32> to vector<2x96xf32>
    %487 = arith.negf %486 : vector<2x96xf32>
    %488 = math.exp %487 : vector<2x96xf32>
    %cst_98 = arith.constant 1.000000e+00 : f32
    %489 = vector.broadcast %cst_98 : f32 to vector<2x96xf32>
    %490 = arith.addf %489, %488 : vector<2x96xf32>
    %491 = arith.divf %489, %490 : vector<2x96xf32>
    %492 = vector.extract_strided_slice %485 {offsets = [0, 96], sizes = [2, 32], strides = [1, 1]} : vector<2x128xf32> to vector<2x32xf32>
    %493 = math.tanh %492 : vector<2x32xf32>
    %494 = vector.extract_strided_slice %491 {offsets = [0, 0], sizes = [2, 32], strides = [1, 1]} : vector<2x96xf32> to vector<2x32xf32>
    %495 = vector.extract_strided_slice %491 {offsets = [0, 32], sizes = [2, 32], strides = [1, 1]} : vector<2x96xf32> to vector<2x32xf32>
    %496 = vector.extract_strided_slice %491 {offsets = [0, 64], sizes = [2, 32], strides = [1, 1]} : vector<2x96xf32> to vector<2x32xf32>
    %497 = arith.mulf %495, %480 : vector<2x32xf32>
    %498 = arith.mulf %494, %493 : vector<2x32xf32>
    %499 = arith.addf %497, %498 : vector<2x32xf32>
    %500 = math.tanh %499 : vector<2x32xf32>
    %501 = arith.mulf %496, %500 : vector<2x32xf32>
    %c0_99 = arith.constant 0 : index
    %c0_100 = arith.constant 0 : index
    %502 = vector.load %arg9[%c0_99, %c0_100] : memref<32x1xf32, #tpu.memory_space<vmem>>, vector<32x1xf32>
    %cst_101 = arith.constant dense<0.000000e+00> : vector<2x1xf32>
    %503 = tpu.matmul %501, %502, %cst_101 {dimension_numbers = #tpu.dot_dimension_numbers<[1], [0], [0], [1], [0, 0, 1, 1], [], []>} : vector<2x32xf32>, vector<32x1xf32>, vector<2x1xf32> -> vector<2x1xf32>
    %c0_102 = arith.constant 0 : index
    %c0_103 = arith.constant 0 : index
    %504 = vector.load %arg10[%c0_102, %c0_103] : memref<1x1xf32, #tpu.memory_space<vmem>>, vector<1x1xf32>
    %505 = vector.broadcast %504 : vector<1x1xf32> to vector<2x1xf32>
    %506 = arith.addf %503, %505 : vector<2x1xf32>
    %507 = arith.negf %506 : vector<2x1xf32>
    %508 = math.exp %507 : vector<2x1xf32>
    %cst_104 = arith.constant 1.000000e+00 : f32
    %509 = vector.broadcast %cst_104 : f32 to vector<2x1xf32>
    %510 = arith.addf %509, %508 : vector<2x1xf32>
    %511 = arith.divf %509, %510 : vector<2x1xf32>
    %c0_105 = arith.constant 0 : index
    %c0_106 = arith.constant 0 : index
    %512 = vector.load %arg11[%c0_105, %c0_106] : memref<2x1xf32, #tpu.memory_space<vmem>>, vector<2x1xf32>
    tpu.vector_store %arg11[%c0_105, %c0_106], %511 {strides = array<i32>} : memref<2x1xf32, #tpu.memory_space<vmem>>, vector<2x1xf32>,
    return
  }
}

</mosaic_0001>

<llo_original>
// kernel: tpu_custom_call.1
$region0: #{tpu_custom_call.1}
  #allocation0 [shape = 'u32[]', space=smem, size = 0x4, offset = 0x4, fixed_abs, tag = 'smem constant byte address 0x4 - core index']
  #allocation1 [shape = 'u32[144,128]{1,0:T(1,128)}', space=vmem, size = 0x12000, scoped, tag = 'internal scratch']
  #allocation2 [shape = 'f32[16,64]{1,0:T(8,128)}', space=vmem, size = 0x2000, scoped, tag = 'scratch operand']
  #allocation3 [shape = 'f32[1,1]{1,0:T(1,128)S(1)}', space=vmem, size = 0x200, scoped, tag = 'scoped memory for tpu_custom_call.1']
  %s0 = inlined_call_operand.vmem [shape: s32[16,1], index: 0, kind: input, shape index: {}]
  %s1 = inlined_call_operand.vmem [shape: f32[20,16], index: 1, kind: input, shape index: {}]
  %s2 = inlined_call_operand.vmem [shape: f32[16,256], index: 2, kind: input, shape index: {}]
  %s3 = inlined_call_operand.vmem [shape: f32[1,256], index: 3, kind: input, shape index: {}]
  %s4 = inlined_call_operand.hbm [shape: f32[32,128], index: 4, kind: input, shape index: {}]
  %s5 = inlined_call_operand.hbm [shape: f32[32,128], index: 5, kind: input, shape index: {}]
  %s6 = inlined_call_operand.vmem [shape: f32[64,128], index: 6, kind: input, shape index: {}]
  %s7 = inlined_call_operand.vmem [shape: f32[1,128], index: 7, kind: input, shape index: {}]
  %s8 = inlined_call_operand.hbm [shape: f32[32,128], index: 8, kind: input, shape index: {}]
  %s9 = inlined_call_operand.vmem [shape: f32[32,1], index: 9, kind: input, shape index: {}]
  %s10 = inlined_call_operand.<no memory space> [shape: f32[1,1], index: 10, kind: input, shape index: {}]
  %s11 = inlined_call_operand.vmem [shape: f32[2,1], index: 11, kind: output, shape index: {}]
  %s12 = sld [smem:[#allocation0]]
  $region66: #{tpu_custom_call.1} parent=0
    _
  %s14 = ssub.s32 1, %s12
  %s15 = scalar_select 0, %s14, %s12
  %v16 = vstv %s10
  %17 = vst [vmem:[#allocation3] sm:$0x1] %v16
  $region1: #{tpu_custom_call.1} parent=0
    #allocation4 [shape = 'u8[16384]{0}', space=vmem, size = 0x4000, scoped, tag = 'input window, operand 4, single buffered']
    #allocation5 [shape = 's32[1]{0}', space=sflag, size = 0x4, scoped, tag = 'scoped memory for tpu_custom_call.1']
    #allocation6 [shape = 'u8[16384]{0}', space=vmem, size = 0x4000, scoped, tag = 'input window, operand 5, single buffered']
    #allocation7 [shape = 's32[1]{0}', space=sflag, size = 0x4, scoped, tag = 'scoped memory for tpu_custom_call.1']
    #allocation8 [shape = 'u8[16384]{0}', space=vmem, size = 0x4000, scoped, tag = 'input window, operand 8, single buffered']
    %18 = vsyncpa [#allocation5], 0
    %19 = vsyncpa [#allocation7], 0
    // Predicated region
    $region2: #{tpu_custom_call.1} parent=1 // pred_check
      _
    $region3: #{tpu_custom_call.1} parent=1 // pred_check_branch
      %21 = sbr.rel (0) target = $region5
    $region4: #{tpu_custom_call.1} parent=1 // pred_region
      _
    $region5: #{tpu_custom_call.1} parent=1 // pred_fallthru
      _
    // Predicated region
    $region6: #{tpu_custom_call.1} parent=1 // pred_check
      _
    $region7: #{tpu_custom_call.1} parent=1 // pred_check_branch
      %23 = sbr.rel (0) target = $region9
    $region8: #{tpu_custom_call.1} parent=1 // pred_region
      _
    $region9: #{tpu_custom_call.1} parent=1 // pred_fallthru
      _
    // Predicated region
    $region10: #{tpu_custom_call.1} parent=1 // pred_check
      _
    $region11: #{tpu_custom_call.1} parent=1 // pred_check_branch
      %25 = sbr.rel (0) target = $region13
    $region12: #{tpu_custom_call.1} parent=1 // pred_region
      _
    $region13: #{tpu_custom_call.1} parent=1 // pred_fallthru
      _
    // Predicated region
    $region14: #{tpu_custom_call.1} parent=1 // pred_check
      _
    $region15: #{tpu_custom_call.1} parent=1 // pred_check_branch
      %27 = sbr.rel (0) target = $region17
    $region16: #{tpu_custom_call.1} parent=1 // pred_region
      _
    $region17: #{tpu_custom_call.1} parent=1 // pred_fallthru
      _
    // Predicated region
    $region18: #{tpu_custom_call.1} parent=1 // pred_check
      _
    $region19: #{tpu_custom_call.1} parent=1 // pred_check_branch
      %29 = sbr.rel (0) target = $region21
    $region20: #{tpu_custom_call.1} parent=1 // pred_region
      %s31 = ssub.s32 512, 512
      %32 = vsyncadd [#allocation5], %s31
      %s33 = sshll.u32 [#allocation4], 4
      %s34 = int_to_ptr.vmem [resolvable:$true] %s33
      %39 = dma.hbm_to_vmem [thread:$0]  %s4, 512, %s34, [#allocation5], 128, 128, 8
    $region21: #{tpu_custom_call.1} parent=1 // pred_fallthru
      _
    // Predicated region
    $region22: #{tpu_custom_call.1} parent=1 // pred_check
      _
    $region23: #{tpu_custom_call.1} parent=1 // pred_check_branch
      %41 = sbr.rel (0) target = $region25
    $region24: #{tpu_custom_call.1} parent=1 // pred_region
      %s43 = ssub.s32 512, 512
      %44 = vsyncadd [#allocation7], %s43
      %s45 = sshll.u32 [#allocation6], 4
      %s46 = int_to_ptr.vmem [resolvable:$true] %s45
      %51 = dma.hbm_to_vmem [thread:$0]  %s5, 512, %s46, [#allocation7], 128, 128, 8
    $region25: #{tpu_custom_call.1} parent=1 // pred_fallthru
      _
    // Predicated region
    $region26: #{tpu_custom_call.1} parent=1 // pred_check
      _
    $region27: #{tpu_custom_call.1} parent=1 // pred_check_branch
      %53 = sbr.rel (0) target = $region29
    $region28: #{tpu_custom_call.1} parent=1 // pred_region
      _
    $region29: #{tpu_custom_call.1} parent=1 // pred_fallthru
      _
    // Predicated region
    $region30: #{tpu_custom_call.1} parent=1 // pred_check
      _
    $region31: #{tpu_custom_call.1} parent=1 // pred_check_branch
      %55 = sbr.rel (0) target = $region33
    $region32: #{tpu_custom_call.1} parent=1 // pred_region
      _
    $region33: #{tpu_custom_call.1} parent=1 // pred_fallthru
      _
    // Predicated region
    $region34: #{tpu_custom_call.1} parent=1 // pred_check
      _
    $region35: #{tpu_custom_call.1} parent=1 // pred_check_branch
      %57 = sbr.rel (0) target = $region37
    $region36: #{tpu_custom_call.1} parent=1 // pred_region
      %s59 = ssub.s32 512, 512
      %60 = vsyncadd [#allocation7], %s59
      %s61 = sshll.u32 [#allocation8], 4
      %s62 = int_to_ptr.vmem [resolvable:$true] %s61
      %67 = dma.hbm_to_vmem [thread:$0]  %s8, 512, %s62, [#allocation7], 128, 128, 8
    $region37: #{tpu_custom_call.1} parent=1 // pred_fallthru
      _
    // Predicated region
    $region38: #{tpu_custom_call.1} parent=1 // pred_check
      _
    $region39: #{tpu_custom_call.1} parent=1 // pred_check_branch
      %69 = sbr.rel (0) target = $region41
    $region40: #{tpu_custom_call.1} parent=1 // pred_region
      _
    $region41: #{tpu_custom_call.1} parent=1 // pred_fallthru
      _
    // Predicated region
    $region42: #{tpu_custom_call.1} parent=1 // pred_check
      _
    $region43: #{tpu_custom_call.1} parent=1 // pred_check_branch
      %71 = sbr.rel (0) target = $region45
    $region44: #{tpu_custom_call.1} parent=1 // pred_region
      _
    $region45: #{tpu_custom_call.1} parent=1 // pred_fallthru
      _
    // Predicated region
    $region46: #{tpu_custom_call.1} parent=1 // pred_check
      _
    $region47: #{tpu_custom_call.1} parent=1 // pred_check_branch
      %73 = sbr.rel (0) target = $region49
    $region48: #{tpu_custom_call.1} parent=1 // pred_region
      %74 = dma.done [#allocation5], 512
    $region49: #{tpu_custom_call.1} parent=1 // pred_fallthru
      _
    // Predicated region
    $region50: #{tpu_custom_call.1} parent=1 // pred_check
      _
    $region51: #{tpu_custom_call.1} parent=1 // pred_check_branch
      %76 = sbr.rel (0) target = $region53
    $region52: #{tpu_custom_call.1} parent=1 // pred_region
      %77 = dma.done [#allocation7], 512
    $region53: #{tpu_custom_call.1} parent=1 // pred_fallthru
      _
    // Predicated region
    $region54: #{tpu_custom_call.1} parent=1 // pred_check
      _
    $region55: #{tpu_custom_call.1} parent=1 // pred_check_branch
      %79 = sbr.rel (0) target = $region57
    $region56: #{tpu_custom_call.1} parent=1 // pred_region
      %80 = dma.done [#allocation7], 512
    $region57: #{tpu_custom_call.1} parent=1 // pred_fallthru
      _
    %v81 = vld [vmem:[%s0] sm:$0xff]
    %v82 = vld [vmem:[%s0 + $0x8] sm:$0xff]
    %v83 = vlaneseq
    %v84 = vand.u32 %v83, 127
    %85 = vset.pattern.permute.xlu0 0
    %86 = vperm.xlu0 %85, %v81
    %v87 = vpop.permute.xlu0 %86
    %88 = vset.pattern.permute.xlu0 0
    %89 = vperm.xlu0 %88, %v82
    %v90 = vpop.permute.xlu0 %89
    %vm91 = vcmp.eq.s32.totalorder %v87, %v84
    %vm92 = vcmp.eq.s32.totalorder %v90, %v84
    %v93 = vsel %vm91, 1, 0
    %v94 = vsel %vm92, 1, 0
    %v95 = vcvt.s32.f32 %v93
    %v96 = vcvt.s32.f32 %v94
    %v97 = vld [vmem:[%s1] sm:$0xff]
    %v98 = vld [vmem:[%s1 + $0x8] sm:$0xff]
    %v99 = vld [vmem:[%s1 + $0x10] sm:$0xf]
    %vm100 = vcmask 162816
    %v102 = vsel %vm100, %v95, 0
    %v105 = vsel %vm100, %v96, 0
    %vm107 = vcmask 1043456
    %v109 = vsel %vm107, %v99, 0
    %111 = vmatprep.subr.mxu0 0.0
    %112 = vmatpush1.msra.mxu0 0.0
    %113 = vmatprep.subr.mxu0 0.0
    %114 = vmatpush1.msra.mxu0 0.0
    %115 = vmatprep.subr.mxu0 0.0
    %116 = vmatpush1.msra.mxu0 0.0
    %117 = vmatprep.subr.mxu0 0.0
    %118 = vmatpush1.msra.mxu0 0.0
    %119 = vmatprep.subr.mxu0 0.0
    %120 = vmatpush1.msra.mxu0 0.0
    %121 = vmatprep.subr.mxu0 0.0
    %122 = vmatpush1.msra.mxu0 0.0
    %123 = vmatprep.subr.mxu0 0.0
    %124 = vmatpush1.msra.mxu0 0.0
    %125 = vmatprep.subr.mxu0 0.0
    %126 = vmatpush1.msra.mxu0 0.0
    %127 = vmatprep.subr.mxu0 0.0
    %128 = vmatpush1.msra.mxu0 0.0
    %129 = vmatprep.subr.mxu0 0.0
    %130 = vmatpush1.msra.mxu0 0.0
    %131 = vmatprep.subr.mxu0 0.0
    %132 = vmatpush1.msra.mxu0 0.0
    %133 = vmatprep.subr.mxu0 0.0
    %134 = vmatpush1.msra.mxu0 0.0
    %135 = vmatprep.subr.mxu0 0.0
    %136 = vmatpush1.msra.mxu0 0.0
    %137 = vmatprep.subr.mxu0 0.0
    %138 = vmatpush1.msra.mxu0 %v109
    %139 = vmatprep.subr.mxu0 0.0
    %140 = vmatpush1.msra.mxu0 %v98
    %141 = vmatprep.subr.mxu0 0.0
    %142 = vmatpush1.msra.mxu0 %v97
    %143 = vmatprep.subr.mxu0 0.0
    %144 = vmatpush2.msra.mxu0 0.0
    %145 = vmatprep.subr.mxu0 0.0
    %146 = vmatpush2.msra.mxu0 0.0
    %147 = vmatprep.subr.mxu0 0.0
    %148 = vmatpush2.msra.mxu0 0.0
    %149 = vmatprep.subr.mxu0 0.0
    %150 = vmatpush2.msra.mxu0 0.0
    %151 = vmatprep.subr.mxu0 0.0
    %152 = vmatpush2.msra.mxu0 0.0
    %153 = vmatprep.subr.mxu0 0.0
    %154 = vmatpush2.msra.mxu0 0.0
    %155 = vmatprep.subr.mxu0 0.0
    %156 = vmatpush2.msra.mxu0 0.0
    %157 = vmatprep.subr.mxu0 0.0
    %158 = vmatpush2.msra.mxu0 0.0
    %159 = vmatprep.subr.mxu0 0.0
    %160 = vmatpush2.msra.mxu0 0.0
    %161 = vmatprep.subr.mxu0 0.0
    %162 = vmatpush2.msra.mxu0 0.0
    %163 = vmatprep.subr.mxu0 0.0
    %164 = vmatpush2.msra.mxu0 0.0
    %165 = vmatprep.subr.mxu0 0.0
    %166 = vmatpush2.msra.mxu0 0.0
    %167 = vmatprep.subr.mxu0 0.0
    %168 = vmatpush2.msra.mxu0 0.0
    %169 = vmatprep.subr.mxu0 0.0
    %170 = vmatpush2.msra.mxu0 0.0
    %171 = vmatprep.subr.mxu0 0.0
    %172 = vmatpush2.msra.mxu0 0.0
    %173 = vmatprep.subr.mxu0 0.0
    %174 = vmatpush2.msra.mxu0 0.0
    %175 = vmatprep.mubr.f32.mxu0 0.0
    %176 = vmatmul.mubr.f32.gmra.mxu0 %v102
    %v177 = vpop.f32.mrf.mxu0
    %v178 = vadd.f32 0.0, %v177
    %v179 = vpop.f32.mrf.mxu0
    %180 = vmatprep.mubr.f32.mxu0 0.0
    %181 = vmatmul.mubr.f32.gmra.mxu0 %v105
    %v182 = vpop.f32.mrf.mxu0
    %v183 = vadd.f32 0.0, %v182
    %v184 = vpop.f32.mrf.mxu0
    %185 = vdwg.mxu0
    %v186 = vld [vmem:[%s2] sm:$0xff]
    %v187 = vld [vmem:[%s2 + $0x8] sm:$0xff]
    %v188 = vld [vmem:[%s2 + $0x10] sm:$0xff]
    %v189 = vld [vmem:[%s2 + $0x18] sm:$0xff]
    %v190 = vld [vmem:[%s3] sm:$0x3]
    %v192 = vlaneseq
    %v193 = vshrl.u32 %v192, 7
    %v194 = vsub.s32 0, %v193
    %v195 = vrot.slane %v190, %v194
    %v196 = vlaneseq
    %v197 = vshrl.u32 %v196, 7
    %v198 = vsub.s32 1, %v197
    %v199 = vrot.slane %v190, %v198
    %vm202 = vcmask 130048
    %v204 = vsel %vm202, %v178, 0
    %v207 = vsel %vm202, %v183, 0
    %209 = vmatprep.subr.mxu0 0.0
    %210 = vmatpush1.msra.mxu0 0.0
    %211 = vmatprep.subr.mxu0 0.0
    %212 = vmatpush1.msra.mxu0 0.0
    %213 = vmatprep.subr.mxu0 0.0
    %214 = vmatpush1.msra.mxu0 0.0
    %215 = vmatprep.subr.mxu0 0.0
    %216 = vmatpush1.msra.mxu0 0.0
    %217 = vmatprep.subr.mxu0 0.0
    %218 = vmatpush1.msra.mxu0 0.0
    %219 = vmatprep.subr.mxu0 0.0
    %220 = vmatpush1.msra.mxu0 0.0
    %221 = vmatprep.subr.mxu0 0.0
    %222 = vmatpush1.msra.mxu0 0.0
    %223 = vmatprep.subr.mxu0 0.0
    %224 = vmatpush1.msra.mxu0 0.0
    %225 = vmatprep.subr.mxu0 0.0
    %226 = vmatpush1.msra.mxu0 0.0
    %227 = vmatprep.subr.mxu0 0.0
    %228 = vmatpush1.msra.mxu0 0.0
    %229 = vmatprep.subr.mxu0 0.0
    %230 = vmatpush1.msra.mxu0 0.0
    %231 = vmatprep.subr.mxu0 0.0
    %232 = vmatpush1.msra.mxu0 0.0
    %233 = vmatprep.subr.mxu0 0.0
    %234 = vmatpush1.msra.mxu0 0.0
    %235 = vmatprep.subr.mxu0 0.0
    %236 = vmatpush1.msra.mxu0 0.0
    %237 = vmatprep.subr.mxu0 %v189
    %238 = vmatpush1.msra.mxu0 %v188
    %239 = vmatprep.subr.mxu0 %v187
    %240 = vmatpush1.msra.mxu0 %v186
    %241 = vmatprep.subr.mxu0 0.0
    %242 = vmatpush2.msra.mxu0 0.0
    %243 = vmatprep.subr.mxu0 0.0
    %244 = vmatpush2.msra.mxu0 0.0
    %245 = vmatprep.subr.mxu0 0.0
    %246 = vmatpush2.msra.mxu0 0.0
    %247 = vmatprep.subr.mxu0 0.0
    %248 = vmatpush2.msra.mxu0 0.0
    %249 = vmatprep.subr.mxu0 0.0
    %250 = vmatpush2.msra.mxu0 0.0
    %251 = vmatprep.subr.mxu0 0.0
    %252 = vmatpush2.msra.mxu0 0.0
    %253 = vmatprep.subr.mxu0 0.0
    %254 = vmatpush2.msra.mxu0 0.0
    %255 = vmatprep.subr.mxu0 0.0
    %256 = vmatpush2.msra.mxu0 0.0
    %257 = vmatprep.subr.mxu0 0.0
    %258 = vmatpush2.msra.mxu0 0.0
    %259 = vmatprep.subr.mxu0 0.0
    %260 = vmatpush2.msra.mxu0 0.0
    %261 = vmatprep.subr.mxu0 0.0
    %262 = vmatpush2.msra.mxu0 0.0
    %263 = vmatprep.subr.mxu0 0.0
    %264 = vmatpush2.msra.mxu0 0.0
    %265 = vmatprep.subr.mxu0 0.0
    %266 = vmatpush2.msra.mxu0 0.0
    %267 = vmatprep.subr.mxu0 0.0
    %268 = vmatpush2.msra.mxu0 0.0
    %269 = vmatprep.subr.mxu0 0.0
    %270 = vmatpush2.msra.mxu0 0.0
    %271 = vmatprep.subr.mxu0 0.0
    %272 = vmatpush2.msra.mxu0 0.0
    %273 = vmatprep.mubr.f32.mxu0 0.0
    %274 = vmatmul.mubr.f32.gmra.mxu0 %v204
    %v275 = vpop.f32.mrf.mxu0
    %v276 = vadd.f32 %v195, %v275
    %v277 = vpop.f32.mrf.mxu0
    %v278 = vadd.f32 %v199, %v277
    %279 = vmatprep.mubr.f32.mxu0 0.0
    %280 = vmatmul.mubr.f32.gmra.mxu0 %v207
    %v281 = vpop.f32.mrf.mxu0
    %v282 = vadd.f32 %v195, %v281
    %v283 = vpop.f32.mrf.mxu0
    %v284 = vadd.f32 %v199, %v283
    %285 = vdwg.mxu0
    %v286 = vld [vmem:[#allocation4] sm:$0xff]
    %v287 = vld [vmem:[#allocation4 + $0x8] sm:$0xff]
    %v288 = vld [vmem:[#allocation4 + $0x10] sm:$0xff]
    %v289 = vld [vmem:[#allocation4 + $0x18] sm:$0xff]
    %vm290 = vcmask 261120
    %v292 = vsel %vm290, 0.0, 0
    %294 = vmatprep.subr.mxu0 0.0
    %295 = vmatpush1.msra.mxu0 0.0
    %296 = vmatprep.subr.mxu0 0.0
    %297 = vmatpush1.msra.mxu0 0.0
    %298 = vmatprep.subr.mxu0 0.0
    %299 = vmatpush1.msra.mxu0 0.0
    %300 = vmatprep.subr.mxu0 0.0
    %301 = vmatpush1.msra.mxu0 0.0
    %302 = vmatprep.subr.mxu0 0.0
    %303 = vmatpush1.msra.mxu0 0.0
    %304 = vmatprep.subr.mxu0 0.0
    %305 = vmatpush1.msra.mxu0 0.0
    %306 = vmatprep.subr.mxu0 0.0
    %307 = vmatpush1.msra.mxu0 0.0
    %308 = vmatprep.subr.mxu0 0.0
    %309 = vmatpush1.msra.mxu0 0.0
    %310 = vmatprep.subr.mxu0 0.0
    %311 = vmatpush1.msra.mxu0 0.0
    %312 = vmatprep.subr.mxu0 0.0
    %313 = vmatpush1.msra.mxu0 0.0
    %314 = vmatprep.subr.mxu0 0.0
    %315 = vmatpush1.msra.mxu0 0.0
    %316 = vmatprep.subr.mxu0 0.0
    %317 = vmatpush1.msra.mxu0 0.0
    %318 = vmatprep.subr.mxu0 0.0
    %319 = vmatpush1.msra.mxu0 %v289
    %320 = vmatprep.subr.mxu0 0.0
    %321 = vmatpush1.msra.mxu0 %v288
    %322 = vmatprep.subr.mxu0 0.0
    %323 = vmatpush1.msra.mxu0 %v287
    %324 = vmatprep.subr.mxu0 0.0
    %325 = vmatpush1.msra.mxu0 %v286
    %326 = vmatprep.subr.mxu0 0.0
    %327 = vmatpush2.msra.mxu0 0.0
    %328 = vmatprep.subr.mxu0 0.0
    %329 = vmatpush2.msra.mxu0 0.0
    %330 = vmatprep.subr.mxu0 0.0
    %331 = vmatpush2.msra.mxu0 0.0
    %332 = vmatprep.subr.mxu0 0.0
    %333 = vmatpush2.msra.mxu0 0.0
    %334 = vmatprep.subr.mxu0 0.0
    %335 = vmatpush2.msra.mxu0 0.0
    %336 = vmatprep.subr.mxu0 0.0
    %337 = vmatpush2.msra.mxu0 0.0
    %338 = vmatprep.subr.mxu0 0.0
    %339 = vmatpush2.msra.mxu0 0.0
    %340 = vmatprep.subr.mxu0 0.0
    %341 = vmatpush2.msra.mxu0 0.0
    %342 = vmatprep.subr.mxu0 0.0
    %343 = vmatpush2.msra.mxu0 0.0
    %344 = vmatprep.subr.mxu0 0.0
    %345 = vmatpush2.msra.mxu0 0.0
    %346 = vmatprep.subr.mxu0 0.0
    %347 = vmatpush2.msra.mxu0 0.0
    %348 = vmatprep.subr.mxu0 0.0
    %349 = vmatpush2.msra.mxu0 0.0
    %350 = vmatprep.subr.mxu0 0.0
    %351 = vmatpush2.msra.mxu0 0.0
    %352 = vmatprep.subr.mxu0 0.0
    %353 = vmatpush2.msra.mxu0 0.0
    %354 = vmatprep.subr.mxu0 0.0
    %355 = vmatpush2.msra.mxu0 0.0
    %356 = vmatprep.subr.mxu0 0.0
    %357 = vmatpush2.msra.mxu0 0.0
    %358 = vmatprep.mubr.f32.mxu0 0.0
    %359 = vmatmul.mubr.f32.gmra.mxu0 %v292
    %v360 = vpop.f32.mrf.mxu0
    %v361 = vadd.f32 0.0, %v360
    %v362 = vpop.f32.mrf.mxu0
    %363 = vdwg.mxu0
    %v364 = vadd.f32 %v276, %v361
    %v365 = vxor.u32 %v364, 2147483648
    %v366 = vmul.f32 %v365, 1.442695
    %v367 = vpow.pop %v366
    %v368 = vadd.f32 %v367, 1.0
    %v369 = vrcp.pop %v368
    %v370 = vmul.f32 1.0, %v369
    %v371 = vtanh.pop %v364
    %v372 = vmul.f32 %v370, 0.0
    %374 = vrot.lane.b32.xlu0 %v371, 32
    %v375 = vpop.permute.xlu0 %374
    %v377 = vmul.f32 %v370, %v375
    %379 = vrot.lane.b32.xlu0 %v377, 32
    %v380 = vpop.permute.xlu0 %379
    %v382 = vadd.f32 %v372, %v380
    %v383 = vtanh.pop %v382
    %385 = vrot.lane.b32.xlu0 %v383, 32
    %v386 = vpop.permute.xlu0 %385
    %v388 = vmul.f32 %v370, %v386
    %390 = vrot.lane.b32.xlu0 %v388, 64
    %v391 = vpop.permute.xlu0 %390
    %vm393 = vcmask 254976
    %394 = vst.msk [vmem:[#allocation2] sm:$0x3] %vm393, %v391
    %v395 = vsel %vm290, %v391, 0
    %397 = vmatprep.subr.mxu0 0.0
    %398 = vmatpush1.msra.mxu0 0.0
    %399 = vmatprep.subr.mxu0 0.0
    %400 = vmatpush1.msra.mxu0 0.0
    %401 = vmatprep.subr.mxu0 0.0
    %402 = vmatpush1.msra.mxu0 0.0
    %403 = vmatprep.subr.mxu0 0.0
    %404 = vmatpush1.msra.mxu0 0.0
    %405 = vmatprep.subr.mxu0 0.0
    %406 = vmatpush1.msra.mxu0 0.0
    %407 = vmatprep.subr.mxu0 0.0
    %408 = vmatpush1.msra.mxu0 0.0
    %409 = vmatprep.subr.mxu0 0.0
    %410 = vmatpush1.msra.mxu0 0.0
    %411 = vmatprep.subr.mxu0 0.0
    %412 = vmatpush1.msra.mxu0 0.0
    %413 = vmatprep.subr.mxu0 0.0
    %414 = vmatpush1.msra.mxu0 0.0
    %415 = vmatprep.subr.mxu0 0.0
    %416 = vmatpush1.msra.mxu0 0.0
    %417 = vmatprep.subr.mxu0 0.0
    %418 = vmatpush1.msra.mxu0 0.0
    %419 = vmatprep.subr.mxu0 0.0
    %420 = vmatpush1.msra.mxu0 0.0
    %421 = vmatprep.subr.mxu0 0.0
    %422 = vmatpush1.msra.mxu0 %v289
    %423 = vmatprep.subr.mxu0 0.0
    %424 = vmatpush1.msra.mxu0 %v288
    %425 = vmatprep.subr.mxu0 0.0
    %426 = vmatpush1.msra.mxu0 %v287
    %427 = vmatprep.subr.mxu0 0.0
    %428 = vmatpush1.msra.mxu0 %v286
    %429 = vmatprep.subr.mxu0 0.0
    %430 = vmatpush2.msra.mxu0 0.0
    %431 = vmatprep.subr.mxu0 0.0
    %432 = vmatpush2.msra.mxu0 0.0
    %433 = vmatprep.subr.mxu0 0.0
    %434 = vmatpush2.msra.mxu0 0.0
    %435 = vmatprep.subr.mxu0 0.0
    %436 = vmatpush2.msra.mxu0 0.0
    %437 = vmatprep.subr.mxu0 0.0
    %438 = vmatpush2.msra.mxu0 0.0
    %439 = vmatprep.subr.mxu0 0.0
    %440 = vmatpush2.msra.mxu0 0.0
    %441 = vmatprep.subr.mxu0 0.0
    %442 = vmatpush2.msra.mxu0 0.0
    %443 = vmatprep.subr.mxu0 0.0
    %444 = vmatpush2.msra.mxu0 0.0
    %445 = vmatprep.subr.mxu0 0.0
    %446 = vmatpush2.msra.mxu0 0.0
    %447 = vmatprep.subr.mxu0 0.0
    %448 = vmatpush2.msra.mxu0 0.0
    %449 = vmatprep.subr.mxu0 0.0
    %450 = vmatpush2.msra.mxu0 0.0
    %451 = vmatprep.subr.mxu0 0.0
    %452 = vmatpush2.msra.mxu0 0.0
    %453 = vmatprep.subr.mxu0 0.0
    %454 = vmatpush2.msra.mxu0 0.0
    %455 = vmatprep.subr.mxu0 0.0
    %456 = vmatpush2.msra.mxu0 0.0
    %457 = vmatprep.subr.mxu0 0.0
    %458 = vmatpush2.msra.mxu0 0.0
    %459 = vmatprep.subr.mxu0 0.0
    %460 = vmatpush2.msra.mxu0 0.0
    %461 = vmatprep.mubr.f32.mxu0 0.0
    %462 = vmatmul.mubr.f32.gmra.mxu0 %v395
    %v463 = vpop.f32.mrf.mxu0
    %v464 = vadd.f32 0.0, %v463
    %v465 = vpop.f32.mrf.mxu0
    %466 = vdwg.mxu0
    %v468 = vrot.slane %v464, 6
    %v470 = vadd.f32 %v276, %v468
    %v471 = vxor.u32 %v470, 2147483648
    %v472 = vmul.f32 %v471, 1.442695
    %v473 = vpow.pop %v472
    %v474 = vadd.f32 %v473, 1.0
    %v475 = vrcp.pop %v474
    %v476 = vmul.f32 1.0, %v475
    %v477 = vtanh.pop %v470
    %v479 = vrot.slane %v382, 6
    %v481 = vmul.f32 %v476, %v479
    %483 = vrot.lane.b32.xlu0 %v477, 32
    %v484 = vpop.permute.xlu0 %483
    %v486 = vmul.f32 %v476, %v484
    %488 = vrot.lane.b32.xlu0 %v486, 32
    %v489 = vpop.permute.xlu0 %488
    %v491 = vadd.f32 %v481, %v489
    %v492 = vtanh.pop %v491
    %494 = vrot.lane.b32.xlu0 %v492, 32
    %v495 = vpop.permute.xlu0 %494
    %v497 = vmul.f32 %v476, %v495
    %499 = vrot.lane.b32.xlu0 %v497, 64
    %v500 = vpop.permute.xlu0 %499
    %vm502 = vcmask 257026
    %503 = vst.msk [vmem:[#allocation2] sm:$0xc] %vm502, %v500
    %v504 = vrot.slane %v497, 2
    %505 = vrot.lane.b32.xlu0 %v504, 64
    %v506 = vpop.permute.xlu0 %505
    %v507 = vsel %vm290, %v506, 0
    %509 = vmatprep.subr.mxu0 0.0
    %510 = vmatpush1.msra.mxu0 0.0
    %511 = vmatprep.subr.mxu0 0.0
    %512 = vmatpush1.msra.mxu0 0.0
    %513 = vmatprep.subr.mxu0 0.0
    %514 = vmatpush1.msra.mxu0 0.0
    %515 = vmatprep.subr.mxu0 0.0
    %516 = vmatpush1.msra.mxu0 0.0
    %517 = vmatprep.subr.mxu0 0.0
    %518 = vmatpush1.msra.mxu0 0.0
    %519 = vmatprep.subr.mxu0 0.0
    %520 = vmatpush1.msra.mxu0 0.0
    %521 = vmatprep.subr.mxu0 0.0
    %522 = vmatpush1.msra.mxu0 0.0
    %523 = vmatprep.subr.mxu0 0.0
    %524 = vmatpush1.msra.mxu0 0.0
    %525 = vmatprep.subr.mxu0 0.0
    %526 = vmatpush1.msra.mxu0 0.0
    %527 = vmatprep.subr.mxu0 0.0
    %528 = vmatpush1.msra.mxu0 0.0
    %529 = vmatprep.subr.mxu0 0.0
    %530 = vmatpush1.msra.mxu0 0.0
    %531 = vmatprep.subr.mxu0 0.0
    %532 = vmatpush1.msra.mxu0 0.0
    %533 = vmatprep.subr.mxu0 0.0
    %534 = vmatpush1.msra.mxu0 %v289
    %535 = vmatprep.subr.mxu0 0.0
    %536 = vmatpush1.msra.mxu0 %v288
    %537 = vmatprep.subr.mxu0 0.0
    %538 = vmatpush1.msra.mxu0 %v287
    %539 = vmatprep.subr.mxu0 0.0
    %540 = vmatpush1.msra.mxu0 %v286
    %541 = vmatprep.subr.mxu0 0.0
    %542 = vmatpush2.msra.mxu0 0.0
    %543 = vmatprep.subr.mxu0 0.0
    %544 = vmatpush2.msra.mxu0 0.0
    %545 = vmatprep.subr.mxu0 0.0
    %546 = vmatpush2.msra.mxu0 0.0
    %547 = vmatprep.subr.mxu0 0.0
    %548 = vmatpush2.msra.mxu0 0.0
    %549 = vmatprep.subr.mxu0 0.0
    %550 = vmatpush2.msra.mxu0 0.0
    %551 = vmatprep.subr.mxu0 0.0
    %552 = vmatpush2.msra.mxu0 0.0
    %553 = vmatprep.subr.mxu0 0.0
    %554 = vmatpush2.msra.mxu0 0.0
    %555 = vmatprep.subr.mxu0 0.0
    %556 = vmatpush2.msra.mxu0 0.0
    %557 = vmatprep.subr.mxu0 0.0
    %558 = vmatpush2.msra.mxu0 0.0
    %559 = vmatprep.subr.mxu0 0.0
    %560 = vmatpush2.msra.mxu0 0.0
    %561 = vmatprep.subr.mxu0 0.0
    %562 = vmatpush2.msra.mxu0 0.0
    %563 = vmatprep.subr.mxu0 0.0
    %564 = vmatpush2.msra.mxu0 0.0
    %565 = vmatprep.subr.mxu0 0.0
    %566 = vmatpush2.msra.mxu0 0.0
    %567 = vmatprep.subr.mxu0 0.0
    %568 = vmatpush2.msra.mxu0 0.0
    %569 = vmatprep.subr.mxu0 0.0
    %570 = vmatpush2.msra.mxu0 0.0
    %571 = vmatprep.subr.mxu0 0.0
    %572 = vmatpush2.msra.mxu0 0.0
    %573 = vmatprep.mubr.f32.mxu0 0.0
    %574 = vmatmul.mubr.f32.gmra.mxu0 %v507
    %v575 = vpop.f32.mrf.mxu0
    %v576 = vadd.f32 0.0, %v575
    %v577 = vpop.f32.mrf.mxu0
    %578 = vdwg.mxu0
    %v580 = vrot.slane %v576, 4
    %v582 = vadd.f32 %v276, %v580
    %v583 = vxor.u32 %v582, 2147483648
    %v584 = vmul.f32 %v583, 1.442695
    %v585 = vpow.pop %v584
    %v586 = vadd.f32 %v585, 1.0
    %v587 = vrcp.pop %v586
    %v588 = vmul.f32 1.0, %v587
    %v589 = vtanh.pop %v582
    %v591 = vrot.slane %v491, 6
    %v593 = vmul.f32 %v588, %v591
    %595 = vrot.lane.b32.xlu0 %v589, 32
    %v596 = vpop.permute.xlu0 %595
    %v598 = vmul.f32 %v588, %v596
    %600 = vrot.lane.b32.xlu0 %v598, 32
    %v601 = vpop.permute.xlu0 %600
    %v603 = vadd.f32 %v593, %v601
    %v604 = vtanh.pop %v603
    %606 = vrot.lane.b32.xlu0 %v604, 32
    %v607 = vpop.permute.xlu0 %606
    %v609 = vmul.f32 %v588, %v607
    %611 = vrot.lane.b32.xlu0 %v609, 64
    %v612 = vpop.permute.xlu0 %611
    %vm614 = vcmask 259076
    %615 = vst.msk [vmem:[#allocation2] sm:$0x30] %vm614, %v612
    %v616 = vrot.slane %v609, 4
    %617 = vrot.lane.b32.xlu0 %v616, 64
    %v618 = vpop.permute.xlu0 %617
    %v619 = vsel %vm290, %v618, 0
    %621 = vmatprep.subr.mxu0 0.0
    %622 = vmatpush1.msra.mxu0 0.0
    %623 = vmatprep.subr.mxu0 0.0
    %624 = vmatpush1.msra.mxu0 0.0
    %625 = vmatprep.subr.mxu0 0.0
    %626 = vmatpush1.msra.mxu0 0.0
    %627 = vmatprep.subr.mxu0 0.0
    %628 = vmatpush1.msra.mxu0 0.0
    %629 = vmatprep.subr.mxu0 0.0
    %630 = vmatpush1.msra.mxu0 0.0
    %631 = vmatprep.subr.mxu0 0.0
    %632 = vmatpush1.msra.mxu0 0.0
    %633 = vmatprep.subr.mxu0 0.0
    %634 = vmatpush1.msra.mxu0 0.0
    %635 = vmatprep.subr.mxu0 0.0
    %636 = vmatpush1.msra.mxu0 0.0
    %637 = vmatprep.subr.mxu0 0.0
    %638 = vmatpush1.msra.mxu0 0.0
    %639 = vmatprep.subr.mxu0 0.0
    %640 = vmatpush1.msra.mxu0 0.0
    %641 = vmatprep.subr.mxu0 0.0
    %642 = vmatpush1.msra.mxu0 0.0
    %643 = vmatprep.subr.mxu0 0.0
    %644 = vmatpush1.msra.mxu0 0.0
    %645 = vmatprep.subr.mxu0 0.0
    %646 = vmatpush1.msra.mxu0 %v289
    %647 = vmatprep.subr.mxu0 0.0
    %648 = vmatpush1.msra.mxu0 %v288
    %649 = vmatprep.subr.mxu0 0.0
    %650 = vmatpush1.msra.mxu0 %v287
    %651 = vmatprep.subr.mxu0 0.0
    %652 = vmatpush1.msra.mxu0 %v286
    %653 = vmatprep.subr.mxu0 0.0
    %654 = vmatpush2.msra.mxu0 0.0
    %655 = vmatprep.subr.mxu0 0.0
    %656 = vmatpush2.msra.mxu0 0.0
    %657 = vmatprep.subr.mxu0 0.0
    %658 = vmatpush2.msra.mxu0 0.0
    %659 = vmatprep.subr.mxu0 0.0
    %660 = vmatpush2.msra.mxu0 0.0
    %661 = vmatprep.subr.mxu0 0.0
    %662 = vmatpush2.msra.mxu0 0.0
    %663 = vmatprep.subr.mxu0 0.0
    %664 = vmatpush2.msra.mxu0 0.0
    %665 = vmatprep.subr.mxu0 0.0
    %666 = vmatpush2.msra.mxu0 0.0
    %667 = vmatprep.subr.mxu0 0.0
    %668 = vmatpush2.msra.mxu0 0.0
    %669 = vmatprep.subr.mxu0 0.0
    %670 = vmatpush2.msra.mxu0 0.0
    %671 = vmatprep.subr.mxu0 0.0
    %672 = vmatpush2.msra.mxu0 0.0
    %673 = vmatprep.subr.mxu0 0.0
    %674 = vmatpush2.msra.mxu0 0.0
    %675 = vmatprep.subr.mxu0 0.0
    %676 = vmatpush2.msra.mxu0 0.0
    %677 = vmatprep.subr.mxu0 0.0
    %678 = vmatpush2.msra.mxu0 0.0
    %679 = vmatprep.subr.mxu0 0.0
    %680 = vmatpush2.msra.mxu0 0.0
    %681 = vmatprep.subr.mxu0 0.0
    %682 = vmatpush2.msra.mxu0 0.0
    %683 = vmatprep.subr.mxu0 0.0
    %684 = vmatpush2.msra.mxu0 0.0
    %685 = vmatprep.mubr.f32.mxu0 0.0
    %686 = vmatmul.mubr.f32.gmra.mxu0 %v619
    %v687 = vpop.f32.mrf.mxu0
    %v688 = vadd.f32 0.0, %v687
    %v689 = vpop.f32.mrf.mxu0
    %690 = vdwg.mxu0
    %v692 = vrot.slane %v688, 2
    %v694 = vadd.f32 %v276, %v692
    %v695 = vxor.u32 %v694, 2147483648
    %v696 = vmul.f32 %v695, 1.442695
    %v697 = vpow.pop %v696
    %v698 = vadd.f32 %v697, 1.0
    %v699 = vrcp.pop %v698
    %v700 = vmul.f32 1.0, %v699
    %v701 = vtanh.pop %v694
    %v703 = vrot.slane %v603, 6
    %v705 = vmul.f32 %v700, %v703
    %707 = vrot.lane.b32.xlu0 %v701, 32
    %v708 = vpop.permute.xlu0 %707
    %v710 = vmul.f32 %v700, %v708
    %712 = vrot.lane.b32.xlu0 %v710, 32
    %v713 = vpop.permute.xlu0 %712
    %v715 = vadd.f32 %v705, %v713
    %v716 = vtanh.pop %v715
    %718 = vrot.lane.b32.xlu0 %v716, 32
    %v719 = vpop.permute.xlu0 %718
    %v721 = vmul.f32 %v700, %v719
    %723 = vrot.lane.b32.xlu0 %v721, 64
    %v724 = vpop.permute.xlu0 %723
    %vm726 = vcmask 261126
    %727 = vst.msk [vmem:[#allocation2] sm:$0xc0] %vm726, %v724
    %v728 = vrot.slane %v721, 6
    %729 = vrot.lane.b32.xlu0 %v728, 64
    %v730 = vpop.permute.xlu0 %729
    %v731 = vsel %vm290, %v730, 0
    %733 = vmatprep.subr.mxu0 0.0
    %734 = vmatpush1.msra.mxu0 0.0
    %735 = vmatprep.subr.mxu0 0.0
    %736 = vmatpush1.msra.mxu0 0.0
    %737 = vmatprep.subr.mxu0 0.0
    %738 = vmatpush1.msra.mxu0 0.0
    %739 = vmatprep.subr.mxu0 0.0
    %740 = vmatpush1.msra.mxu0 0.0
    %741 = vmatprep.subr.mxu0 0.0
    %742 = vmatpush1.msra.mxu0 0.0
    %743 = vmatprep.subr.mxu0 0.0
    %744 = vmatpush1.msra.mxu0 0.0
    %745 = vmatprep.subr.mxu0 0.0
    %746 = vmatpush1.msra.mxu0 0.0
    %747 = vmatprep.subr.mxu0 0.0
    %748 = vmatpush1.msra.mxu0 0.0
    %749 = vmatprep.subr.mxu0 0.0
    %750 = vmatpush1.msra.mxu0 0.0
    %751 = vmatprep.subr.mxu0 0.0
    %752 = vmatpush1.msra.mxu0 0.0
    %753 = vmatprep.subr.mxu0 0.0
    %754 = vmatpush1.msra.mxu0 0.0
    %755 = vmatprep.subr.mxu0 0.0
    %756 = vmatpush1.msra.mxu0 0.0
    %757 = vmatprep.subr.mxu0 0.0
    %758 = vmatpush1.msra.mxu0 %v289
    %759 = vmatprep.subr.mxu0 0.0
    %760 = vmatpush1.msra.mxu0 %v288
    %761 = vmatprep.subr.mxu0 0.0
    %762 = vmatpush1.msra.mxu0 %v287
    %763 = vmatprep.subr.mxu0 0.0
    %764 = vmatpush1.msra.mxu0 %v286
    %765 = vmatprep.subr.mxu0 0.0
    %766 = vmatpush2.msra.mxu0 0.0
    %767 = vmatprep.subr.mxu0 0.0
    %768 = vmatpush2.msra.mxu0 0.0
    %769 = vmatprep.subr.mxu0 0.0
    %770 = vmatpush2.msra.mxu0 0.0
    %771 = vmatprep.subr.mxu0 0.0
    %772 = vmatpush2.msra.mxu0 0.0
    %773 = vmatprep.subr.mxu0 0.0
    %774 = vmatpush2.msra.mxu0 0.0
    %775 = vmatprep.subr.mxu0 0.0
    %776 = vmatpush2.msra.mxu0 0.0
    %777 = vmatprep.subr.mxu0 0.0
    %778 = vmatpush2.msra.mxu0 0.0
    %779 = vmatprep.subr.mxu0 0.0
    %780 = vmatpush2.msra.mxu0 0.0
    %781 = vmatprep.subr.mxu0 0.0
    %782 = vmatpush2.msra.mxu0 0.0
    %783 = vmatprep.subr.mxu0 0.0
    %784 = vmatpush2.msra.mxu0 0.0
    %785 = vmatprep.subr.mxu0 0.0
    %786 = vmatpush2.msra.mxu0 0.0
    %787 = vmatprep.subr.mxu0 0.0
    %788 = vmatpush2.msra.mxu0 0.0
    %789 = vmatprep.subr.mxu0 0.0
    %790 = vmatpush2.msra.mxu0 0.0
    %791 = vmatprep.subr.mxu0 0.0
    %792 = vmatpush2.msra.mxu0 0.0
    %793 = vmatprep.subr.mxu0 0.0
    %794 = vmatpush2.msra.mxu0 0.0
    %795 = vmatprep.subr.mxu0 0.0
    %796 = vmatpush2.msra.mxu0 0.0
    %797 = vmatprep.mubr.f32.mxu0 0.0
    %798 = vmatmul.mubr.f32.gmra.mxu0 %v731
    %v799 = vpop.f32.mrf.mxu0
    %v800 = vadd.f32 0.0, %v799
    %v801 = vpop.f32.mrf.mxu0
    %802 = vdwg.mxu0
    %v803 = vadd.f32 %v282, %v800
    %v804 = vxor.u32 %v803, 2147483648
    %v805 = vmul.f32 %v804, 1.442695
    %v806 = vpow.pop %v805
    %v807 = vadd.f32 %v806, 1.0
    %v808 = vrcp.pop %v807
    %v809 = vmul.f32 1.0, %v808
    %v810 = vtanh.pop %v803
    %v812 = vrot.slane %v715, 6
    %v814 = vmul.f32 %v809, %v812
    %816 = vrot.lane.b32.xlu0 %v810, 32
    %v817 = vpop.permute.xlu0 %816
    %v819 = vmul.f32 %v809, %v817
    %821 = vrot.lane.b32.xlu0 %v819, 32
    %v822 = vpop.permute.xlu0 %821
    %v824 = vadd.f32 %v814, %v822
    %v825 = vtanh.pop %v824
    %827 = vrot.lane.b32.xlu0 %v825, 32
    %v828 = vpop.permute.xlu0 %827
    %v830 = vmul.f32 %v809, %v828
    %832 = vrot.lane.b32.xlu0 %v830, 64
    %v833 = vpop.permute.xlu0 %832
    %835 = vst.msk [vmem:[#allocation2 + $0x8] sm:$0x3] %vm393, %v833
    %v836 = vsel %vm290, %v833, 0
    %838 = vmatprep.subr.mxu0 0.0
    %839 = vmatpush1.msra.mxu0 0.0
    %840 = vmatprep.subr.mxu0 0.0
    %841 = vmatpush1.msra.mxu0 0.0
    %842 = vmatprep.subr.mxu0 0.0
    %843 = vmatpush1.msra.mxu0 0.0
    %844 = vmatprep.subr.mxu0 0.0
    %845 = vmatpush1.msra.mxu0 0.0
    %846 = vmatprep.subr.mxu0 0.0
    %847 = vmatpush1.msra.mxu0 0.0
    %848 = vmatprep.subr.mxu0 0.0
    %849 = vmatpush1.msra.mxu0 0.0
    %850 = vmatprep.subr.mxu0 0.0
    %851 = vmatpush1.msra.mxu0 0.0
    %852 = vmatprep.subr.mxu0 0.0
    %853 = vmatpush1.msra.mxu0 0.0
    %854 = vmatprep.subr.mxu0 0.0
    %855 = vmatpush1.msra.mxu0 0.0
    %856 = vmatprep.subr.mxu0 0.0
    %857 = vmatpush1.msra.mxu0 0.0
    %858 = vmatprep.subr.mxu0 0.0
    %859 = vmatpush1.msra.mxu0 0.0
    %860 = vmatprep.subr.mxu0 0.0
    %861 = vmatpush1.msra.mxu0 0.0
    %862 = vmatprep.subr.mxu0 0.0
    %863 = vmatpush1.msra.mxu0 %v289
    %864 = vmatprep.subr.mxu0 0.0
    %865 = vmatpush1.msra.mxu0 %v288
    %866 = vmatprep.subr.mxu0 0.0
    %867 = vmatpush1.msra.mxu0 %v287
    %868 = vmatprep.subr.mxu0 0.0
    %869 = vmatpush1.msra.mxu0 %v286
    %870 = vmatprep.subr.mxu0 0.0
    %871 = vmatpush2.msra.mxu0 0.0
    %872 = vmatprep.subr.mxu0 0.0
    %873 = vmatpush2.msra.mxu0 0.0
    %874 = vmatprep.subr.mxu0 0.0
    %875 = vmatpush2.msra.mxu0 0.0
    %876 = vmatprep.subr.mxu0 0.0
    %877 = vmatpush2.msra.mxu0 0.0
    %878 = vmatprep.subr.mxu0 0.0
    %879 = vmatpush2.msra.mxu0 0.0
    %880 = vmatprep.subr.mxu0 0.0
    %881 = vmatpush2.msra.mxu0 0.0
    %882 = vmatprep.subr.mxu0 0.0
    %883 = vmatpush2.msra.mxu0 0.0
    %884 = vmatprep.subr.mxu0 0.0
    %885 = vmatpush2.msra.mxu0 0.0
    %886 = vmatprep.subr.mxu0 0.0
    %887 = vmatpush2.msra.mxu0 0.0
    %888 = vmatprep.subr.mxu0 0.0
    %889 = vmatpush2.msra.mxu0 0.0
    %890 = vmatprep.subr.mxu0 0.0
    %891 = vmatpush2.msra.mxu0 0.0
    %892 = vmatprep.subr.mxu0 0.0
    %893 = vmatpush2.msra.mxu0 0.0
    %894 = vmatprep.subr.mxu0 0.0
    %895 = vmatpush2.msra.mxu0 0.0
    %896 = vmatprep.subr.mxu0 0.0
    %897 = vmatpush2.msra.mxu0 0.0
    %898 = vmatprep.subr.mxu0 0.0
    %899 = vmatpush2.msra.mxu0 0.0
    %900 = vmatprep.subr.mxu0 0.0
    %901 = vmatpush2.msra.mxu0 0.0
    %902 = vmatprep.mubr.f32.mxu0 0.0
    %903 = vmatmul.mubr.f32.gmra.mxu0 %v836
    %v904 = vpop.f32.mrf.mxu0
    %v905 = vadd.f32 0.0, %v904
    %v906 = vpop.f32.mrf.mxu0
    %907 = vdwg.mxu0
    %v909 = vrot.slane %v905, 6
    %v911 = vadd.f32 %v282, %v909
    %v912 = vxor.u32 %v911, 2147483648
    %v913 = vmul.f32 %v912, 1.442695
    %v914 = vpow.pop %v913
    %v915 = vadd.f32 %v914, 1.0
    %v916 = vrcp.pop %v915
    %v917 = vmul.f32 1.0, %v916
    %v918 = vtanh.pop %v911
    %v920 = vrot.slane %v824, 6
    %v922 = vmul.f32 %v917, %v920
    %924 = vrot.lane.b32.xlu0 %v918, 32
    %v925 = vpop.permute.xlu0 %924
    %v927 = vmul.f32 %v917, %v925
    %929 = vrot.lane.b32.xlu0 %v927, 32
    %v930 = vpop.permute.xlu0 %929
    %v932 = vadd.f32 %v922, %v930
    %v933 = vtanh.pop %v932
    %935 = vrot.lane.b32.xlu0 %v933, 32
    %v936 = vpop.permute.xlu0 %935
    %v938 = vmul.f32 %v917, %v936
    %940 = vrot.lane.b32.xlu0 %v938, 64
    %v941 = vpop.permute.xlu0 %940
    %943 = vst.msk [vmem:[#allocation2 + $0x8] sm:$0xc] %vm502, %v941
    %v944 = vrot.slane %v938, 2
    %945 = vrot.lane.b32.xlu0 %v944, 64
    %v946 = vpop.permute.xlu0 %945
    %v947 = vsel %vm290, %v946, 0
    %949 = vmatprep.subr.mxu0 0.0
    %950 = vmatpush1.msra.mxu0 0.0
    %951 = vmatprep.subr.mxu0 0.0
    %952 = vmatpush1.msra.mxu0 0.0
    %953 = vmatprep.subr.mxu0 0.0
    %954 = vmatpush1.msra.mxu0 0.0
    %955 = vmatprep.subr.mxu0 0.0
    %956 = vmatpush1.msra.mxu0 0.0
    %957 = vmatprep.subr.mxu0 0.0
    %958 = vmatpush1.msra.mxu0 0.0
    %959 = vmatprep.subr.mxu0 0.0
    %960 = vmatpush1.msra.mxu0 0.0
    %961 = vmatprep.subr.mxu0 0.0
    %962 = vmatpush1.msra.mxu0 0.0
    %963 = vmatprep.subr.mxu0 0.0
    %964 = vmatpush1.msra.mxu0 0.0
    %965 = vmatprep.subr.mxu0 0.0
    %966 = vmatpush1.msra.mxu0 0.0
    %967 = vmatprep.subr.mxu0 0.0
    %968 = vmatpush1.msra.mxu0 0.0
    %969 = vmatprep.subr.mxu0 0.0
    %970 = vmatpush1.msra.mxu0 0.0
    %971 = vmatprep.subr.mxu0 0.0
    %972 = vmatpush1.msra.mxu0 0.0
    %973 = vmatprep.subr.mxu0 0.0
    %974 = vmatpush1.msra.mxu0 %v289
    %975 = vmatprep.subr.mxu0 0.0
    %976 = vmatpush1.msra.mxu0 %v288
    %977 = vmatprep.subr.mxu0 0.0
    %978 = vmatpush1.msra.mxu0 %v287
    %979 = vmatprep.subr.mxu0 0.0
    %980 = vmatpush1.msra.mxu0 %v286
    %981 = vmatprep.subr.mxu0 0.0
    %982 = vmatpush2.msra.mxu0 0.0
    %983 = vmatprep.subr.mxu0 0.0
    %984 = vmatpush2.msra.mxu0 0.0
    %985 = vmatprep.subr.mxu0 0.0
    %986 = vmatpush2.msra.mxu0 0.0
    %987 = vmatprep.subr.mxu0 0.0
    %988 = vmatpush2.msra.mxu0 0.0
    %989 = vmatprep.subr.mxu0 0.0
    %990 = vmatpush2.msra.mxu0 0.0
    %991 = vmatprep.subr.mxu0 0.0
    %992 = vmatpush2.msra.mxu0 0.0
    %993 = vmatprep.subr.mxu0 0.0
    %994 = vmatpush2.msra.mxu0 0.0
    %995 = vmatprep.subr.mxu0 0.0
    %996 = vmatpush2.msra.mxu0 0.0
    %997 = vmatprep.subr.mxu0 0.0
    %998 = vmatpush2.msra.mxu0 0.0
    %999 = vmatprep.subr.mxu0 0.0
    %1000 = vmatpush2.msra.mxu0 0.0
    %1001 = vmatprep.subr.mxu0 0.0
    %1002 = vmatpush2.msra.mxu0 0.0
    %1003 = vmatprep.subr.mxu0 0.0
    %1004 = vmatpush2.msra.mxu0 0.0
    %1005 = vmatprep.subr.mxu0 0.0
    %1006 = vmatpush2.msra.mxu0 0.0
    %1007 = vmatprep.subr.mxu0 0.0
    %1008 = vmatpush2.msra.mxu0 0.0
    %1009 = vmatprep.subr.mxu0 0.0
    %1010 = vmatpush2.msra.mxu0 0.0
    %1011 = vmatprep.subr.mxu0 0.0
    %1012 = vmatpush2.msra.mxu0 0.0
    %1013 = vmatprep.mubr.f32.mxu0 0.0
    %1014 = vmatmul.mubr.f32.gmra.mxu0 %v947
    %v1015 = vpop.f32.mrf.mxu0
    %v1016 = vadd.f32 0.0, %v1015
    %v1017 = vpop.f32.mrf.mxu0
    %1018 = vdwg.mxu0
    %v1020 = vrot.slane %v1016, 4
    %v1022 = vadd.f32 %v282, %v1020
    %v1023 = vxor.u32 %v1022, 2147483648
    %v1024 = vmul.f32 %v1023, 1.442695
    %v1025 = vpow.pop %v1024
    %v1026 = vadd.f32 %v1025, 1.0
    %v1027 = vrcp.pop %v1026
    %v1028 = vmul.f32 1.0, %v1027
    %v1029 = vtanh.pop %v1022
    %v1031 = vrot.slane %v932, 6
    %v1033 = vmul.f32 %v1028, %v1031
    %1035 = vrot.lane.b32.xlu0 %v1029, 32
    %v1036 = vpop.permute.xlu0 %1035
    %v1038 = vmul.f32 %v1028, %v1036
    %1040 = vrot.lane.b32.xlu0 %v1038, 32
    %v1041 = vpop.permute.xlu0 %1040
    %v1043 = vadd.f32 %v1033, %v1041
    %v1044 = vtanh.pop %v1043
    %1046 = vrot.lane.b32.xlu0 %v1044, 32
    %v1047 = vpop.permute.xlu0 %1046
    %v1049 = vmul.f32 %v1028, %v1047
    %1051 = vrot.lane.b32.xlu0 %v1049, 64
    %v1052 = vpop.permute.xlu0 %1051
    %1054 = vst.msk [vmem:[#allocation2 + $0x8] sm:$0x30] %vm614, %v1052
    %v1055 = vrot.slane %v1049, 4
    %1056 = vrot.lane.b32.xlu0 %v1055, 64
    %v1057 = vpop.permute.xlu0 %1056
    %v1058 = vsel %vm290, %v1057, 0
    %1060 = vmatprep.subr.mxu0 0.0
    %1061 = vmatpush1.msra.mxu0 0.0
    %1062 = vmatprep.subr.mxu0 0.0
    %1063 = vmatpush1.msra.mxu0 0.0
    %1064 = vmatprep.subr.mxu0 0.0
    %1065 = vmatpush1.msra.mxu0 0.0
    %1066 = vmatprep.subr.mxu0 0.0
    %1067 = vmatpush1.msra.mxu0 0.0
    %1068 = vmatprep.subr.mxu0 0.0
    %1069 = vmatpush1.msra.mxu0 0.0
    %1070 = vmatprep.subr.mxu0 0.0
    %1071 = vmatpush1.msra.mxu0 0.0
    %1072 = vmatprep.subr.mxu0 0.0
    %1073 = vmatpush1.msra.mxu0 0.0
    %1074 = vmatprep.subr.mxu0 0.0
    %1075 = vmatpush1.msra.mxu0 0.0
    %1076 = vmatprep.subr.mxu0 0.0
    %1077 = vmatpush1.msra.mxu0 0.0
    %1078 = vmatprep.subr.mxu0 0.0
    %1079 = vmatpush1.msra.mxu0 0.0
    %1080 = vmatprep.subr.mxu0 0.0
    %1081 = vmatpush1.msra.mxu0 0.0
    %1082 = vmatprep.subr.mxu0 0.0
    %1083 = vmatpush1.msra.mxu0 0.0
    %1084 = vmatprep.subr.mxu0 0.0
    %1085 = vmatpush1.msra.mxu0 %v289
    %1086 = vmatprep.subr.mxu0 0.0
    %1087 = vmatpush1.msra.mxu0 %v288
    %1088 = vmatprep.subr.mxu0 0.0
    %1089 = vmatpush1.msra.mxu0 %v287
    %1090 = vmatprep.subr.mxu0 0.0
    %1091 = vmatpush1.msra.mxu0 %v286
    %1092 = vmatprep.subr.mxu0 0.0
    %1093 = vmatpush2.msra.mxu0 0.0
    %1094 = vmatprep.subr.mxu0 0.0
    %1095 = vmatpush2.msra.mxu0 0.0
    %1096 = vmatprep.subr.mxu0 0.0
    %1097 = vmatpush2.msra.mxu0 0.0
    %1098 = vmatprep.subr.mxu0 0.0
    %1099 = vmatpush2.msra.mxu0 0.0
    %1100 = vmatprep.subr.mxu0 0.0
    %1101 = vmatpush2.msra.mxu0 0.0
    %1102 = vmatprep.subr.mxu0 0.0
    %1103 = vmatpush2.msra.mxu0 0.0
    %1104 = vmatprep.subr.mxu0 0.0
    %1105 = vmatpush2.msra.mxu0 0.0
    %1106 = vmatprep.subr.mxu0 0.0
    %1107 = vmatpush2.msra.mxu0 0.0
    %1108 = vmatprep.subr.mxu0 0.0
    %1109 = vmatpush2.msra.mxu0 0.0
    %1110 = vmatprep.subr.mxu0 0.0
    %1111 = vmatpush2.msra.mxu0 0.0
    %1112 = vmatprep.subr.mxu0 0.0
    %1113 = vmatpush2.msra.mxu0 0.0
    %1114 = vmatprep.subr.mxu0 0.0
    %1115 = vmatpush2.msra.mxu0 0.0
    %1116 = vmatprep.subr.mxu0 0.0
    %1117 = vmatpush2.msra.mxu0 0.0
    %1118 = vmatprep.subr.mxu0 0.0
    %1119 = vmatpush2.msra.mxu0 0.0
    %1120 = vmatprep.subr.mxu0 0.0
    %1121 = vmatpush2.msra.mxu0 0.0
    %1122 = vmatprep.subr.mxu0 0.0
    %1123 = vmatpush2.msra.mxu0 0.0
    %1124 = vmatprep.mubr.f32.mxu0 0.0
    %1125 = vmatmul.mubr.f32.gmra.mxu0 %v1058
    %v1126 = vpop.f32.mrf.mxu0
    %v1127 = vadd.f32 0.0, %v1126
    %v1128 = vpop.f32.mrf.mxu0
    %1129 = vdwg.mxu0
    %v1131 = vrot.slane %v1127, 2
    %v1133 = vadd.f32 %v282, %v1131
    %v1134 = vxor.u32 %v1133, 2147483648
    %v1135 = vmul.f32 %v1134, 1.442695
    %v1136 = vpow.pop %v1135
    %v1137 = vadd.f32 %v1136, 1.0
    %v1138 = vrcp.pop %v1137
    %v1139 = vmul.f32 1.0, %v1138
    %v1140 = vtanh.pop %v1133
    %v1142 = vrot.slane %v1043, 6
    %v1144 = vmul.f32 %v1139, %v1142
    %1146 = vrot.lane.b32.xlu0 %v1140, 32
    %v1147 = vpop.permute.xlu0 %1146
    %v1149 = vmul.f32 %v1139, %v1147
    %1151 = vrot.lane.b32.xlu0 %v1149, 32
    %v1152 = vpop.permute.xlu0 %1151
    %v1154 = vadd.f32 %v1144, %v1152
    %v1155 = vtanh.pop %v1154
    %1157 = vrot.lane.b32.xlu0 %v1155, 32
    %v1158 = vpop.permute.xlu0 %1157
    %v1160 = vmul.f32 %v1139, %v1158
    %1162 = vrot.lane.b32.xlu0 %v1160, 64
    %v1163 = vpop.permute.xlu0 %1162
    %1165 = vst.msk [vmem:[#allocation2 + $0x8] sm:$0xc0] %vm726, %v1163
    %v1166 = vld [vmem:[#allocation6] sm:$0xff]
    %v1167 = vld [vmem:[#allocation6 + $0x8] sm:$0xff]
    %v1168 = vld [vmem:[#allocation6 + $0x10] sm:$0xff]
    %v1169 = vld [vmem:[#allocation6 + $0x18] sm:$0xff]
    %1170 = vmatprep.subr.mxu0 0.0
    %1171 = vmatpush1.msra.mxu0 0.0
    %1172 = vmatprep.subr.mxu0 0.0
    %1173 = vmatpush1.msra.mxu0 0.0
    %1174 = vmatprep.subr.mxu0 0.0
    %1175 = vmatpush1.msra.mxu0 0.0
    %1176 = vmatprep.subr.mxu0 0.0
    %1177 = vmatpush1.msra.mxu0 0.0
    %1178 = vmatprep.subr.mxu0 0.0
    %1179 = vmatpush1.msra.mxu0 0.0
    %1180 = vmatprep.subr.mxu0 0.0
    %1181 = vmatpush1.msra.mxu0 0.0
    %1182 = vmatprep.subr.mxu0 0.0
    %1183 = vmatpush1.msra.mxu0 0.0
    %1184 = vmatprep.subr.mxu0 0.0
    %1185 = vmatpush1.msra.mxu0 0.0
    %1186 = vmatprep.subr.mxu0 0.0
    %1187 = vmatpush1.msra.mxu0 0.0
    %1188 = vmatprep.subr.mxu0 0.0
    %1189 = vmatpush1.msra.mxu0 0.0
    %1190 = vmatprep.subr.mxu0 0.0
    %1191 = vmatpush1.msra.mxu0 0.0
    %1192 = vmatprep.subr.mxu0 0.0
    %1193 = vmatpush1.msra.mxu0 0.0
    %1194 = vmatprep.subr.mxu0 0.0
    %1195 = vmatpush1.msra.mxu0 %v1169
    %1196 = vmatprep.subr.mxu0 0.0
    %1197 = vmatpush1.msra.mxu0 %v1168
    %1198 = vmatprep.subr.mxu0 0.0
    %1199 = vmatpush1.msra.mxu0 %v1167
    %1200 = vmatprep.subr.mxu0 0.0
    %1201 = vmatpush1.msra.mxu0 %v1166
    %1202 = vmatprep.subr.mxu0 0.0
    %1203 = vmatpush2.msra.mxu0 0.0
    %1204 = vmatprep.subr.mxu0 0.0
    %1205 = vmatpush2.msra.mxu0 0.0
    %1206 = vmatprep.subr.mxu0 0.0
    %1207 = vmatpush2.msra.mxu0 0.0
    %1208 = vmatprep.subr.mxu0 0.0
    %1209 = vmatpush2.msra.mxu0 0.0
    %1210 = vmatprep.subr.mxu0 0.0
    %1211 = vmatpush2.msra.mxu0 0.0
    %1212 = vmatprep.subr.mxu0 0.0
    %1213 = vmatpush2.msra.mxu0 0.0
    %1214 = vmatprep.subr.mxu0 0.0
    %1215 = vmatpush2.msra.mxu0 0.0
    %1216 = vmatprep.subr.mxu0 0.0
    %1217 = vmatpush2.msra.mxu0 0.0
    %1218 = vmatprep.subr.mxu0 0.0
    %1219 = vmatpush2.msra.mxu0 0.0
    %1220 = vmatprep.subr.mxu0 0.0
    %1221 = vmatpush2.msra.mxu0 0.0
    %1222 = vmatprep.subr.mxu0 0.0
    %1223 = vmatpush2.msra.mxu0 0.0
    %1224 = vmatprep.subr.mxu0 0.0
    %1225 = vmatpush2.msra.mxu0 0.0
    %1226 = vmatprep.subr.mxu0 0.0
    %1227 = vmatpush2.msra.mxu0 0.0
    %1228 = vmatprep.subr.mxu0 0.0
    %1229 = vmatpush2.msra.mxu0 0.0
    %1230 = vmatprep.subr.mxu0 0.0
    %1231 = vmatpush2.msra.mxu0 0.0
    %1232 = vmatprep.subr.mxu0 0.0
    %1233 = vmatpush2.msra.mxu0 0.0
    %1234 = vmatprep.mubr.f32.mxu0 0.0
    %1235 = vmatmul.mubr.f32.gmra.mxu0 %v292
    %v1236 = vpop.f32.mrf.mxu0
    %v1237 = vadd.f32 0.0, %v1236
    %v1238 = vpop.f32.mrf.mxu0
    %1239 = vdwg.mxu0
    %v1241 = vrot.slane %v1237, 2
    %v1243 = vadd.f32 %v284, %v1241
    %v1244 = vxor.u32 %v1243, 2147483648
    %v1245 = vmul.f32 %v1244, 1.442695
    %v1246 = vpow.pop %v1245
    %v1247 = vadd.f32 %v1246, 1.0
    %v1248 = vrcp.pop %v1247
    %v1249 = vmul.f32 1.0, %v1248
    %v1250 = vtanh.pop %v1243
    %v1251 = vmul.f32 %v1249, 0.0
    %1253 = vrot.lane.b32.xlu0 %v1250, 32
    %v1254 = vpop.permute.xlu0 %1253
    %v1256 = vmul.f32 %v1249, %v1254
    %1258 = vrot.lane.b32.xlu0 %v1256, 32
    %v1259 = vpop.permute.xlu0 %1258
    %v1261 = vadd.f32 %v1251, %v1259
    %v1262 = vtanh.pop %v1261
    %1264 = vrot.lane.b32.xlu0 %v1262, 32
    %v1265 = vpop.permute.xlu0 %1264
    %v1267 = vmul.f32 %v1249, %v1265
    %1269 = vrot.lane.b32.xlu0 %v1267, 96
    %v1270 = vpop.permute.xlu0 %1269
    %vm1272 = vcmask 523526
    %1273 = vst.msk [vmem:[#allocation2 + $0x8] sm:$0xc0] %vm1272, %v1270
    %v1274 = vrot.slane %v1267, 6
    %1275 = vrot.lane.b32.xlu0 %v1274, 64
    %v1276 = vpop.permute.xlu0 %1275
    %v1277 = vsel %vm290, %v1276, 0
    %1279 = vmatprep.subr.mxu0 0.0
    %1280 = vmatpush1.msra.mxu0 0.0
    %1281 = vmatprep.subr.mxu0 0.0
    %1282 = vmatpush1.msra.mxu0 0.0
    %1283 = vmatprep.subr.mxu0 0.0
    %1284 = vmatpush1.msra.mxu0 0.0
    %1285 = vmatprep.subr.mxu0 0.0
    %1286 = vmatpush1.msra.mxu0 0.0
    %1287 = vmatprep.subr.mxu0 0.0
    %1288 = vmatpush1.msra.mxu0 0.0
    %1289 = vmatprep.subr.mxu0 0.0
    %1290 = vmatpush1.msra.mxu0 0.0
    %1291 = vmatprep.subr.mxu0 0.0
    %1292 = vmatpush1.msra.mxu0 0.0
    %1293 = vmatprep.subr.mxu0 0.0
    %1294 = vmatpush1.msra.mxu0 0.0
    %1295 = vmatprep.subr.mxu0 0.0
    %1296 = vmatpush1.msra.mxu0 0.0
    %1297 = vmatprep.subr.mxu0 0.0
    %1298 = vmatpush1.msra.mxu0 0.0
    %1299 = vmatprep.subr.mxu0 0.0
    %1300 = vmatpush1.msra.mxu0 0.0
    %1301 = vmatprep.subr.mxu0 0.0
    %1302 = vmatpush1.msra.mxu0 0.0
    %1303 = vmatprep.subr.mxu0 0.0
    %1304 = vmatpush1.msra.mxu0 %v1169
    %1305 = vmatprep.subr.mxu0 0.0
    %1306 = vmatpush1.msra.mxu0 %v1168
    %1307 = vmatprep.subr.mxu0 0.0
    %1308 = vmatpush1.msra.mxu0 %v1167
    %1309 = vmatprep.subr.mxu0 0.0
    %1310 = vmatpush1.msra.mxu0 %v1166
    %1311 = vmatprep.subr.mxu0 0.0
    %1312 = vmatpush2.msra.mxu0 0.0
    %1313 = vmatprep.subr.mxu0 0.0
    %1314 = vmatpush2.msra.mxu0 0.0
    %1315 = vmatprep.subr.mxu0 0.0
    %1316 = vmatpush2.msra.mxu0 0.0
    %1317 = vmatprep.subr.mxu0 0.0
    %1318 = vmatpush2.msra.mxu0 0.0
    %1319 = vmatprep.subr.mxu0 0.0
    %1320 = vmatpush2.msra.mxu0 0.0
    %1321 = vmatprep.subr.mxu0 0.0
    %1322 = vmatpush2.msra.mxu0 0.0
    %1323 = vmatprep.subr.mxu0 0.0
    %1324 = vmatpush2.msra.mxu0 0.0
    %1325 = vmatprep.subr.mxu0 0.0
    %1326 = vmatpush2.msra.mxu0 0.0
    %1327 = vmatprep.subr.mxu0 0.0
    %1328 = vmatpush2.msra.mxu0 0.0
    %1329 = vmatprep.subr.mxu0 0.0
    %1330 = vmatpush2.msra.mxu0 0.0
    %1331 = vmatprep.subr.mxu0 0.0
    %1332 = vmatpush2.msra.mxu0 0.0
    %1333 = vmatprep.subr.mxu0 0.0
    %1334 = vmatpush2.msra.mxu0 0.0
    %1335 = vmatprep.subr.mxu0 0.0
    %1336 = vmatpush2.msra.mxu0 0.0
    %1337 = vmatprep.subr.mxu0 0.0
    %1338 = vmatpush2.msra.mxu0 0.0
    %1339 = vmatprep.subr.mxu0 0.0
    %1340 = vmatpush2.msra.mxu0 0.0
    %1341 = vmatprep.subr.mxu0 0.0
    %1342 = vmatpush2.msra.mxu0 0.0
    %1343 = vmatprep.mubr.f32.mxu0 0.0
    %1344 = vmatmul.mubr.f32.gmra.mxu0 %v1277
    %v1345 = vpop.f32.mrf.mxu0
    %v1346 = vadd.f32 0.0, %v1345
    %v1347 = vpop.f32.mrf.mxu0
    %1348 = vdwg.mxu0
    %v1350 = vrot.slane %v1346, 4
    %v1352 = vadd.f32 %v284, %v1350
    %v1353 = vxor.u32 %v1352, 2147483648
    %v1354 = vmul.f32 %v1353, 1.442695
    %v1355 = vpow.pop %v1354
    %v1356 = vadd.f32 %v1355, 1.0
    %v1357 = vrcp.pop %v1356
    %v1358 = vmul.f32 1.0, %v1357
    %v1359 = vtanh.pop %v1352
    %v1361 = vrot.slane %v1261, 2
    %v1363 = vmul.f32 %v1358, %v1361
    %1365 = vrot.lane.b32.xlu0 %v1359, 32
    %v1366 = vpop.permute.xlu0 %1365
    %v1368 = vmul.f32 %v1358, %v1366
    %1370 = vrot.lane.b32.xlu0 %v1368, 32
    %v1371 = vpop.permute.xlu0 %1370
    %v1373 = vadd.f32 %v1363, %v1371
    %v1374 = vtanh.pop %v1373
    %1376 = vrot.lane.b32.xlu0 %v1374, 32
    %v1377 = vpop.permute.xlu0 %1376
    %v1379 = vmul.f32 %v1358, %v1377
    %1381 = vrot.lane.b32.xlu0 %v1379, 96
    %v1382 = vpop.permute.xlu0 %1381
    %vm1384 = vcmask 521476
    %1385 = vst.msk [vmem:[#allocation2 + $0x8] sm:$0x30] %vm1384, %v1382
    %v1386 = vrot.slane %v1379, 4
    %1387 = vrot.lane.b32.xlu0 %v1386, 64
    %v1388 = vpop.permute.xlu0 %1387
    %v1389 = vsel %vm290, %v1388, 0
    %1391 = vmatprep.subr.mxu0 0.0
    %1392 = vmatpush1.msra.mxu0 0.0
    %1393 = vmatprep.subr.mxu0 0.0
    %1394 = vmatpush1.msra.mxu0 0.0
    %1395 = vmatprep.subr.mxu0 0.0
    %1396 = vmatpush1.msra.mxu0 0.0
    %1397 = vmatprep.subr.mxu0 0.0
    %1398 = vmatpush1.msra.mxu0 0.0
    %1399 = vmatprep.subr.mxu0 0.0
    %1400 = vmatpush1.msra.mxu0 0.0
    %1401 = vmatprep.subr.mxu0 0.0
    %1402 = vmatpush1.msra.mxu0 0.0
    %1403 = vmatprep.subr.mxu0 0.0
    %1404 = vmatpush1.msra.mxu0 0.0
    %1405 = vmatprep.subr.mxu0 0.0
    %1406 = vmatpush1.msra.mxu0 0.0
    %1407 = vmatprep.subr.mxu0 0.0
    %1408 = vmatpush1.msra.mxu0 0.0
    %1409 = vmatprep.subr.mxu0 0.0
    %1410 = vmatpush1.msra.mxu0 0.0
    %1411 = vmatprep.subr.mxu0 0.0
    %1412 = vmatpush1.msra.mxu0 0.0
    %1413 = vmatprep.subr.mxu0 0.0
    %1414 = vmatpush1.msra.mxu0 0.0
    %1415 = vmatprep.subr.mxu0 0.0
    %1416 = vmatpush1.msra.mxu0 %v1169
    %1417 = vmatprep.subr.mxu0 0.0
    %1418 = vmatpush1.msra.mxu0 %v1168
    %1419 = vmatprep.subr.mxu0 0.0
    %1420 = vmatpush1.msra.mxu0 %v1167
    %1421 = vmatprep.subr.mxu0 0.0
    %1422 = vmatpush1.msra.mxu0 %v1166
    %1423 = vmatprep.subr.mxu0 0.0
    %1424 = vmatpush2.msra.mxu0 0.0
    %1425 = vmatprep.subr.mxu0 0.0
    %1426 = vmatpush2.msra.mxu0 0.0
    %1427 = vmatprep.subr.mxu0 0.0
    %1428 = vmatpush2.msra.mxu0 0.0
    %1429 = vmatprep.subr.mxu0 0.0
    %1430 = vmatpush2.msra.mxu0 0.0
    %1431 = vmatprep.subr.mxu0 0.0
    %1432 = vmatpush2.msra.mxu0 0.0
    %1433 = vmatprep.subr.mxu0 0.0
    %1434 = vmatpush2.msra.mxu0 0.0
    %1435 = vmatprep.subr.mxu0 0.0
    %1436 = vmatpush2.msra.mxu0 0.0
    %1437 = vmatprep.subr.mxu0 0.0
    %1438 = vmatpush2.msra.mxu0 0.0
    %1439 = vmatprep.subr.mxu0 0.0
    %1440 = vmatpush2.msra.mxu0 0.0
    %1441 = vmatprep.subr.mxu0 0.0
    %1442 = vmatpush2.msra.mxu0 0.0
    %1443 = vmatprep.subr.mxu0 0.0
    %1444 = vmatpush2.msra.mxu0 0.0
    %1445 = vmatprep.subr.mxu0 0.0
    %1446 = vmatpush2.msra.mxu0 0.0
    %1447 = vmatprep.subr.mxu0 0.0
    %1448 = vmatpush2.msra.mxu0 0.0
    %1449 = vmatprep.subr.mxu0 0.0
    %1450 = vmatpush2.msra.mxu0 0.0
    %1451 = vmatprep.subr.mxu0 0.0
    %1452 = vmatpush2.msra.mxu0 0.0
    %1453 = vmatprep.subr.mxu0 0.0
    %1454 = vmatpush2.msra.mxu0 0.0
    %1455 = vmatprep.mubr.f32.mxu0 0.0
    %1456 = vmatmul.mubr.f32.gmra.mxu0 %v1389
    %v1457 = vpop.f32.mrf.mxu0
    %v1458 = vadd.f32 0.0, %v1457
    %v1459 = vpop.f32.mrf.mxu0
    %1460 = vdwg.mxu0
    %v1462 = vrot.slane %v1458, 6
    %v1464 = vadd.f32 %v284, %v1462
    %v1465 = vxor.u32 %v1464, 2147483648
    %v1466 = vmul.f32 %v1465, 1.442695
    %v1467 = vpow.pop %v1466
    %v1468 = vadd.f32 %v1467, 1.0
    %v1469 = vrcp.pop %v1468
    %v1470 = vmul.f32 1.0, %v1469
    %v1471 = vtanh.pop %v1464
    %v1473 = vrot.slane %v1373, 2
    %v1475 = vmul.f32 %v1470, %v1473
    %1477 = vrot.lane.b32.xlu0 %v1471, 32
    %v1478 = vpop.permute.xlu0 %1477
    %v1480 = vmul.f32 %v1470, %v1478
    %1482 = vrot.lane.b32.xlu0 %v1480, 32
    %v1483 = vpop.permute.xlu0 %1482
    %v1485 = vadd.f32 %v1475, %v1483
    %v1486 = vtanh.pop %v1485
    %1488 = vrot.lane.b32.xlu0 %v1486, 32
    %v1489 = vpop.permute.xlu0 %1488
    %v1491 = vmul.f32 %v1470, %v1489
    %1493 = vrot.lane.b32.xlu0 %v1491, 96
    %v1494 = vpop.permute.xlu0 %1493
    %vm1496 = vcmask 519426
    %1497 = vst.msk [vmem:[#allocation2 + $0x8] sm:$0xc] %vm1496, %v1494
    %v1498 = vrot.slane %v1491, 2
    %1499 = vrot.lane.b32.xlu0 %v1498, 64
    %v1500 = vpop.permute.xlu0 %1499
    %v1501 = vsel %vm290, %v1500, 0
    %1503 = vmatprep.subr.mxu0 0.0
    %1504 = vmatpush1.msra.mxu0 0.0
    %1505 = vmatprep.subr.mxu0 0.0
    %1506 = vmatpush1.msra.mxu0 0.0
    %1507 = vmatprep.subr.mxu0 0.0
    %1508 = vmatpush1.msra.mxu0 0.0
    %1509 = vmatprep.subr.mxu0 0.0
    %1510 = vmatpush1.msra.mxu0 0.0
    %1511 = vmatprep.subr.mxu0 0.0
    %1512 = vmatpush1.msra.mxu0 0.0
    %1513 = vmatprep.subr.mxu0 0.0
    %1514 = vmatpush1.msra.mxu0 0.0
    %1515 = vmatprep.subr.mxu0 0.0
    %1516 = vmatpush1.msra.mxu0 0.0
    %1517 = vmatprep.subr.mxu0 0.0
    %1518 = vmatpush1.msra.mxu0 0.0
    %1519 = vmatprep.subr.mxu0 0.0
    %1520 = vmatpush1.msra.mxu0 0.0
    %1521 = vmatprep.subr.mxu0 0.0
    %1522 = vmatpush1.msra.mxu0 0.0
    %1523 = vmatprep.subr.mxu0 0.0
    %1524 = vmatpush1.msra.mxu0 0.0
    %1525 = vmatprep.subr.mxu0 0.0
    %1526 = vmatpush1.msra.mxu0 0.0
    %1527 = vmatprep.subr.mxu0 0.0
    %1528 = vmatpush1.msra.mxu0 %v1169
    %1529 = vmatprep.subr.mxu0 0.0
    %1530 = vmatpush1.msra.mxu0 %v1168
    %1531 = vmatprep.subr.mxu0 0.0
    %1532 = vmatpush1.msra.mxu0 %v1167
    %1533 = vmatprep.subr.mxu0 0.0
    %1534 = vmatpush1.msra.mxu0 %v1166
    %1535 = vmatprep.subr.mxu0 0.0
    %1536 = vmatpush2.msra.mxu0 0.0
    %1537 = vmatprep.subr.mxu0 0.0
    %1538 = vmatpush2.msra.mxu0 0.0
    %1539 = vmatprep.subr.mxu0 0.0
    %1540 = vmatpush2.msra.mxu0 0.0
    %1541 = vmatprep.subr.mxu0 0.0
    %1542 = vmatpush2.msra.mxu0 0.0
    %1543 = vmatprep.subr.mxu0 0.0
    %1544 = vmatpush2.msra.mxu0 0.0
    %1545 = vmatprep.subr.mxu0 0.0
    %1546 = vmatpush2.msra.mxu0 0.0
    %1547 = vmatprep.subr.mxu0 0.0
    %1548 = vmatpush2.msra.mxu0 0.0
    %1549 = vmatprep.subr.mxu0 0.0
    %1550 = vmatpush2.msra.mxu0 0.0
    %1551 = vmatprep.subr.mxu0 0.0
    %1552 = vmatpush2.msra.mxu0 0.0
    %1553 = vmatprep.subr.mxu0 0.0
    %1554 = vmatpush2.msra.mxu0 0.0
    %1555 = vmatprep.subr.mxu0 0.0
    %1556 = vmatpush2.msra.mxu0 0.0
    %1557 = vmatprep.subr.mxu0 0.0
    %1558 = vmatpush2.msra.mxu0 0.0
    %1559 = vmatprep.subr.mxu0 0.0
    %1560 = vmatpush2.msra.mxu0 0.0
    %1561 = vmatprep.subr.mxu0 0.0
    %1562 = vmatpush2.msra.mxu0 0.0
    %1563 = vmatprep.subr.mxu0 0.0
    %1564 = vmatpush2.msra.mxu0 0.0
    %1565 = vmatprep.subr.mxu0 0.0
    %1566 = vmatpush2.msra.mxu0 0.0
    %1567 = vmatprep.mubr.f32.mxu0 0.0
    %1568 = vmatmul.mubr.f32.gmra.mxu0 %v1501
    %v1569 = vpop.f32.mrf.mxu0
    %v1570 = vadd.f32 0.0, %v1569
    %v1571 = vpop.f32.mrf.mxu0
    %1572 = vdwg.mxu0
    %v1573 = vadd.f32 %v284, %v1570
    %v1574 = vxor.u32 %v1573, 2147483648
    %v1575 = vmul.f32 %v1574, 1.442695
    %v1576 = vpow.pop %v1575
    %v1577 = vadd.f32 %v1576, 1.0
    %v1578 = vrcp.pop %v1577
    %v1579 = vmul.f32 1.0, %v1578
    %v1580 = vtanh.pop %v1573
    %v1582 = vrot.slane %v1485, 2
    %v1584 = vmul.f32 %v1579, %v1582
    %1586 = vrot.lane.b32.xlu0 %v1580, 32
    %v1587 = vpop.permute.xlu0 %1586
    %v1589 = vmul.f32 %v1579, %v1587
    %1591 = vrot.lane.b32.xlu0 %v1589, 32
    %v1592 = vpop.permute.xlu0 %1591
    %v1594 = vadd.f32 %v1584, %v1592
    %v1595 = vtanh.pop %v1594
    %1597 = vrot.lane.b32.xlu0 %v1595, 32
    %v1598 = vpop.permute.xlu0 %1597
    %v1600 = vmul.f32 %v1579, %v1598
    %1602 = vrot.lane.b32.xlu0 %v1600, 96
    %v1603 = vpop.permute.xlu0 %1602
    %vm1605 = vcmask 517376
    %1606 = vst.msk [vmem:[#allocation2 + $0x8] sm:$0x3] %vm1605, %v1603
    %1607 = vrot.lane.b32.xlu0 %v1600, 64
    %v1608 = vpop.permute.xlu0 %1607
    %v1609 = vsel %vm290, %v1608, 0
    %1611 = vmatprep.subr.mxu0 0.0
    %1612 = vmatpush1.msra.mxu0 0.0
    %1613 = vmatprep.subr.mxu0 0.0
    %1614 = vmatpush1.msra.mxu0 0.0
    %1615 = vmatprep.subr.mxu0 0.0
    %1616 = vmatpush1.msra.mxu0 0.0
    %1617 = vmatprep.subr.mxu0 0.0
    %1618 = vmatpush1.msra.mxu0 0.0
    %1619 = vmatprep.subr.mxu0 0.0
    %1620 = vmatpush1.msra.mxu0 0.0
    %1621 = vmatprep.subr.mxu0 0.0
    %1622 = vmatpush1.msra.mxu0 0.0
    %1623 = vmatprep.subr.mxu0 0.0
    %1624 = vmatpush1.msra.mxu0 0.0
    %1625 = vmatprep.subr.mxu0 0.0
    %1626 = vmatpush1.msra.mxu0 0.0
    %1627 = vmatprep.subr.mxu0 0.0
    %1628 = vmatpush1.msra.mxu0 0.0
    %1629 = vmatprep.subr.mxu0 0.0
    %1630 = vmatpush1.msra.mxu0 0.0
    %1631 = vmatprep.subr.mxu0 0.0
    %1632 = vmatpush1.msra.mxu0 0.0
    %1633 = vmatprep.subr.mxu0 0.0
    %1634 = vmatpush1.msra.mxu0 0.0
    %1635 = vmatprep.subr.mxu0 0.0
    %1636 = vmatpush1.msra.mxu0 %v1169
    %1637 = vmatprep.subr.mxu0 0.0
    %1638 = vmatpush1.msra.mxu0 %v1168
    %1639 = vmatprep.subr.mxu0 0.0
    %1640 = vmatpush1.msra.mxu0 %v1167
    %1641 = vmatprep.subr.mxu0 0.0
    %1642 = vmatpush1.msra.mxu0 %v1166
    %1643 = vmatprep.subr.mxu0 0.0
    %1644 = vmatpush2.msra.mxu0 0.0
    %1645 = vmatprep.subr.mxu0 0.0
    %1646 = vmatpush2.msra.mxu0 0.0
    %1647 = vmatprep.subr.mxu0 0.0
    %1648 = vmatpush2.msra.mxu0 0.0
    %1649 = vmatprep.subr.mxu0 0.0
    %1650 = vmatpush2.msra.mxu0 0.0
    %1651 = vmatprep.subr.mxu0 0.0
    %1652 = vmatpush2.msra.mxu0 0.0
    %1653 = vmatprep.subr.mxu0 0.0
    %1654 = vmatpush2.msra.mxu0 0.0
    %1655 = vmatprep.subr.mxu0 0.0
    %1656 = vmatpush2.msra.mxu0 0.0
    %1657 = vmatprep.subr.mxu0 0.0
    %1658 = vmatpush2.msra.mxu0 0.0
    %1659 = vmatprep.subr.mxu0 0.0
    %1660 = vmatpush2.msra.mxu0 0.0
    %1661 = vmatprep.subr.mxu0 0.0
    %1662 = vmatpush2.msra.mxu0 0.0
    %1663 = vmatprep.subr.mxu0 0.0
    %1664 = vmatpush2.msra.mxu0 0.0
    %1665 = vmatprep.subr.mxu0 0.0
    %1666 = vmatpush2.msra.mxu0 0.0
    %1667 = vmatprep.subr.mxu0 0.0
    %1668 = vmatpush2.msra.mxu0 0.0
    %1669 = vmatprep.subr.mxu0 0.0
    %1670 = vmatpush2.msra.mxu0 0.0
    %1671 = vmatprep.subr.mxu0 0.0
    %1672 = vmatpush2.msra.mxu0 0.0
    %1673 = vmatprep.subr.mxu0 0.0
    %1674 = vmatpush2.msra.mxu0 0.0
    %1675 = vmatprep.mubr.f32.mxu0 0.0
    %1676 = vmatmul.mubr.f32.gmra.mxu0 %v1609
    %v1677 = vpop.f32.mrf.mxu0
    %v1678 = vadd.f32 0.0, %v1677
    %v1679 = vpop.f32.mrf.mxu0
    %1680 = vdwg.mxu0
    %v1682 = vrot.slane %v1678, 2
    %v1684 = vadd.f32 %v278, %v1682
    %v1685 = vxor.u32 %v1684, 2147483648
    %v1686 = vmul.f32 %v1685, 1.442695
    %v1687 = vpow.pop %v1686
    %v1688 = vadd.f32 %v1687, 1.0
    %v1689 = vrcp.pop %v1688
    %v1690 = vmul.f32 1.0, %v1689
    %v1691 = vtanh.pop %v1684
    %v1693 = vrot.slane %v1594, 2
    %v1695 = vmul.f32 %v1690, %v1693
    %1697 = vrot.lane.b32.xlu0 %v1691, 32
    %v1698 = vpop.permute.xlu0 %1697
    %v1700 = vmul.f32 %v1690, %v1698
    %1702 = vrot.lane.b32.xlu0 %v1700, 32
    %v1703 = vpop.permute.xlu0 %1702
    %v1705 = vadd.f32 %v1695, %v1703
    %v1706 = vtanh.pop %v1705
    %1708 = vrot.lane.b32.xlu0 %v1706, 32
    %v1709 = vpop.permute.xlu0 %1708
    %v1711 = vmul.f32 %v1690, %v1709
    %1713 = vrot.lane.b32.xlu0 %v1711, 96
    %v1714 = vpop.permute.xlu0 %1713
    %1716 = vst.msk [vmem:[#allocation2] sm:$0xc0] %vm1272, %v1714
    %v1717 = vrot.slane %v1711, 6
    %1718 = vrot.lane.b32.xlu0 %v1717, 64
    %v1719 = vpop.permute.xlu0 %1718
    %v1720 = vsel %vm290, %v1719, 0
    %1722 = vmatprep.subr.mxu0 0.0
    %1723 = vmatpush1.msra.mxu0 0.0
    %1724 = vmatprep.subr.mxu0 0.0
    %1725 = vmatpush1.msra.mxu0 0.0
    %1726 = vmatprep.subr.mxu0 0.0
    %1727 = vmatpush1.msra.mxu0 0.0
    %1728 = vmatprep.subr.mxu0 0.0
    %1729 = vmatpush1.msra.mxu0 0.0
    %1730 = vmatprep.subr.mxu0 0.0
    %1731 = vmatpush1.msra.mxu0 0.0
    %1732 = vmatprep.subr.mxu0 0.0
    %1733 = vmatpush1.msra.mxu0 0.0
    %1734 = vmatprep.subr.mxu0 0.0
    %1735 = vmatpush1.msra.mxu0 0.0
    %1736 = vmatprep.subr.mxu0 0.0
    %1737 = vmatpush1.msra.mxu0 0.0
    %1738 = vmatprep.subr.mxu0 0.0
    %1739 = vmatpush1.msra.mxu0 0.0
    %1740 = vmatprep.subr.mxu0 0.0
    %1741 = vmatpush1.msra.mxu0 0.0
    %1742 = vmatprep.subr.mxu0 0.0
    %1743 = vmatpush1.msra.mxu0 0.0
    %1744 = vmatprep.subr.mxu0 0.0
    %1745 = vmatpush1.msra.mxu0 0.0
    %1746 = vmatprep.subr.mxu0 0.0
    %1747 = vmatpush1.msra.mxu0 %v1169
    %1748 = vmatprep.subr.mxu0 0.0
    %1749 = vmatpush1.msra.mxu0 %v1168
    %1750 = vmatprep.subr.mxu0 0.0
    %1751 = vmatpush1.msra.mxu0 %v1167
    %1752 = vmatprep.subr.mxu0 0.0
    %1753 = vmatpush1.msra.mxu0 %v1166
    %1754 = vmatprep.subr.mxu0 0.0
    %1755 = vmatpush2.msra.mxu0 0.0
    %1756 = vmatprep.subr.mxu0 0.0
    %1757 = vmatpush2.msra.mxu0 0.0
    %1758 = vmatprep.subr.mxu0 0.0
    %1759 = vmatpush2.msra.mxu0 0.0
    %1760 = vmatprep.subr.mxu0 0.0
    %1761 = vmatpush2.msra.mxu0 0.0
    %1762 = vmatprep.subr.mxu0 0.0
    %1763 = vmatpush2.msra.mxu0 0.0
    %1764 = vmatprep.subr.mxu0 0.0
    %1765 = vmatpush2.msra.mxu0 0.0
    %1766 = vmatprep.subr.mxu0 0.0
    %1767 = vmatpush2.msra.mxu0 0.0
    %1768 = vmatprep.subr.mxu0 0.0
    %1769 = vmatpush2.msra.mxu0 0.0
    %1770 = vmatprep.subr.mxu0 0.0
    %1771 = vmatpush2.msra.mxu0 0.0
    %1772 = vmatprep.subr.mxu0 0.0
    %1773 = vmatpush2.msra.mxu0 0.0
    %1774 = vmatprep.subr.mxu0 0.0
    %1775 = vmatpush2.msra.mxu0 0.0
    %1776 = vmatprep.subr.mxu0 0.0
    %1777 = vmatpush2.msra.mxu0 0.0
    %1778 = vmatprep.subr.mxu0 0.0
    %1779 = vmatpush2.msra.mxu0 0.0
    %1780 = vmatprep.subr.mxu0 0.0
    %1781 = vmatpush2.msra.mxu0 0.0
    %1782 = vmatprep.subr.mxu0 0.0
    %1783 = vmatpush2.msra.mxu0 0.0
    %1784 = vmatprep.subr.mxu0 0.0
    %1785 = vmatpush2.msra.mxu0 0.0
    %1786 = vmatprep.mubr.f32.mxu0 0.0
    %1787 = vmatmul.mubr.f32.gmra.mxu0 %v1720
    %v1788 = vpop.f32.mrf.mxu0
    %v1789 = vadd.f32 0.0, %v1788
    %v1790 = vpop.f32.mrf.mxu0
    %1791 = vdwg.mxu0
    %v1793 = vrot.slane %v1789, 4
    %v1795 = vadd.f32 %v278, %v1793
    %v1796 = vxor.u32 %v1795, 2147483648
    %v1797 = vmul.f32 %v1796, 1.442695
    %v1798 = vpow.pop %v1797
    %v1799 = vadd.f32 %v1798, 1.0
    %v1800 = vrcp.pop %v1799
    %v1801 = vmul.f32 1.0, %v1800
    %v1802 = vtanh.pop %v1795
    %v1804 = vrot.slane %v1705, 2
    %v1806 = vmul.f32 %v1801, %v1804
    %1808 = vrot.lane.b32.xlu0 %v1802, 32
    %v1809 = vpop.permute.xlu0 %1808
    %v1811 = vmul.f32 %v1801, %v1809
    %1813 = vrot.lane.b32.xlu0 %v1811, 32
    %v1814 = vpop.permute.xlu0 %1813
    %v1816 = vadd.f32 %v1806, %v1814
    %v1817 = vtanh.pop %v1816
    %1819 = vrot.lane.b32.xlu0 %v1817, 32
    %v1820 = vpop.permute.xlu0 %1819
    %v1822 = vmul.f32 %v1801, %v1820
    %1824 = vrot.lane.b32.xlu0 %v1822, 96
    %v1825 = vpop.permute.xlu0 %1824
    %1827 = vst.msk [vmem:[#allocation2] sm:$0x30] %vm1384, %v1825
    %v1828 = vrot.slane %v1822, 4
    %1829 = vrot.lane.b32.xlu0 %v1828, 64
    %v1830 = vpop.permute.xlu0 %1829
    %v1831 = vsel %vm290, %v1830, 0
    %1833 = vmatprep.subr.mxu0 0.0
    %1834 = vmatpush1.msra.mxu0 0.0
    %1835 = vmatprep.subr.mxu0 0.0
    %1836 = vmatpush1.msra.mxu0 0.0
    %1837 = vmatprep.subr.mxu0 0.0
    %1838 = vmatpush1.msra.mxu0 0.0
    %1839 = vmatprep.subr.mxu0 0.0
    %1840 = vmatpush1.msra.mxu0 0.0
    %1841 = vmatprep.subr.mxu0 0.0
    %1842 = vmatpush1.msra.mxu0 0.0
    %1843 = vmatprep.subr.mxu0 0.0
    %1844 = vmatpush1.msra.mxu0 0.0
    %1845 = vmatprep.subr.mxu0 0.0
    %1846 = vmatpush1.msra.mxu0 0.0
    %1847 = vmatprep.subr.mxu0 0.0
    %1848 = vmatpush1.msra.mxu0 0.0
    %1849 = vmatprep.subr.mxu0 0.0
    %1850 = vmatpush1.msra.mxu0 0.0
    %1851 = vmatprep.subr.mxu0 0.0
    %1852 = vmatpush1.msra.mxu0 0.0
    %1853 = vmatprep.subr.mxu0 0.0
    %1854 = vmatpush1.msra.mxu0 0.0
    %1855 = vmatprep.subr.mxu0 0.0
    %1856 = vmatpush1.msra.mxu0 0.0
    %1857 = vmatprep.subr.mxu0 0.0
    %1858 = vmatpush1.msra.mxu0 %v1169
    %1859 = vmatprep.subr.mxu0 0.0
    %1860 = vmatpush1.msra.mxu0 %v1168
    %1861 = vmatprep.subr.mxu0 0.0
    %1862 = vmatpush1.msra.mxu0 %v1167
    %1863 = vmatprep.subr.mxu0 0.0
    %1864 = vmatpush1.msra.mxu0 %v1166
    %1865 = vmatprep.subr.mxu0 0.0
    %1866 = vmatpush2.msra.mxu0 0.0
    %1867 = vmatprep.subr.mxu0 0.0
    %1868 = vmatpush2.msra.mxu0 0.0
    %1869 = vmatprep.subr.mxu0 0.0
    %1870 = vmatpush2.msra.mxu0 0.0
    %1871 = vmatprep.subr.mxu0 0.0
    %1872 = vmatpush2.msra.mxu0 0.0
    %1873 = vmatprep.subr.mxu0 0.0
    %1874 = vmatpush2.msra.mxu0 0.0
    %1875 = vmatprep.subr.mxu0 0.0
    %1876 = vmatpush2.msra.mxu0 0.0
    %1877 = vmatprep.subr.mxu0 0.0
    %1878 = vmatpush2.msra.mxu0 0.0
    %1879 = vmatprep.subr.mxu0 0.0
    %1880 = vmatpush2.msra.mxu0 0.0
    %1881 = vmatprep.subr.mxu0 0.0
    %1882 = vmatpush2.msra.mxu0 0.0
    %1883 = vmatprep.subr.mxu0 0.0
    %1884 = vmatpush2.msra.mxu0 0.0
    %1885 = vmatprep.subr.mxu0 0.0
    %1886 = vmatpush2.msra.mxu0 0.0
    %1887 = vmatprep.subr.mxu0 0.0
    %1888 = vmatpush2.msra.mxu0 0.0
    %1889 = vmatprep.subr.mxu0 0.0
    %1890 = vmatpush2.msra.mxu0 0.0
    %1891 = vmatprep.subr.mxu0 0.0
    %1892 = vmatpush2.msra.mxu0 0.0
    %1893 = vmatprep.subr.mxu0 0.0
    %1894 = vmatpush2.msra.mxu0 0.0
    %1895 = vmatprep.subr.mxu0 0.0
    %1896 = vmatpush2.msra.mxu0 0.0
    %1897 = vmatprep.mubr.f32.mxu0 0.0
    %1898 = vmatmul.mubr.f32.gmra.mxu0 %v1831
    %v1899 = vpop.f32.mrf.mxu0
    %v1900 = vadd.f32 0.0, %v1899
    %v1901 = vpop.f32.mrf.mxu0
    %1902 = vdwg.mxu0
    %v1904 = vrot.slane %v1900, 6
    %v1906 = vadd.f32 %v278, %v1904
    %v1907 = vxor.u32 %v1906, 2147483648
    %v1908 = vmul.f32 %v1907, 1.442695
    %v1909 = vpow.pop %v1908
    %v1910 = vadd.f32 %v1909, 1.0
    %v1911 = vrcp.pop %v1910
    %v1912 = vmul.f32 1.0, %v1911
    %v1913 = vtanh.pop %v1906
    %v1915 = vrot.slane %v1816, 2
    %v1917 = vmul.f32 %v1912, %v1915
    %1919 = vrot.lane.b32.xlu0 %v1913, 32
    %v1920 = vpop.permute.xlu0 %1919
    %v1922 = vmul.f32 %v1912, %v1920
    %1924 = vrot.lane.b32.xlu0 %v1922, 32
    %v1925 = vpop.permute.xlu0 %1924
    %v1927 = vadd.f32 %v1917, %v1925
    %v1928 = vtanh.pop %v1927
    %1930 = vrot.lane.b32.xlu0 %v1928, 32
    %v1931 = vpop.permute.xlu0 %1930
    %v1933 = vmul.f32 %v1912, %v1931
    %1935 = vrot.lane.b32.xlu0 %v1933, 96
    %v1936 = vpop.permute.xlu0 %1935
    %1938 = vst.msk [vmem:[#allocation2] sm:$0xc] %vm1496, %v1936
    %v1939 = vrot.slane %v1933, 2
    %1940 = vrot.lane.b32.xlu0 %v1939, 64
    %v1941 = vpop.permute.xlu0 %1940
    %v1942 = vsel %vm290, %v1941, 0
    %1944 = vmatprep.subr.mxu0 0.0
    %1945 = vmatpush1.msra.mxu0 0.0
    %1946 = vmatprep.subr.mxu0 0.0
    %1947 = vmatpush1.msra.mxu0 0.0
    %1948 = vmatprep.subr.mxu0 0.0
    %1949 = vmatpush1.msra.mxu0 0.0
    %1950 = vmatprep.subr.mxu0 0.0
    %1951 = vmatpush1.msra.mxu0 0.0
    %1952 = vmatprep.subr.mxu0 0.0
    %1953 = vmatpush1.msra.mxu0 0.0
    %1954 = vmatprep.subr.mxu0 0.0
    %1955 = vmatpush1.msra.mxu0 0.0
    %1956 = vmatprep.subr.mxu0 0.0
    %1957 = vmatpush1.msra.mxu0 0.0
    %1958 = vmatprep.subr.mxu0 0.0
    %1959 = vmatpush1.msra.mxu0 0.0
    %1960 = vmatprep.subr.mxu0 0.0
    %1961 = vmatpush1.msra.mxu0 0.0
    %1962 = vmatprep.subr.mxu0 0.0
    %1963 = vmatpush1.msra.mxu0 0.0
    %1964 = vmatprep.subr.mxu0 0.0
    %1965 = vmatpush1.msra.mxu0 0.0
    %1966 = vmatprep.subr.mxu0 0.0
    %1967 = vmatpush1.msra.mxu0 0.0
    %1968 = vmatprep.subr.mxu0 0.0
    %1969 = vmatpush1.msra.mxu0 %v1169
    %1970 = vmatprep.subr.mxu0 0.0
    %1971 = vmatpush1.msra.mxu0 %v1168
    %1972 = vmatprep.subr.mxu0 0.0
    %1973 = vmatpush1.msra.mxu0 %v1167
    %1974 = vmatprep.subr.mxu0 0.0
    %1975 = vmatpush1.msra.mxu0 %v1166
    %1976 = vmatprep.subr.mxu0 0.0
    %1977 = vmatpush2.msra.mxu0 0.0
    %1978 = vmatprep.subr.mxu0 0.0
    %1979 = vmatpush2.msra.mxu0 0.0
    %1980 = vmatprep.subr.mxu0 0.0
    %1981 = vmatpush2.msra.mxu0 0.0
    %1982 = vmatprep.subr.mxu0 0.0
    %1983 = vmatpush2.msra.mxu0 0.0
    %1984 = vmatprep.subr.mxu0 0.0
    %1985 = vmatpush2.msra.mxu0 0.0
    %1986 = vmatprep.subr.mxu0 0.0
    %1987 = vmatpush2.msra.mxu0 0.0
    %1988 = vmatprep.subr.mxu0 0.0
    %1989 = vmatpush2.msra.mxu0 0.0
    %1990 = vmatprep.subr.mxu0 0.0
    %1991 = vmatpush2.msra.mxu0 0.0
    %1992 = vmatprep.subr.mxu0 0.0
    %1993 = vmatpush2.msra.mxu0 0.0
    %1994 = vmatprep.subr.mxu0 0.0
    %1995 = vmatpush2.msra.mxu0 0.0
    %1996 = vmatprep.subr.mxu0 0.0
    %1997 = vmatpush2.msra.mxu0 0.0
    %1998 = vmatprep.subr.mxu0 0.0
    %1999 = vmatpush2.msra.mxu0 0.0
    %2000 = vmatprep.subr.mxu0 0.0
    %2001 = vmatpush2.msra.mxu0 0.0
    %2002 = vmatprep.subr.mxu0 0.0
    %2003 = vmatpush2.msra.mxu0 0.0
    %2004 = vmatprep.subr.mxu0 0.0
    %2005 = vmatpush2.msra.mxu0 0.0
    %2006 = vmatprep.subr.mxu0 0.0
    %2007 = vmatpush2.msra.mxu0 0.0
    %2008 = vmatprep.mubr.f32.mxu0 0.0
    %2009 = vmatmul.mubr.f32.gmra.mxu0 %v1942
    %v2010 = vpop.f32.mrf.mxu0
    %v2011 = vadd.f32 0.0, %v2010
    %v2012 = vpop.f32.mrf.mxu0
    %2013 = vdwg.mxu0
    %v2014 = vadd.f32 %v278, %v2011
    %v2015 = vxor.u32 %v2014, 2147483648
    %v2016 = vmul.f32 %v2015, 1.442695
    %v2017 = vpow.pop %v2016
    %v2018 = vadd.f32 %v2017, 1.0
    %v2019 = vrcp.pop %v2018
    %v2020 = vmul.f32 1.0, %v2019
    %v2021 = vtanh.pop %v2014
    %v2023 = vrot.slane %v1927, 2
    %v2025 = vmul.f32 %v2020, %v2023
    %2027 = vrot.lane.b32.xlu0 %v2021, 32
    %v2028 = vpop.permute.xlu0 %2027
    %v2030 = vmul.f32 %v2020, %v2028
    %2032 = vrot.lane.b32.xlu0 %v2030, 32
    %v2033 = vpop.permute.xlu0 %2032
    %v2035 = vadd.f32 %v2025, %v2033
    %v2036 = vtanh.pop %v2035
    %2038 = vrot.lane.b32.xlu0 %v2036, 32
    %v2039 = vpop.permute.xlu0 %2038
    %v2041 = vmul.f32 %v2020, %v2039
    %2043 = vrot.lane.b32.xlu0 %v2041, 96
    %v2044 = vpop.permute.xlu0 %2043
    %2046 = vst.msk [vmem:[#allocation2] sm:$0x3] %vm1605, %v2044
    %v2047 = vld [vmem:[#allocation2] sm:$0xff]
    %v2048 = vld [vmem:[#allocation2 + $0x8] sm:$0xff]
    %v2049 = vld [vmem:[%s6] sm:$0xff]
    %v2050 = vld [vmem:[%s6 + $0x8] sm:$0xff]
    %v2051 = vld [vmem:[%s6 + $0x10] sm:$0xff]
    %v2052 = vld [vmem:[%s6 + $0x18] sm:$0xff]
    %v2053 = vld [vmem:[%s6 + $0x20] sm:$0xff]
    %v2054 = vld [vmem:[%s6 + $0x28] sm:$0xff]
    %v2055 = vld [vmem:[%s6 + $0x30] sm:$0xff]
    %v2056 = vld [vmem:[%s6 + $0x38] sm:$0xff]
    %v2057 = vld [vmem:[%s7] sm:$0x1]
    %v2059 = vlaneseq
    %v2060 = vshrl.u32 %v2059, 7
    %v2061 = vsub.s32 0, %v2060
    %v2062 = vrot.slane %v2057, %v2061
    %vm2064 = vcmask 523264
    %v2066 = vsel %vm2064, %v2047, 0
    %v2069 = vsel %vm2064, %v2048, 0
    %2071 = vmatprep.subr.mxu0 0.0
    %2072 = vmatpush1.msra.mxu0 0.0
    %2073 = vmatprep.subr.mxu0 0.0
    %2074 = vmatpush1.msra.mxu0 0.0
    %2075 = vmatprep.subr.mxu0 0.0
    %2076 = vmatpush1.msra.mxu0 0.0
    %2077 = vmatprep.subr.mxu0 0.0
    %2078 = vmatpush1.msra.mxu0 0.0
    %2079 = vmatprep.subr.mxu0 0.0
    %2080 = vmatpush1.msra.mxu0 0.0
    %2081 = vmatprep.subr.mxu0 0.0
    %2082 = vmatpush1.msra.mxu0 0.0
    %2083 = vmatprep.subr.mxu0 0.0
    %2084 = vmatpush1.msra.mxu0 0.0
    %2085 = vmatprep.subr.mxu0 0.0
    %2086 = vmatpush1.msra.mxu0 0.0
    %2087 = vmatprep.subr.mxu0 0.0
    %2088 = vmatpush1.msra.mxu0 %v2056
    %2089 = vmatprep.subr.mxu0 0.0
    %2090 = vmatpush1.msra.mxu0 %v2055
    %2091 = vmatprep.subr.mxu0 0.0
    %2092 = vmatpush1.msra.mxu0 %v2054
    %2093 = vmatprep.subr.mxu0 0.0
    %2094 = vmatpush1.msra.mxu0 %v2053
    %2095 = vmatprep.subr.mxu0 0.0
    %2096 = vmatpush1.msra.mxu0 %v2052
    %2097 = vmatprep.subr.mxu0 0.0
    %2098 = vmatpush1.msra.mxu0 %v2051
    %2099 = vmatprep.subr.mxu0 0.0
    %2100 = vmatpush1.msra.mxu0 %v2050
    %2101 = vmatprep.subr.mxu0 0.0
    %2102 = vmatpush1.msra.mxu0 %v2049
    %2103 = vmatprep.subr.mxu0 0.0
    %2104 = vmatpush2.msra.mxu0 0.0
    %2105 = vmatprep.subr.mxu0 0.0
    %2106 = vmatpush2.msra.mxu0 0.0
    %2107 = vmatprep.subr.mxu0 0.0
    %2108 = vmatpush2.msra.mxu0 0.0
    %2109 = vmatprep.subr.mxu0 0.0
    %2110 = vmatpush2.msra.mxu0 0.0
    %2111 = vmatprep.subr.mxu0 0.0
    %2112 = vmatpush2.msra.mxu0 0.0
    %2113 = vmatprep.subr.mxu0 0.0
    %2114 = vmatpush2.msra.mxu0 0.0
    %2115 = vmatprep.subr.mxu0 0.0
    %2116 = vmatpush2.msra.mxu0 0.0
    %2117 = vmatprep.subr.mxu0 0.0
    %2118 = vmatpush2.msra.mxu0 0.0
    %2119 = vmatprep.subr.mxu0 0.0
    %2120 = vmatpush2.msra.mxu0 0.0
    %2121 = vmatprep.subr.mxu0 0.0
    %2122 = vmatpush2.msra.mxu0 0.0
    %2123 = vmatprep.subr.mxu0 0.0
    %2124 = vmatpush2.msra.mxu0 0.0
    %2125 = vmatprep.subr.mxu0 0.0
    %2126 = vmatpush2.msra.mxu0 0.0
    %2127 = vmatprep.subr.mxu0 0.0
    %2128 = vmatpush2.msra.mxu0 0.0
    %2129 = vmatprep.subr.mxu0 0.0
    %2130 = vmatpush2.msra.mxu0 0.0
    %2131 = vmatprep.subr.mxu0 0.0
    %2132 = vmatpush2.msra.mxu0 0.0
    %2133 = vmatprep.subr.mxu0 0.0
    %2134 = vmatpush2.msra.mxu0 0.0
    %2135 = vmatprep.mubr.f32.mxu0 0.0
    %2136 = vmatmul.mubr.f32.gmra.mxu0 %v2066
    %v2137 = vpop.f32.mrf.mxu0
    %v2138 = vadd.f32 %v2062, %v2137
    %v2139 = vpop.f32.mrf.mxu0
    %2140 = vmatprep.mubr.f32.mxu0 0.0
    %2141 = vmatmul.mubr.f32.gmra.mxu0 %v2069
    %v2142 = vpop.f32.mrf.mxu0
    %v2143 = vadd.f32 %v2062, %v2142
    %v2144 = vpop.f32.mrf.mxu0
    %2145 = vdwg.mxu0
    %v2146 = vld [vmem:[#allocation8] sm:$0xff]
    %v2147 = vld [vmem:[#allocation8 + $0x8] sm:$0xff]
    %v2148 = vld [vmem:[#allocation8 + $0x10] sm:$0xff]
    %v2149 = vld [vmem:[#allocation8 + $0x18] sm:$0xff]
    %2150 = vmatprep.subr.mxu0 0.0
    %2151 = vmatpush1.msra.mxu0 0.0
    %2152 = vmatprep.subr.mxu0 0.0
    %2153 = vmatpush1.msra.mxu0 0.0
    %2154 = vmatprep.subr.mxu0 0.0
    %2155 = vmatpush1.msra.mxu0 0.0
    %2156 = vmatprep.subr.mxu0 0.0
    %2157 = vmatpush1.msra.mxu0 0.0
    %2158 = vmatprep.subr.mxu0 0.0
    %2159 = vmatpush1.msra.mxu0 0.0
    %2160 = vmatprep.subr.mxu0 0.0
    %2161 = vmatpush1.msra.mxu0 0.0
    %2162 = vmatprep.subr.mxu0 0.0
    %2163 = vmatpush1.msra.mxu0 0.0
    %2164 = vmatprep.subr.mxu0 0.0
    %2165 = vmatpush1.msra.mxu0 0.0
    %2166 = vmatprep.subr.mxu0 0.0
    %2167 = vmatpush1.msra.mxu0 0.0
    %2168 = vmatprep.subr.mxu0 0.0
    %2169 = vmatpush1.msra.mxu0 0.0
    %2170 = vmatprep.subr.mxu0 0.0
    %2171 = vmatpush1.msra.mxu0 0.0
    %2172 = vmatprep.subr.mxu0 0.0
    %2173 = vmatpush1.msra.mxu0 0.0
    %2174 = vmatprep.subr.mxu0 0.0
    %2175 = vmatpush1.msra.mxu0 %v2149
    %2176 = vmatprep.subr.mxu0 0.0
    %2177 = vmatpush1.msra.mxu0 %v2148
    %2178 = vmatprep.subr.mxu0 0.0
    %2179 = vmatpush1.msra.mxu0 %v2147
    %2180 = vmatprep.subr.mxu0 0.0
    %2181 = vmatpush1.msra.mxu0 %v2146
    %2182 = vmatprep.subr.mxu0 0.0
    %2183 = vmatpush2.msra.mxu0 0.0
    %2184 = vmatprep.subr.mxu0 0.0
    %2185 = vmatpush2.msra.mxu0 0.0
    %2186 = vmatprep.subr.mxu0 0.0
    %2187 = vmatpush2.msra.mxu0 0.0
    %2188 = vmatprep.subr.mxu0 0.0
    %2189 = vmatpush2.msra.mxu0 0.0
    %2190 = vmatprep.subr.mxu0 0.0
    %2191 = vmatpush2.msra.mxu0 0.0
    %2192 = vmatprep.subr.mxu0 0.0
    %2193 = vmatpush2.msra.mxu0 0.0
    %2194 = vmatprep.subr.mxu0 0.0
    %2195 = vmatpush2.msra.mxu0 0.0
    %2196 = vmatprep.subr.mxu0 0.0
    %2197 = vmatpush2.msra.mxu0 0.0
    %2198 = vmatprep.subr.mxu0 0.0
    %2199 = vmatpush2.msra.mxu0 0.0
    %2200 = vmatprep.subr.mxu0 0.0
    %2201 = vmatpush2.msra.mxu0 0.0
    %2202 = vmatprep.subr.mxu0 0.0
    %2203 = vmatpush2.msra.mxu0 0.0
    %2204 = vmatprep.subr.mxu0 0.0
    %2205 = vmatpush2.msra.mxu0 0.0
    %2206 = vmatprep.subr.mxu0 0.0
    %2207 = vmatpush2.msra.mxu0 0.0
    %2208 = vmatprep.subr.mxu0 0.0
    %2209 = vmatpush2.msra.mxu0 0.0
    %2210 = vmatprep.subr.mxu0 0.0
    %2211 = vmatpush2.msra.mxu0 0.0
    %2212 = vmatprep.subr.mxu0 0.0
    %2213 = vmatpush2.msra.mxu0 0.0
    %2214 = vmatprep.mubr.f32.mxu0 0.0
    %2215 = vmatmul.mubr.f32.gmra.mxu0 %v292
    %v2216 = vpop.f32.mrf.mxu0
    %v2217 = vadd.f32 0.0, %v2216
    %v2218 = vpop.f32.mrf.mxu0
    %2219 = vdwg.mxu0
    %v2221 = vrot.slane %v2217, 2
    %v2223 = vadd.f32 %v2143, %v2221
    %v2224 = vxor.u32 %v2223, 2147483648
    %v2225 = vmul.f32 %v2224, 1.442695
    %v2226 = vpow.pop %v2225
    %v2227 = vadd.f32 %v2226, 1.0
    %v2228 = vrcp.pop %v2227
    %v2229 = vmul.f32 1.0, %v2228
    %v2230 = vtanh.pop %v2223
    %v2231 = vmul.f32 %v2229, 0.0
    %2233 = vrot.lane.b32.xlu0 %v2230, 32
    %v2234 = vpop.permute.xlu0 %2233
    %v2236 = vmul.f32 %v2229, %v2234
    %2238 = vrot.lane.b32.xlu0 %v2236, 32
    %v2239 = vpop.permute.xlu0 %2238
    %v2241 = vadd.f32 %v2231, %v2239
    %v2242 = vtanh.pop %v2241
    %2244 = vrot.lane.b32.xlu0 %v2242, 32
    %v2245 = vpop.permute.xlu0 %2244
    %v2247 = vmul.f32 %v2229, %v2245
    %v2249 = vrot.slane %v2247, 6
    %2250 = vrot.lane.b32.xlu0 %v2249, 64
    %v2251 = vpop.permute.xlu0 %2250
    %v2252 = vsel %vm290, %v2251, 0
    %2254 = vmatprep.subr.mxu0 0.0
    %2255 = vmatpush1.msra.mxu0 0.0
    %2256 = vmatprep.subr.mxu0 0.0
    %2257 = vmatpush1.msra.mxu0 0.0
    %2258 = vmatprep.subr.mxu0 0.0
    %2259 = vmatpush1.msra.mxu0 0.0
    %2260 = vmatprep.subr.mxu0 0.0
    %2261 = vmatpush1.msra.mxu0 0.0
    %2262 = vmatprep.subr.mxu0 0.0
    %2263 = vmatpush1.msra.mxu0 0.0
    %2264 = vmatprep.subr.mxu0 0.0
    %2265 = vmatpush1.msra.mxu0 0.0
    %2266 = vmatprep.subr.mxu0 0.0
    %2267 = vmatpush1.msra.mxu0 0.0
    %2268 = vmatprep.subr.mxu0 0.0
    %2269 = vmatpush1.msra.mxu0 0.0
    %2270 = vmatprep.subr.mxu0 0.0
    %2271 = vmatpush1.msra.mxu0 0.0
    %2272 = vmatprep.subr.mxu0 0.0
    %2273 = vmatpush1.msra.mxu0 0.0
    %2274 = vmatprep.subr.mxu0 0.0
    %2275 = vmatpush1.msra.mxu0 0.0
    %2276 = vmatprep.subr.mxu0 0.0
    %2277 = vmatpush1.msra.mxu0 0.0
    %2278 = vmatprep.subr.mxu0 0.0
    %2279 = vmatpush1.msra.mxu0 %v2149
    %2280 = vmatprep.subr.mxu0 0.0
    %2281 = vmatpush1.msra.mxu0 %v2148
    %2282 = vmatprep.subr.mxu0 0.0
    %2283 = vmatpush1.msra.mxu0 %v2147
    %2284 = vmatprep.subr.mxu0 0.0
    %2285 = vmatpush1.msra.mxu0 %v2146
    %2286 = vmatprep.subr.mxu0 0.0
    %2287 = vmatpush2.msra.mxu0 0.0
    %2288 = vmatprep.subr.mxu0 0.0
    %2289 = vmatpush2.msra.mxu0 0.0
    %2290 = vmatprep.subr.mxu0 0.0
    %2291 = vmatpush2.msra.mxu0 0.0
    %2292 = vmatprep.subr.mxu0 0.0
    %2293 = vmatpush2.msra.mxu0 0.0
    %2294 = vmatprep.subr.mxu0 0.0
    %2295 = vmatpush2.msra.mxu0 0.0
    %2296 = vmatprep.subr.mxu0 0.0
    %2297 = vmatpush2.msra.mxu0 0.0
    %2298 = vmatprep.subr.mxu0 0.0
    %2299 = vmatpush2.msra.mxu0 0.0
    %2300 = vmatprep.subr.mxu0 0.0
    %2301 = vmatpush2.msra.mxu0 0.0
    %2302 = vmatprep.subr.mxu0 0.0
    %2303 = vmatpush2.msra.mxu0 0.0
    %2304 = vmatprep.subr.mxu0 0.0
    %2305 = vmatpush2.msra.mxu0 0.0
    %2306 = vmatprep.subr.mxu0 0.0
    %2307 = vmatpush2.msra.mxu0 0.0
    %2308 = vmatprep.subr.mxu0 0.0
    %2309 = vmatpush2.msra.mxu0 0.0
    %2310 = vmatprep.subr.mxu0 0.0
    %2311 = vmatpush2.msra.mxu0 0.0
    %2312 = vmatprep.subr.mxu0 0.0
    %2313 = vmatpush2.msra.mxu0 0.0
    %2314 = vmatprep.subr.mxu0 0.0
    %2315 = vmatpush2.msra.mxu0 0.0
    %2316 = vmatprep.subr.mxu0 0.0
    %2317 = vmatpush2.msra.mxu0 0.0
    %2318 = vmatprep.mubr.f32.mxu0 0.0
    %2319 = vmatmul.mubr.f32.gmra.mxu0 %v2252
    %v2320 = vpop.f32.mrf.mxu0
    %v2321 = vadd.f32 0.0, %v2320
    %v2322 = vpop.f32.mrf.mxu0
    %2323 = vdwg.mxu0
    %v2325 = vrot.slane %v2321, 4
    %v2327 = vadd.f32 %v2143, %v2325
    %v2328 = vxor.u32 %v2327, 2147483648
    %v2329 = vmul.f32 %v2328, 1.442695
    %v2330 = vpow.pop %v2329
    %v2331 = vadd.f32 %v2330, 1.0
    %v2332 = vrcp.pop %v2331
    %v2333 = vmul.f32 1.0, %v2332
    %v2334 = vtanh.pop %v2327
    %v2336 = vrot.slane %v2241, 2
    %v2338 = vmul.f32 %v2333, %v2336
    %2340 = vrot.lane.b32.xlu0 %v2334, 32
    %v2341 = vpop.permute.xlu0 %2340
    %v2343 = vmul.f32 %v2333, %v2341
    %2345 = vrot.lane.b32.xlu0 %v2343, 32
    %v2346 = vpop.permute.xlu0 %2345
    %v2348 = vadd.f32 %v2338, %v2346
    %v2349 = vtanh.pop %v2348
    %2351 = vrot.lane.b32.xlu0 %v2349, 32
    %v2352 = vpop.permute.xlu0 %2351
    %v2354 = vmul.f32 %v2333, %v2352
    %v2356 = vrot.slane %v2354, 4
    %2357 = vrot.lane.b32.xlu0 %v2356, 64
    %v2358 = vpop.permute.xlu0 %2357
    %v2359 = vsel %vm290, %v2358, 0
    %2361 = vmatprep.subr.mxu0 0.0
    %2362 = vmatpush1.msra.mxu0 0.0
    %2363 = vmatprep.subr.mxu0 0.0
    %2364 = vmatpush1.msra.mxu0 0.0
    %2365 = vmatprep.subr.mxu0 0.0
    %2366 = vmatpush1.msra.mxu0 0.0
    %2367 = vmatprep.subr.mxu0 0.0
    %2368 = vmatpush1.msra.mxu0 0.0
    %2369 = vmatprep.subr.mxu0 0.0
    %2370 = vmatpush1.msra.mxu0 0.0
    %2371 = vmatprep.subr.mxu0 0.0
    %2372 = vmatpush1.msra.mxu0 0.0
    %2373 = vmatprep.subr.mxu0 0.0
    %2374 = vmatpush1.msra.mxu0 0.0
    %2375 = vmatprep.subr.mxu0 0.0
    %2376 = vmatpush1.msra.mxu0 0.0
    %2377 = vmatprep.subr.mxu0 0.0
    %2378 = vmatpush1.msra.mxu0 0.0
    %2379 = vmatprep.subr.mxu0 0.0
    %2380 = vmatpush1.msra.mxu0 0.0
    %2381 = vmatprep.subr.mxu0 0.0
    %2382 = vmatpush1.msra.mxu0 0.0
    %2383 = vmatprep.subr.mxu0 0.0
    %2384 = vmatpush1.msra.mxu0 0.0
    %2385 = vmatprep.subr.mxu0 0.0
    %2386 = vmatpush1.msra.mxu0 %v2149
    %2387 = vmatprep.subr.mxu0 0.0
    %2388 = vmatpush1.msra.mxu0 %v2148
    %2389 = vmatprep.subr.mxu0 0.0
    %2390 = vmatpush1.msra.mxu0 %v2147
    %2391 = vmatprep.subr.mxu0 0.0
    %2392 = vmatpush1.msra.mxu0 %v2146
    %2393 = vmatprep.subr.mxu0 0.0
    %2394 = vmatpush2.msra.mxu0 0.0
    %2395 = vmatprep.subr.mxu0 0.0
    %2396 = vmatpush2.msra.mxu0 0.0
    %2397 = vmatprep.subr.mxu0 0.0
    %2398 = vmatpush2.msra.mxu0 0.0
    %2399 = vmatprep.subr.mxu0 0.0
    %2400 = vmatpush2.msra.mxu0 0.0
    %2401 = vmatprep.subr.mxu0 0.0
    %2402 = vmatpush2.msra.mxu0 0.0
    %2403 = vmatprep.subr.mxu0 0.0
    %2404 = vmatpush2.msra.mxu0 0.0
    %2405 = vmatprep.subr.mxu0 0.0
    %2406 = vmatpush2.msra.mxu0 0.0
    %2407 = vmatprep.subr.mxu0 0.0
    %2408 = vmatpush2.msra.mxu0 0.0
    %2409 = vmatprep.subr.mxu0 0.0
    %2410 = vmatpush2.msra.mxu0 0.0
    %2411 = vmatprep.subr.mxu0 0.0
    %2412 = vmatpush2.msra.mxu0 0.0
    %2413 = vmatprep.subr.mxu0 0.0
    %2414 = vmatpush2.msra.mxu0 0.0
    %2415 = vmatprep.subr.mxu0 0.0
    %2416 = vmatpush2.msra.mxu0 0.0
    %2417 = vmatprep.subr.mxu0 0.0
    %2418 = vmatpush2.msra.mxu0 0.0
    %2419 = vmatprep.subr.mxu0 0.0
    %2420 = vmatpush2.msra.mxu0 0.0
    %2421 = vmatprep.subr.mxu0 0.0
    %2422 = vmatpush2.msra.mxu0 0.0
    %2423 = vmatprep.subr.mxu0 0.0
    %2424 = vmatpush2.msra.mxu0 0.0
    %2425 = vmatprep.mubr.f32.mxu0 0.0
    %2426 = vmatmul.mubr.f32.gmra.mxu0 %v2359
    %v2427 = vpop.f32.mrf.mxu0
    %v2428 = vadd.f32 0.0, %v2427
    %v2429 = vpop.f32.mrf.mxu0
    %2430 = vdwg.mxu0
    %v2432 = vrot.slane %v2428, 6
    %v2434 = vadd.f32 %v2143, %v2432
    %v2435 = vxor.u32 %v2434, 2147483648
    %v2436 = vmul.f32 %v2435, 1.442695
    %v2437 = vpow.pop %v2436
    %v2438 = vadd.f32 %v2437, 1.0
    %v2439 = vrcp.pop %v2438
    %v2440 = vmul.f32 1.0, %v2439
    %v2441 = vtanh.pop %v2434
    %v2443 = vrot.slane %v2348, 2
    %v2445 = vmul.f32 %v2440, %v2443
    %2447 = vrot.lane.b32.xlu0 %v2441, 32
    %v2448 = vpop.permute.xlu0 %2447
    %v2450 = vmul.f32 %v2440, %v2448
    %2452 = vrot.lane.b32.xlu0 %v2450, 32
    %v2453 = vpop.permute.xlu0 %2452
    %v2455 = vadd.f32 %v2445, %v2453
    %v2456 = vtanh.pop %v2455
    %2458 = vrot.lane.b32.xlu0 %v2456, 32
    %v2459 = vpop.permute.xlu0 %2458
    %v2461 = vmul.f32 %v2440, %v2459
    %v2463 = vrot.slane %v2461, 2
    %2464 = vrot.lane.b32.xlu0 %v2463, 64
    %v2465 = vpop.permute.xlu0 %2464
    %v2466 = vsel %vm290, %v2465, 0
    %2468 = vmatprep.subr.mxu0 0.0
    %2469 = vmatpush1.msra.mxu0 0.0
    %2470 = vmatprep.subr.mxu0 0.0
    %2471 = vmatpush1.msra.mxu0 0.0
    %2472 = vmatprep.subr.mxu0 0.0
    %2473 = vmatpush1.msra.mxu0 0.0
    %2474 = vmatprep.subr.mxu0 0.0
    %2475 = vmatpush1.msra.mxu0 0.0
    %2476 = vmatprep.subr.mxu0 0.0
    %2477 = vmatpush1.msra.mxu0 0.0
    %2478 = vmatprep.subr.mxu0 0.0
    %2479 = vmatpush1.msra.mxu0 0.0
    %2480 = vmatprep.subr.mxu0 0.0
    %2481 = vmatpush1.msra.mxu0 0.0
    %2482 = vmatprep.subr.mxu0 0.0
    %2483 = vmatpush1.msra.mxu0 0.0
    %2484 = vmatprep.subr.mxu0 0.0
    %2485 = vmatpush1.msra.mxu0 0.0
    %2486 = vmatprep.subr.mxu0 0.0
    %2487 = vmatpush1.msra.mxu0 0.0
    %2488 = vmatprep.subr.mxu0 0.0
    %2489 = vmatpush1.msra.mxu0 0.0
    %2490 = vmatprep.subr.mxu0 0.0
    %2491 = vmatpush1.msra.mxu0 0.0
    %2492 = vmatprep.subr.mxu0 0.0
    %2493 = vmatpush1.msra.mxu0 %v2149
    %2494 = vmatprep.subr.mxu0 0.0
    %2495 = vmatpush1.msra.mxu0 %v2148
    %2496 = vmatprep.subr.mxu0 0.0
    %2497 = vmatpush1.msra.mxu0 %v2147
    %2498 = vmatprep.subr.mxu0 0.0
    %2499 = vmatpush1.msra.mxu0 %v2146
    %2500 = vmatprep.subr.mxu0 0.0
    %2501 = vmatpush2.msra.mxu0 0.0
    %2502 = vmatprep.subr.mxu0 0.0
    %2503 = vmatpush2.msra.mxu0 0.0
    %2504 = vmatprep.subr.mxu0 0.0
    %2505 = vmatpush2.msra.mxu0 0.0
    %2506 = vmatprep.subr.mxu0 0.0
    %2507 = vmatpush2.msra.mxu0 0.0
    %2508 = vmatprep.subr.mxu0 0.0
    %2509 = vmatpush2.msra.mxu0 0.0
    %2510 = vmatprep.subr.mxu0 0.0
    %2511 = vmatpush2.msra.mxu0 0.0
    %2512 = vmatprep.subr.mxu0 0.0
    %2513 = vmatpush2.msra.mxu0 0.0
    %2514 = vmatprep.subr.mxu0 0.0
    %2515 = vmatpush2.msra.mxu0 0.0
    %2516 = vmatprep.subr.mxu0 0.0
    %2517 = vmatpush2.msra.mxu0 0.0
    %2518 = vmatprep.subr.mxu0 0.0
    %2519 = vmatpush2.msra.mxu0 0.0
    %2520 = vmatprep.subr.mxu0 0.0
    %2521 = vmatpush2.msra.mxu0 0.0
    %2522 = vmatprep.subr.mxu0 0.0
    %2523 = vmatpush2.msra.mxu0 0.0
    %2524 = vmatprep.subr.mxu0 0.0
    %2525 = vmatpush2.msra.mxu0 0.0
    %2526 = vmatprep.subr.mxu0 0.0
    %2527 = vmatpush2.msra.mxu0 0.0
    %2528 = vmatprep.subr.mxu0 0.0
    %2529 = vmatpush2.msra.mxu0 0.0
    %2530 = vmatprep.subr.mxu0 0.0
    %2531 = vmatpush2.msra.mxu0 0.0
    %2532 = vmatprep.mubr.f32.mxu0 0.0
    %2533 = vmatmul.mubr.f32.gmra.mxu0 %v2466
    %v2534 = vpop.f32.mrf.mxu0
    %v2535 = vadd.f32 0.0, %v2534
    %v2536 = vpop.f32.mrf.mxu0
    %2537 = vdwg.mxu0
    %v2538 = vadd.f32 %v2143, %v2535
    %v2539 = vxor.u32 %v2538, 2147483648
    %v2540 = vmul.f32 %v2539, 1.442695
    %v2541 = vpow.pop %v2540
    %v2542 = vadd.f32 %v2541, 1.0
    %v2543 = vrcp.pop %v2542
    %v2544 = vmul.f32 1.0, %v2543
    %v2545 = vtanh.pop %v2538
    %v2547 = vrot.slane %v2455, 2
    %v2549 = vmul.f32 %v2544, %v2547
    %2551 = vrot.lane.b32.xlu0 %v2545, 32
    %v2552 = vpop.permute.xlu0 %2551
    %v2554 = vmul.f32 %v2544, %v2552
    %2556 = vrot.lane.b32.xlu0 %v2554, 32
    %v2557 = vpop.permute.xlu0 %2556
    %v2559 = vadd.f32 %v2549, %v2557
    %v2560 = vtanh.pop %v2559
    %2562 = vrot.lane.b32.xlu0 %v2560, 32
    %v2563 = vpop.permute.xlu0 %2562
    %v2565 = vmul.f32 %v2544, %v2563
    %2567 = vrot.lane.b32.xlu0 %v2565, 64
    %v2568 = vpop.permute.xlu0 %2567
    %v2569 = vsel %vm290, %v2568, 0
    %2571 = vmatprep.subr.mxu0 0.0
    %2572 = vmatpush1.msra.mxu0 0.0
    %2573 = vmatprep.subr.mxu0 0.0
    %2574 = vmatpush1.msra.mxu0 0.0
    %2575 = vmatprep.subr.mxu0 0.0
    %2576 = vmatpush1.msra.mxu0 0.0
    %2577 = vmatprep.subr.mxu0 0.0
    %2578 = vmatpush1.msra.mxu0 0.0
    %2579 = vmatprep.subr.mxu0 0.0
    %2580 = vmatpush1.msra.mxu0 0.0
    %2581 = vmatprep.subr.mxu0 0.0
    %2582 = vmatpush1.msra.mxu0 0.0
    %2583 = vmatprep.subr.mxu0 0.0
    %2584 = vmatpush1.msra.mxu0 0.0
    %2585 = vmatprep.subr.mxu0 0.0
    %2586 = vmatpush1.msra.mxu0 0.0
    %2587 = vmatprep.subr.mxu0 0.0
    %2588 = vmatpush1.msra.mxu0 0.0
    %2589 = vmatprep.subr.mxu0 0.0
    %2590 = vmatpush1.msra.mxu0 0.0
    %2591 = vmatprep.subr.mxu0 0.0
    %2592 = vmatpush1.msra.mxu0 0.0
    %2593 = vmatprep.subr.mxu0 0.0
    %2594 = vmatpush1.msra.mxu0 0.0
    %2595 = vmatprep.subr.mxu0 0.0
    %2596 = vmatpush1.msra.mxu0 %v2149
    %2597 = vmatprep.subr.mxu0 0.0
    %2598 = vmatpush1.msra.mxu0 %v2148
    %2599 = vmatprep.subr.mxu0 0.0
    %2600 = vmatpush1.msra.mxu0 %v2147
    %2601 = vmatprep.subr.mxu0 0.0
    %2602 = vmatpush1.msra.mxu0 %v2146
    %2603 = vmatprep.subr.mxu0 0.0
    %2604 = vmatpush2.msra.mxu0 0.0
    %2605 = vmatprep.subr.mxu0 0.0
    %2606 = vmatpush2.msra.mxu0 0.0
    %2607 = vmatprep.subr.mxu0 0.0
    %2608 = vmatpush2.msra.mxu0 0.0
    %2609 = vmatprep.subr.mxu0 0.0
    %2610 = vmatpush2.msra.mxu0 0.0
    %2611 = vmatprep.subr.mxu0 0.0
    %2612 = vmatpush2.msra.mxu0 0.0
    %2613 = vmatprep.subr.mxu0 0.0
    %2614 = vmatpush2.msra.mxu0 0.0
    %2615 = vmatprep.subr.mxu0 0.0
    %2616 = vmatpush2.msra.mxu0 0.0
    %2617 = vmatprep.subr.mxu0 0.0
    %2618 = vmatpush2.msra.mxu0 0.0
    %2619 = vmatprep.subr.mxu0 0.0
    %2620 = vmatpush2.msra.mxu0 0.0
    %2621 = vmatprep.subr.mxu0 0.0
    %2622 = vmatpush2.msra.mxu0 0.0
    %2623 = vmatprep.subr.mxu0 0.0
    %2624 = vmatpush2.msra.mxu0 0.0
    %2625 = vmatprep.subr.mxu0 0.0
    %2626 = vmatpush2.msra.mxu0 0.0
    %2627 = vmatprep.subr.mxu0 0.0
    %2628 = vmatpush2.msra.mxu0 0.0
    %2629 = vmatprep.subr.mxu0 0.0
    %2630 = vmatpush2.msra.mxu0 0.0
    %2631 = vmatprep.subr.mxu0 0.0
    %2632 = vmatpush2.msra.mxu0 0.0
    %2633 = vmatprep.subr.mxu0 0.0
    %2634 = vmatpush2.msra.mxu0 0.0
    %2635 = vmatprep.mubr.f32.mxu0 0.0
    %2636 = vmatmul.mubr.f32.gmra.mxu0 %v2569
    %v2637 = vpop.f32.mrf.mxu0
    %v2638 = vadd.f32 0.0, %v2637
    %v2639 = vpop.f32.mrf.mxu0
    %2640 = vdwg.mxu0
    %v2642 = vrot.slane %v2638, 2
    %v2644 = vadd.f32 %v2138, %v2642
    %v2645 = vxor.u32 %v2644, 2147483648
    %v2646 = vmul.f32 %v2645, 1.442695
    %v2647 = vpow.pop %v2646
    %v2648 = vadd.f32 %v2647, 1.0
    %v2649 = vrcp.pop %v2648
    %v2650 = vmul.f32 1.0, %v2649
    %v2651 = vtanh.pop %v2644
    %v2653 = vrot.slane %v2559, 2
    %v2655 = vmul.f32 %v2650, %v2653
    %2657 = vrot.lane.b32.xlu0 %v2651, 32
    %v2658 = vpop.permute.xlu0 %2657
    %v2660 = vmul.f32 %v2650, %v2658
    %2662 = vrot.lane.b32.xlu0 %v2660, 32
    %v2663 = vpop.permute.xlu0 %2662
    %v2665 = vadd.f32 %v2655, %v2663
    %v2666 = vtanh.pop %v2665
    %2668 = vrot.lane.b32.xlu0 %v2666, 32
    %v2669 = vpop.permute.xlu0 %2668
    %v2671 = vmul.f32 %v2650, %v2669
    %v2673 = vrot.slane %v2671, 6
    %2674 = vrot.lane.b32.xlu0 %v2673, 64
    %v2675 = vpop.permute.xlu0 %2674
    %v2676 = vsel %vm290, %v2675, 0
    %2678 = vmatprep.subr.mxu0 0.0
    %2679 = vmatpush1.msra.mxu0 0.0
    %2680 = vmatprep.subr.mxu0 0.0
    %2681 = vmatpush1.msra.mxu0 0.0
    %2682 = vmatprep.subr.mxu0 0.0
    %2683 = vmatpush1.msra.mxu0 0.0
    %2684 = vmatprep.subr.mxu0 0.0
    %2685 = vmatpush1.msra.mxu0 0.0
    %2686 = vmatprep.subr.mxu0 0.0
    %2687 = vmatpush1.msra.mxu0 0.0
    %2688 = vmatprep.subr.mxu0 0.0
    %2689 = vmatpush1.msra.mxu0 0.0
    %2690 = vmatprep.subr.mxu0 0.0
    %2691 = vmatpush1.msra.mxu0 0.0
    %2692 = vmatprep.subr.mxu0 0.0
    %2693 = vmatpush1.msra.mxu0 0.0
    %2694 = vmatprep.subr.mxu0 0.0
    %2695 = vmatpush1.msra.mxu0 0.0
    %2696 = vmatprep.subr.mxu0 0.0
    %2697 = vmatpush1.msra.mxu0 0.0
    %2698 = vmatprep.subr.mxu0 0.0
    %2699 = vmatpush1.msra.mxu0 0.0
    %2700 = vmatprep.subr.mxu0 0.0
    %2701 = vmatpush1.msra.mxu0 0.0
    %2702 = vmatprep.subr.mxu0 0.0
    %2703 = vmatpush1.msra.mxu0 %v2149
    %2704 = vmatprep.subr.mxu0 0.0
    %2705 = vmatpush1.msra.mxu0 %v2148
    %2706 = vmatprep.subr.mxu0 0.0
    %2707 = vmatpush1.msra.mxu0 %v2147
    %2708 = vmatprep.subr.mxu0 0.0
    %2709 = vmatpush1.msra.mxu0 %v2146
    %2710 = vmatprep.subr.mxu0 0.0
    %2711 = vmatpush2.msra.mxu0 0.0
    %2712 = vmatprep.subr.mxu0 0.0
    %2713 = vmatpush2.msra.mxu0 0.0
    %2714 = vmatprep.subr.mxu0 0.0
    %2715 = vmatpush2.msra.mxu0 0.0
    %2716 = vmatprep.subr.mxu0 0.0
    %2717 = vmatpush2.msra.mxu0 0.0
    %2718 = vmatprep.subr.mxu0 0.0
    %2719 = vmatpush2.msra.mxu0 0.0
    %2720 = vmatprep.subr.mxu0 0.0
    %2721 = vmatpush2.msra.mxu0 0.0
    %2722 = vmatprep.subr.mxu0 0.0
    %2723 = vmatpush2.msra.mxu0 0.0
    %2724 = vmatprep.subr.mxu0 0.0
    %2725 = vmatpush2.msra.mxu0 0.0
    %2726 = vmatprep.subr.mxu0 0.0
    %2727 = vmatpush2.msra.mxu0 0.0
    %2728 = vmatprep.subr.mxu0 0.0
    %2729 = vmatpush2.msra.mxu0 0.0
    %2730 = vmatprep.subr.mxu0 0.0
    %2731 = vmatpush2.msra.mxu0 0.0
    %2732 = vmatprep.subr.mxu0 0.0
    %2733 = vmatpush2.msra.mxu0 0.0
    %2734 = vmatprep.subr.mxu0 0.0
    %2735 = vmatpush2.msra.mxu0 0.0
    %2736 = vmatprep.subr.mxu0 0.0
    %2737 = vmatpush2.msra.mxu0 0.0
    %2738 = vmatprep.subr.mxu0 0.0
    %2739 = vmatpush2.msra.mxu0 0.0
    %2740 = vmatprep.subr.mxu0 0.0
    %2741 = vmatpush2.msra.mxu0 0.0
    %2742 = vmatprep.mubr.f32.mxu0 0.0
    %2743 = vmatmul.mubr.f32.gmra.mxu0 %v2676
    %v2744 = vpop.f32.mrf.mxu0
    %v2745 = vadd.f32 0.0, %v2744
    %v2746 = vpop.f32.mrf.mxu0
    %2747 = vdwg.mxu0
    %v2749 = vrot.slane %v2745, 4
    %v2751 = vadd.f32 %v2138, %v2749
    %v2752 = vxor.u32 %v2751, 2147483648
    %v2753 = vmul.f32 %v2752, 1.442695
    %v2754 = vpow.pop %v2753
    %v2755 = vadd.f32 %v2754, 1.0
    %v2756 = vrcp.pop %v2755
    %v2757 = vmul.f32 1.0, %v2756
    %v2758 = vtanh.pop %v2751
    %v2760 = vrot.slane %v2665, 2
    %v2762 = vmul.f32 %v2757, %v2760
    %2764 = vrot.lane.b32.xlu0 %v2758, 32
    %v2765 = vpop.permute.xlu0 %2764
    %v2767 = vmul.f32 %v2757, %v2765
    %2769 = vrot.lane.b32.xlu0 %v2767, 32
    %v2770 = vpop.permute.xlu0 %2769
    %v2772 = vadd.f32 %v2762, %v2770
    %v2773 = vtanh.pop %v2772
    %2775 = vrot.lane.b32.xlu0 %v2773, 32
    %v2776 = vpop.permute.xlu0 %2775
    %v2778 = vmul.f32 %v2757, %v2776
    %v2780 = vrot.slane %v2778, 4
    %2781 = vrot.lane.b32.xlu0 %v2780, 64
    %v2782 = vpop.permute.xlu0 %2781
    %v2783 = vsel %vm290, %v2782, 0
    %2785 = vmatprep.subr.mxu0 0.0
    %2786 = vmatpush1.msra.mxu0 0.0
    %2787 = vmatprep.subr.mxu0 0.0
    %2788 = vmatpush1.msra.mxu0 0.0
    %2789 = vmatprep.subr.mxu0 0.0
    %2790 = vmatpush1.msra.mxu0 0.0
    %2791 = vmatprep.subr.mxu0 0.0
    %2792 = vmatpush1.msra.mxu0 0.0
    %2793 = vmatprep.subr.mxu0 0.0
    %2794 = vmatpush1.msra.mxu0 0.0
    %2795 = vmatprep.subr.mxu0 0.0
    %2796 = vmatpush1.msra.mxu0 0.0
    %2797 = vmatprep.subr.mxu0 0.0
    %2798 = vmatpush1.msra.mxu0 0.0
    %2799 = vmatprep.subr.mxu0 0.0
    %2800 = vmatpush1.msra.mxu0 0.0
    %2801 = vmatprep.subr.mxu0 0.0
    %2802 = vmatpush1.msra.mxu0 0.0
    %2803 = vmatprep.subr.mxu0 0.0
    %2804 = vmatpush1.msra.mxu0 0.0
    %2805 = vmatprep.subr.mxu0 0.0
    %2806 = vmatpush1.msra.mxu0 0.0
    %2807 = vmatprep.subr.mxu0 0.0
    %2808 = vmatpush1.msra.mxu0 0.0
    %2809 = vmatprep.subr.mxu0 0.0
    %2810 = vmatpush1.msra.mxu0 %v2149
    %2811 = vmatprep.subr.mxu0 0.0
    %2812 = vmatpush1.msra.mxu0 %v2148
    %2813 = vmatprep.subr.mxu0 0.0
    %2814 = vmatpush1.msra.mxu0 %v2147
    %2815 = vmatprep.subr.mxu0 0.0
    %2816 = vmatpush1.msra.mxu0 %v2146
    %2817 = vmatprep.subr.mxu0 0.0
    %2818 = vmatpush2.msra.mxu0 0.0
    %2819 = vmatprep.subr.mxu0 0.0
    %2820 = vmatpush2.msra.mxu0 0.0
    %2821 = vmatprep.subr.mxu0 0.0
    %2822 = vmatpush2.msra.mxu0 0.0
    %2823 = vmatprep.subr.mxu0 0.0
    %2824 = vmatpush2.msra.mxu0 0.0
    %2825 = vmatprep.subr.mxu0 0.0
    %2826 = vmatpush2.msra.mxu0 0.0
    %2827 = vmatprep.subr.mxu0 0.0
    %2828 = vmatpush2.msra.mxu0 0.0
    %2829 = vmatprep.subr.mxu0 0.0
    %2830 = vmatpush2.msra.mxu0 0.0
    %2831 = vmatprep.subr.mxu0 0.0
    %2832 = vmatpush2.msra.mxu0 0.0
    %2833 = vmatprep.subr.mxu0 0.0
    %2834 = vmatpush2.msra.mxu0 0.0
    %2835 = vmatprep.subr.mxu0 0.0
    %2836 = vmatpush2.msra.mxu0 0.0
    %2837 = vmatprep.subr.mxu0 0.0
    %2838 = vmatpush2.msra.mxu0 0.0
    %2839 = vmatprep.subr.mxu0 0.0
    %2840 = vmatpush2.msra.mxu0 0.0
    %2841 = vmatprep.subr.mxu0 0.0
    %2842 = vmatpush2.msra.mxu0 0.0
    %2843 = vmatprep.subr.mxu0 0.0
    %2844 = vmatpush2.msra.mxu0 0.0
    %2845 = vmatprep.subr.mxu0 0.0
    %2846 = vmatpush2.msra.mxu0 0.0
    %2847 = vmatprep.subr.mxu0 0.0
    %2848 = vmatpush2.msra.mxu0 0.0
    %2849 = vmatprep.mubr.f32.mxu0 0.0
    %2850 = vmatmul.mubr.f32.gmra.mxu0 %v2783
    %v2851 = vpop.f32.mrf.mxu0
    %v2852 = vadd.f32 0.0, %v2851
    %v2853 = vpop.f32.mrf.mxu0
    %2854 = vdwg.mxu0
    %v2856 = vrot.slane %v2852, 6
    %v2858 = vadd.f32 %v2138, %v2856
    %v2859 = vxor.u32 %v2858, 2147483648
    %v2860 = vmul.f32 %v2859, 1.442695
    %v2861 = vpow.pop %v2860
    %v2862 = vadd.f32 %v2861, 1.0
    %v2863 = vrcp.pop %v2862
    %v2864 = vmul.f32 1.0, %v2863
    %v2865 = vtanh.pop %v2858
    %v2867 = vrot.slane %v2772, 2
    %v2869 = vmul.f32 %v2864, %v2867
    %2871 = vrot.lane.b32.xlu0 %v2865, 32
    %v2872 = vpop.permute.xlu0 %2871
    %v2874 = vmul.f32 %v2864, %v2872
    %2876 = vrot.lane.b32.xlu0 %v2874, 32
    %v2877 = vpop.permute.xlu0 %2876
    %v2879 = vadd.f32 %v2869, %v2877
    %v2880 = vtanh.pop %v2879
    %2882 = vrot.lane.b32.xlu0 %v2880, 32
    %v2883 = vpop.permute.xlu0 %2882
    %v2885 = vmul.f32 %v2864, %v2883
    %v2887 = vrot.slane %v2885, 2
    %2888 = vrot.lane.b32.xlu0 %v2887, 64
    %v2889 = vpop.permute.xlu0 %2888
    %v2890 = vsel %vm290, %v2889, 0
    %2892 = vmatprep.subr.mxu0 0.0
    %2893 = vmatpush1.msra.mxu0 0.0
    %2894 = vmatprep.subr.mxu0 0.0
    %2895 = vmatpush1.msra.mxu0 0.0
    %2896 = vmatprep.subr.mxu0 0.0
    %2897 = vmatpush1.msra.mxu0 0.0
    %2898 = vmatprep.subr.mxu0 0.0
    %2899 = vmatpush1.msra.mxu0 0.0
    %2900 = vmatprep.subr.mxu0 0.0
    %2901 = vmatpush1.msra.mxu0 0.0
    %2902 = vmatprep.subr.mxu0 0.0
    %2903 = vmatpush1.msra.mxu0 0.0
    %2904 = vmatprep.subr.mxu0 0.0
    %2905 = vmatpush1.msra.mxu0 0.0
    %2906 = vmatprep.subr.mxu0 0.0
    %2907 = vmatpush1.msra.mxu0 0.0
    %2908 = vmatprep.subr.mxu0 0.0
    %2909 = vmatpush1.msra.mxu0 0.0
    %2910 = vmatprep.subr.mxu0 0.0
    %2911 = vmatpush1.msra.mxu0 0.0
    %2912 = vmatprep.subr.mxu0 0.0
    %2913 = vmatpush1.msra.mxu0 0.0
    %2914 = vmatprep.subr.mxu0 0.0
    %2915 = vmatpush1.msra.mxu0 0.0
    %2916 = vmatprep.subr.mxu0 0.0
    %2917 = vmatpush1.msra.mxu0 %v2149
    %2918 = vmatprep.subr.mxu0 0.0
    %2919 = vmatpush1.msra.mxu0 %v2148
    %2920 = vmatprep.subr.mxu0 0.0
    %2921 = vmatpush1.msra.mxu0 %v2147
    %2922 = vmatprep.subr.mxu0 0.0
    %2923 = vmatpush1.msra.mxu0 %v2146
    %2924 = vmatprep.subr.mxu0 0.0
    %2925 = vmatpush2.msra.mxu0 0.0
    %2926 = vmatprep.subr.mxu0 0.0
    %2927 = vmatpush2.msra.mxu0 0.0
    %2928 = vmatprep.subr.mxu0 0.0
    %2929 = vmatpush2.msra.mxu0 0.0
    %2930 = vmatprep.subr.mxu0 0.0
    %2931 = vmatpush2.msra.mxu0 0.0
    %2932 = vmatprep.subr.mxu0 0.0
    %2933 = vmatpush2.msra.mxu0 0.0
    %2934 = vmatprep.subr.mxu0 0.0
    %2935 = vmatpush2.msra.mxu0 0.0
    %2936 = vmatprep.subr.mxu0 0.0
    %2937 = vmatpush2.msra.mxu0 0.0
    %2938 = vmatprep.subr.mxu0 0.0
    %2939 = vmatpush2.msra.mxu0 0.0
    %2940 = vmatprep.subr.mxu0 0.0
    %2941 = vmatpush2.msra.mxu0 0.0
    %2942 = vmatprep.subr.mxu0 0.0
    %2943 = vmatpush2.msra.mxu0 0.0
    %2944 = vmatprep.subr.mxu0 0.0
    %2945 = vmatpush2.msra.mxu0 0.0
    %2946 = vmatprep.subr.mxu0 0.0
    %2947 = vmatpush2.msra.mxu0 0.0
    %2948 = vmatprep.subr.mxu0 0.0
    %2949 = vmatpush2.msra.mxu0 0.0
    %2950 = vmatprep.subr.mxu0 0.0
    %2951 = vmatpush2.msra.mxu0 0.0
    %2952 = vmatprep.subr.mxu0 0.0
    %2953 = vmatpush2.msra.mxu0 0.0
    %2954 = vmatprep.subr.mxu0 0.0
    %2955 = vmatpush2.msra.mxu0 0.0
    %2956 = vmatprep.mubr.f32.mxu0 0.0
    %2957 = vmatmul.mubr.f32.gmra.mxu0 %v2890
    %v2958 = vpop.f32.mrf.mxu0
    %v2959 = vadd.f32 0.0, %v2958
    %v2960 = vpop.f32.mrf.mxu0
    %2961 = vdwg.mxu0
    %v2962 = vadd.f32 %v2138, %v2959
    %v2963 = vxor.u32 %v2962, 2147483648
    %v2964 = vmul.f32 %v2963, 1.442695
    %v2965 = vpow.pop %v2964
    %v2966 = vadd.f32 %v2965, 1.0
    %v2967 = vrcp.pop %v2966
    %v2968 = vmul.f32 1.0, %v2967
    %v2969 = vtanh.pop %v2962
    %v2971 = vrot.slane %v2879, 2
    %v2973 = vmul.f32 %v2968, %v2971
    %2975 = vrot.lane.b32.xlu0 %v2969, 32
    %v2976 = vpop.permute.xlu0 %2975
    %v2978 = vmul.f32 %v2968, %v2976
    %2980 = vrot.lane.b32.xlu0 %v2978, 32
    %v2981 = vpop.permute.xlu0 %2980
    %v2983 = vadd.f32 %v2973, %v2981
    %v2984 = vtanh.pop %v2983
    %2986 = vrot.lane.b32.xlu0 %v2984, 32
    %v2987 = vpop.permute.xlu0 %2986
    %v2989 = vmul.f32 %v2968, %v2987
    %v2990 = vld [vmem:[%s9] sm:$0xff]
    %v2991 = vld [vmem:[%s9 + $0x8] sm:$0xff]
    %v2992 = vld [vmem:[%s9 + $0x10] sm:$0xff]
    %v2993 = vld [vmem:[%s9 + $0x18] sm:$0xff]
    %v2994 = vld [vmem:[#allocation3] sm:$0x1]
    %v2996 = vlaneseq
    %v2997 = vshrl.u32 %v2996, 7
    %v2998 = vsub.s32 0, %v2997
    %v2999 = vrot.slane %v2994, %v2998
    %3002 = vrot.lane.b32.xlu0 %v2989, 64
    %v3003 = vpop.permute.xlu0 %3002
    %v3004 = vsel %vm290, %v3003, 0
    %3006 = vmatprep.subr.mxu0 0.0
    %3007 = vmatpush1.msra.mxu0 0.0
    %3008 = vmatprep.subr.mxu0 0.0
    %3009 = vmatpush1.msra.mxu0 0.0
    %3010 = vmatprep.subr.mxu0 0.0
    %3011 = vmatpush1.msra.mxu0 0.0
    %3012 = vmatprep.subr.mxu0 0.0
    %3013 = vmatpush1.msra.mxu0 0.0
    %3014 = vmatprep.subr.mxu0 0.0
    %3015 = vmatpush1.msra.mxu0 0.0
    %3016 = vmatprep.subr.mxu0 0.0
    %3017 = vmatpush1.msra.mxu0 0.0
    %3018 = vmatprep.subr.mxu0 0.0
    %3019 = vmatpush1.msra.mxu0 0.0
    %3020 = vmatprep.subr.mxu0 0.0
    %3021 = vmatpush1.msra.mxu0 0.0
    %3022 = vmatprep.subr.mxu0 0.0
    %3023 = vmatpush1.msra.mxu0 0.0
    %3024 = vmatprep.subr.mxu0 0.0
    %3025 = vmatpush1.msra.mxu0 0.0
    %3026 = vmatprep.subr.mxu0 0.0
    %3027 = vmatpush1.msra.mxu0 0.0
    %3028 = vmatprep.subr.mxu0 0.0
    %3029 = vmatpush1.msra.mxu0 0.0
    %3030 = vmatprep.subr.mxu0 0.0
    %3031 = vmatpush1.msra.mxu0 %v2993
    %3032 = vmatprep.subr.mxu0 0.0
    %3033 = vmatpush1.msra.mxu0 %v2992
    %3034 = vmatprep.subr.mxu0 0.0
    %3035 = vmatpush1.msra.mxu0 %v2991
    %3036 = vmatprep.subr.mxu0 0.0
    %3037 = vmatpush1.msra.mxu0 %v2990
    %3038 = vmatprep.subr.mxu0 0.0
    %3039 = vmatpush2.msra.mxu0 0.0
    %3040 = vmatprep.subr.mxu0 0.0
    %3041 = vmatpush2.msra.mxu0 0.0
    %3042 = vmatprep.subr.mxu0 0.0
    %3043 = vmatpush2.msra.mxu0 0.0
    %3044 = vmatprep.subr.mxu0 0.0
    %3045 = vmatpush2.msra.mxu0 0.0
    %3046 = vmatprep.subr.mxu0 0.0
    %3047 = vmatpush2.msra.mxu0 0.0
    %3048 = vmatprep.subr.mxu0 0.0
    %3049 = vmatpush2.msra.mxu0 0.0
    %3050 = vmatprep.subr.mxu0 0.0
    %3051 = vmatpush2.msra.mxu0 0.0
    %3052 = vmatprep.subr.mxu0 0.0
    %3053 = vmatpush2.msra.mxu0 0.0
    %3054 = vmatprep.subr.mxu0 0.0
    %3055 = vmatpush2.msra.mxu0 0.0
    %3056 = vmatprep.subr.mxu0 0.0
    %3057 = vmatpush2.msra.mxu0 0.0
    %3058 = vmatprep.subr.mxu0 0.0
    %3059 = vmatpush2.msra.mxu0 0.0
    %3060 = vmatprep.subr.mxu0 0.0
    %3061 = vmatpush2.msra.mxu0 0.0
    %3062 = vmatprep.subr.mxu0 0.0
    %3063 = vmatpush2.msra.mxu0 0.0
    %3064 = vmatprep.subr.mxu0 0.0
    %3065 = vmatpush2.msra.mxu0 0.0
    %3066 = vmatprep.subr.mxu0 0.0
    %3067 = vmatpush2.msra.mxu0 0.0
    %3068 = vmatprep.subr.mxu0 0.0
    %3069 = vmatpush2.msra.mxu0 0.0
    %3070 = vmatprep.mubr.f32.mxu0 0.0
    %3071 = vmatmul.mubr.f32.gmra.mxu0 %v3004
    %v3072 = vpop.f32.mrf.mxu0
    %v3073 = vadd.f32 %v2999, %v3072
    %v3074 = vpop.f32.mrf.mxu0
    %3075 = vdwg.mxu0
    %v3076 = vxor.u32 %v3073, 2147483648
    %v3077 = vmul.f32 %v3076, 1.442695
    %v3078 = vpow.pop %v3077
    %v3079 = vadd.f32 %v3078, 1.0
    %v3080 = vrcp.pop %v3079
    %v3081 = vmul.f32 1.0, %v3080
    %vm3082 = vcmask 1024
    %3083 = vst.msk [vmem:[%s11] sm:$0x3] %vm3082, %v3081
    // Predicated region
    $region58: #{tpu_custom_call.1} parent=1 // pred_check
      _
    $region59: #{tpu_custom_call.1} parent=1 // pred_check_branch
      %3085 = sbr.rel (0) target = $region61
    $region60: #{tpu_custom_call.1} parent=1 // pred_region
      _
    $region61: #{tpu_custom_call.1} parent=1 // pred_fallthru
      _
    // Predicated region
    $region62: #{tpu_custom_call.1} parent=1 // pred_check
      _
    $region63: #{tpu_custom_call.1} parent=1 // pred_check_branch
      %3087 = sbr.rel (0) target = $region65
    $region64: #{tpu_custom_call.1} parent=1 // pred_region
      _
    $region65: #{tpu_custom_call.1} parent=1 // pred_fallthru
      _
    %3088 = vsyncpa [#allocation5], 1
    %3089 = vsyncpa [#allocation7], 1

</llo_original>
